<compile_context>
chip_gen: v5e
topology: v5e:2x2
jax: 0.10.0
libtpu: 0.0.40
codegen_flags: <defaults>
</compile_context>

<pallas_src>
import jax
import jax.numpy as jnp
from jax.experimental import pallas as pl
from jax.experimental.pallas import tpu as pltpu

D_IN, D_H1, D_H2, D_OUT = 13, 1024, 128, 4
D_OUT_PAD = 128  # lane-dense padded output width (sliced back to 4 in wrapper)


def _relu6(x):
    return jnp.minimum(jnp.maximum(x, 0.0), 6.0)


def _round_up(n, m):
    return ((n + m - 1) // m) * m


def mlp_relu6_kernel(x_ref,
                     w1_ref, b1_ref,
                     w2_ref, b2_ref,
                     w3_ref, b3_ref,
                     w4_ref, b4_ref,
                     o_ref):
    # All four Linear (+ ReLU6) layers fused; weights are bf16, activations /
    # bias adds / clamps are f32, matmuls accumulate in f32 on the MXU.
    x = x_ref[...].astype(jnp.bfloat16)
    h = jnp.dot(x, w1_ref[...], preferred_element_type=jnp.float32)
    h = _relu6(h + b1_ref[...])                                   # (TB, 1024)

    h = jnp.dot(h.astype(jnp.bfloat16), w2_ref[...],
                preferred_element_type=jnp.float32)
    h = _relu6(h + b2_ref[...])                                   # (TB, 1024)

    h = jnp.dot(h.astype(jnp.bfloat16), w3_ref[...],
                preferred_element_type=jnp.float32)
    h = _relu6(h + b3_ref[...])                                   # (TB, 128)

    # Final Linear, no ReLU6.  w4/b4 are zero-padded to 128 output columns so
    # the store is lane-dense (unmasked vst); wrapper slices [:, :4].
    h = jnp.dot(h.astype(jnp.bfloat16), w4_ref[...],
                preferred_element_type=jnp.float32)
    o_ref[...] = (h + b4_ref[...]).astype(o_ref.dtype)            # (TB, 128)


def prepare_params(params):
    """Cast weights to bf16 (once, host side of the call) and pad the final
    layer to a lane-dense 128-wide output. Biases stay f32."""
    p = {}
    for i in (1, 2, 3, 4):
        p[f"w{i}"] = params[f"w{i}"].astype(jnp.bfloat16)
        p[f"b{i}"] = params[f"b{i}"].astype(jnp.float32)
    p["w4"] = jnp.pad(p["w4"], ((0, 0), (0, D_OUT_PAD - D_OUT)))
    p["b4"] = jnp.pad(p["b4"], ((0, 0), (0, D_OUT_PAD - D_OUT)))
    return p


def _resident_spec(shape):
    """Constant-index BlockSpec: DMA'd once, stays VMEM-resident across the
    grid.  Single-buffered (Buffered(1)) since it is never re-fetched, which
    reclaims ~2.3 MiB of VMEM vs. the default double-buffering."""
    nd = len(shape)
    index_map = lambda i: (0,) * nd
    try:
        return pl.BlockSpec(shape, index_map, pipeline_mode=pl.Buffered(1))
    except TypeError:  # older jax without pipeline_mode kwarg
        return pl.BlockSpec(shape, index_map)


def relu6_net(x, prepped, *, tile_b=1024):
    """x: (B, 13) float32. prepped: output of prepare_params()."""
    B = x.shape[0]

    # Batch tile: multiple of 8 (sublane), capped at tile_b.
    tb = min(tile_b, _round_up(max(B, 1), 8))
    # Guarantee >= 2 grid steps whenever the batch spans more than one minimal
    # tile, so the "parallel" batch axis shards across v7x's 2 TensorCores.
    if tb > 8 and pl.cdiv(B, tb) < 2:
        tb = max(8, _round_up(pl.cdiv(B, 2), 8))

    b_pad = _round_up(B, tb)
    if b_pad != B:
        x = jnp.pad(x, ((0, b_pad - B), (0, 0)))
    grid = (b_pad // tb,)

    in_specs = [
        pl.BlockSpec((tb, D_IN), lambda i: (i, 0)),              # x tile (pipelined)
        _resident_spec((D_IN, D_H1)), _resident_spec((1, D_H1)),        # w1, b1
        _resident_spec((D_H1, D_H1)), _resident_spec((1, D_H1)),        # w2, b2
        _resident_spec((D_H1, D_H2)), _resident_spec((1, D_H2)),        # w3, b3
        _resident_spec((D_H2, D_OUT_PAD)), _resident_spec((1, D_OUT_PAD)),  # w4, b4
    ]

    out = pl.pallas_call(
        mlp_relu6_kernel,
        out_shape=jax.ShapeDtypeStruct((b_pad, D_OUT_PAD), jnp.float32),
        grid=grid,
        in_specs=in_specs,
        out_specs=pl.BlockSpec((tb, D_OUT_PAD), lambda i: (i, 0)),
        compiler_params=pltpu.CompilerParams(
            dimension_semantics=("parallel",),
            # tb=1024 activation footprint (~12 MiB) + single-buffered weights
            # (~2.3 MiB) + pipelined x/out tiles; 28 MiB clears v5e's 16 MiB
            # default scoped limit and stays well under v7x's 64 MiB physical.
            vmem_limit_bytes=28 * 1024 * 1024),
    )(x,
      prepped["w1"], prepped["b1"],
      prepped["w2"], prepped["b2"],
      prepped["w3"], prepped["b3"],
      prepped["w4"], prepped["b4"])

    return out[:B, :D_OUT]


def init_params(key):
    """Deterministic init matching the PyTorch module's shapes.
    Weights stored as (in_dim, out_dim) == W^T of nn.Linear's (out, in)."""
    dims = [(D_IN, D_H1), (D_H1, D_H1), (D_H1, D_H2), (D_H2, D_OUT)]
    params = {}
    keys = jax.random.split(key, 2 * len(dims))
    for i, (din, dout) in enumerate(dims):
        bound = 1.0 / jnp.sqrt(jnp.float32(din))
        w = jax.random.uniform(keys[2 * i], (din, dout), jnp.float32, -bound, bound)
        b = jax.random.uniform(keys[2 * i + 1], (1, dout), jnp.float32, -bound, bound)
        params[f"w{i + 1}"] = w
        params[f"b{i + 1}"] = b
    return params


def reference(x, prepped):
    """Pure-JAX reference mirroring the kernel's bf16-weight math."""
    h = jnp.dot(x.astype(jnp.bfloat16), prepped["w1"],
                preferred_element_type=jnp.float32)
    h = jnp.clip(h + prepped["b1"], 0.0, 6.0)
    h = jnp.dot(h.astype(jnp.bfloat16), prepped["w2"],
                preferred_element_type=jnp.float32)
    h = jnp.clip(h + prepped["b2"], 0.0, 6.0)
    h = jnp.dot(h.astype(jnp.bfloat16), prepped["w3"],
                preferred_element_type=jnp.float32)
    h = jnp.clip(h + prepped["b3"], 0.0, 6.0)
    out = jnp.dot(h.astype(jnp.bfloat16), prepped["w4"],
                  preferred_element_type=jnp.float32) + prepped["b4"]
    return out[:, :D_OUT]


if __name__ == "__main__":
    key = jax.random.PRNGKey(0)
    pkey, xkey = jax.random.split(key)
    params = init_params(pkey)
    prepped = prepare_params(params)

    # Small smoke-test batch (single grid step; large batches exercise the
    # multi-step / megacore path of the same wrapper).
    B = 8
    x = jax.random.normal(xkey, (B, D_IN), jnp.float32)

    out = relu6_net(x, prepped)
    out = jax.block_until_ready(out)

    ref = reference(x, prepped)
    assert out.shape == (B, D_OUT)
    assert jnp.allclose(out, ref, atol=1e-2, rtol=1e-2), (
        float(jnp.max(jnp.abs(out - ref))))

    print("KERNEL_OK")
</pallas_src>

<mosaic_0001>
module attributes {stable_mosaic.version = 11 : i64} {
  func.func @mlp_relu6_kernel(%arg0: i32, %arg1: memref<8x13xf32, #tpu.memory_space<vmem>>, %arg2: memref<13x1024xbf16, #tpu.memory_space<vmem>>, %arg3: memref<1x1024xf32, #tpu.memory_space<vmem>>, %arg4: memref<1024x1024xbf16, #tpu.memory_space<vmem>>, %arg5: memref<1x1024xf32, #tpu.memory_space<vmem>>, %arg6: memref<1024x128xbf16, #tpu.memory_space<vmem>>, %arg7: memref<1x128xf32, #tpu.memory_space<vmem>>, %arg8: memref<128x128xbf16, #tpu.memory_space<vmem>>, %arg9: memref<1x128xf32, #tpu.memory_space<vmem>>, %arg10: memref<8x128xf32, #tpu.memory_space<vmem>>) attributes {dimension_semantics = [#tpu.dimension_semantics<parallel>], iteration_bounds = array<i64: 1>, scalar_prefetch = 0 : i64, scratch_operands = 0 : i64, tpu.core_type = #tpu.core_type<tc>, window_params = [{transform_indices = @transform_0, window_bounds = array<i64: 8, 13>}, {pipeline_mode = #tpu.pipeline_mode<synchronous>, transform_indices = @transform_1, window_bounds = array<i64: 13, 1024>}, {pipeline_mode = #tpu.pipeline_mode<synchronous>, transform_indices = @transform_2, window_bounds = array<i64: 1, 1024>}, {pipeline_mode = #tpu.pipeline_mode<synchronous>, transform_indices = @transform_3, window_bounds = array<i64: 1024, 1024>}, {pipeline_mode = #tpu.pipeline_mode<synchronous>, transform_indices = @transform_4, window_bounds = array<i64: 1, 1024>}, {pipeline_mode = #tpu.pipeline_mode<synchronous>, transform_indices = @transform_5, window_bounds = array<i64: 1024, 128>}, {pipeline_mode = #tpu.pipeline_mode<synchronous>, transform_indices = @transform_6, window_bounds = array<i64: 1, 128>}, {pipeline_mode = #tpu.pipeline_mode<synchronous>, transform_indices = @transform_7, window_bounds = array<i64: 128, 128>}, {pipeline_mode = #tpu.pipeline_mode<synchronous>, transform_indices = @transform_8, window_bounds = array<i64: 1, 128>}, {transform_indices = @transform_9, window_bounds = array<i64: 8, 128>}]} {
    %c0 = arith.constant 0 : index
    %c0_0 = arith.constant 0 : index
    %0 = vector.load %arg1[%c0, %c0_0] : memref<8x13xf32, #tpu.memory_space<vmem>>, vector<8x13xf32>
    %1 = arith.truncf %0 : vector<8x13xf32> to vector<8x13xbf16>
    %c0_1 = arith.constant 0 : index
    %c0_2 = arith.constant 0 : index
    %2 = vector.load %arg2[%c0_1, %c0_2] : memref<13x1024xbf16, #tpu.memory_space<vmem>>, vector<13x1024xbf16>
    %cst = arith.constant dense<0.000000e+00> : vector<8x1024xf32>
    %3 = tpu.matmul %1, %2, %cst {dimension_numbers = #tpu.dot_dimension_numbers<[1], [0], [0], [1], [0, 0, 1, 1], [], []>} : vector<8x13xbf16>, vector<13x1024xbf16>, vector<8x1024xf32> -> vector<8x1024xf32>
    %c0_3 = arith.constant 0 : index
    %c0_4 = arith.constant 0 : index
    %4 = vector.load %arg3[%c0_3, %c0_4] : memref<1x1024xf32, #tpu.memory_space<vmem>>, vector<1x1024xf32>
    %5 = vector.broadcast %4 : vector<1x1024xf32> to vector<8x1024xf32>
    %6 = arith.addf %3, %5 : vector<8x1024xf32>
    %cst_5 = arith.constant 0.000000e+00 : f32
    %7 = vector.broadcast %cst_5 : f32 to vector<8x1024xf32>
    %8 = arith.maximumf %6, %7 : vector<8x1024xf32>
    %cst_6 = arith.constant 6.000000e+00 : f32
    %9 = vector.broadcast %cst_6 : f32 to vector<8x1024xf32>
    %10 = arith.minimumf %8, %9 : vector<8x1024xf32>
    %11 = arith.truncf %10 : vector<8x1024xf32> to vector<8x1024xbf16>
    %c0_7 = arith.constant 0 : index
    %c0_8 = arith.constant 0 : index
    %12 = vector.load %arg4[%c0_7, %c0_8] : memref<1024x1024xbf16, #tpu.memory_space<vmem>>, vector<1024x1024xbf16>
    %cst_9 = arith.constant dense<0.000000e+00> : vector<8x1024xf32>
    %13 = tpu.matmul %11, %12, %cst_9 {dimension_numbers = #tpu.dot_dimension_numbers<[1], [0], [0], [1], [0, 0, 1, 1], [], []>} : vector<8x1024xbf16>, vector<1024x1024xbf16>, vector<8x1024xf32> -> vector<8x1024xf32>
    %c0_10 = arith.constant 0 : index
    %c0_11 = arith.constant 0 : index
    %14 = vector.load %arg5[%c0_10, %c0_11] : memref<1x1024xf32, #tpu.memory_space<vmem>>, vector<1x1024xf32>
    %15 = vector.broadcast %14 : vector<1x1024xf32> to vector<8x1024xf32>
    %16 = arith.addf %13, %15 : vector<8x1024xf32>
    %cst_12 = arith.constant 0.000000e+00 : f32
    %17 = vector.broadcast %cst_12 : f32 to vector<8x1024xf32>
    %18 = arith.maximumf %16, %17 : vector<8x1024xf32>
    %cst_13 = arith.constant 6.000000e+00 : f32
    %19 = vector.broadcast %cst_13 : f32 to vector<8x1024xf32>
    %20 = arith.minimumf %18, %19 : vector<8x1024xf32>
    %21 = arith.truncf %20 : vector<8x1024xf32> to vector<8x1024xbf16>
    %c0_14 = arith.constant 0 : index
    %c0_15 = arith.constant 0 : index
    %22 = vector.load %arg6[%c0_14, %c0_15] : memref<1024x128xbf16, #tpu.memory_space<vmem>>, vector<1024x128xbf16>
    %cst_16 = arith.constant dense<0.000000e+00> : vector<8x128xf32>
    %23 = tpu.matmul %21, %22, %cst_16 {dimension_numbers = #tpu.dot_dimension_numbers<[1], [0], [0], [1], [0, 0, 1, 1], [], []>} : vector<8x1024xbf16>, vector<1024x128xbf16>, vector<8x128xf32> -> vector<8x128xf32>
    %c0_17 = arith.constant 0 : index
    %c0_18 = arith.constant 0 : index
    %24 = vector.load %arg7[%c0_17, %c0_18] : memref<1x128xf32, #tpu.memory_space<vmem>>, vector<1x128xf32>
    %25 = vector.broadcast %24 : vector<1x128xf32> to vector<8x128xf32>
    %26 = arith.addf %23, %25 : vector<8x128xf32>
    %cst_19 = arith.constant 0.000000e+00 : f32
    %27 = vector.broadcast %cst_19 : f32 to vector<8x128xf32>
    %28 = arith.maximumf %26, %27 : vector<8x128xf32>
    %cst_20 = arith.constant 6.000000e+00 : f32
    %29 = vector.broadcast %cst_20 : f32 to vector<8x128xf32>
    %30 = arith.minimumf %28, %29 : vector<8x128xf32>
    %31 = arith.truncf %30 : vector<8x128xf32> to vector<8x128xbf16>
    %c0_21 = arith.constant 0 : index
    %c0_22 = arith.constant 0 : index
    %32 = vector.load %arg8[%c0_21, %c0_22] : memref<128x128xbf16, #tpu.memory_space<vmem>>, vector<128x128xbf16>
    %cst_23 = arith.constant dense<0.000000e+00> : vector<8x128xf32>
    %33 = tpu.matmul %31, %32, %cst_23 {dimension_numbers = #tpu.dot_dimension_numbers<[1], [0], [0], [1], [0, 0, 1, 1], [], []>} : vector<8x128xbf16>, vector<128x128xbf16>, vector<8x128xf32> -> vector<8x128xf32>
    %c0_24 = arith.constant 0 : index
    %c0_25 = arith.constant 0 : index
    %34 = vector.load %arg9[%c0_24, %c0_25] : memref<1x128xf32, #tpu.memory_space<vmem>>, vector<1x128xf32>
    %35 = vector.broadcast %34 : vector<1x128xf32> to vector<8x128xf32>
    %36 = arith.addf %33, %35 : vector<8x128xf32>
    %c0_26 = arith.constant 0 : index
    %c0_27 = arith.constant 0 : index
    %37 = vector.load %arg10[%c0_26, %c0_27] : memref<8x128xf32, #tpu.memory_space<vmem>>, vector<8x128xf32>
    tpu.vector_store %arg10[%c0_26, %c0_27], %36 {strides = array<i32>} : memref<8x128xf32, #tpu.memory_space<vmem>>, vector<8x128xf32>,
    return
  }
  func.func @transform_0(%arg0: i32) -> (i32, i32) {
    %c0_i32 = arith.constant 0 : i32
    %c0_i32_0 = arith.constant 0 : i32
    return %arg0, %c0_i32 : i32, i32
  }
  func.func @transform_1(%arg0: i32) -> (i32, i32) {
    %c0_i32 = arith.constant 0 : i32
    %c0_i32_0 = arith.constant 0 : i32
    %c0_i32_1 = arith.constant 0 : i32
    return %c0_i32, %c0_i32_0 : i32, i32
  }
  func.func @transform_2(%arg0: i32) -> (i32, i32) {
    %c0_i32 = arith.constant 0 : i32
    %c0_i32_0 = arith.constant 0 : i32
    %c0_i32_1 = arith.constant 0 : i32
    return %c0_i32, %c0_i32_0 : i32, i32
  }
  func.func @transform_3(%arg0: i32) -> (i32, i32) {
    %c0_i32 = arith.constant 0 : i32
    %c0_i32_0 = arith.constant 0 : i32
    %c0_i32_1 = arith.constant 0 : i32
    return %c0_i32, %c0_i32_0 : i32, i32
  }
  func.func @transform_4(%arg0: i32) -> (i32, i32) {
    %c0_i32 = arith.constant 0 : i32
    %c0_i32_0 = arith.constant 0 : i32
    %c0_i32_1 = arith.constant 0 : i32
    return %c0_i32, %c0_i32_0 : i32, i32
  }
  func.func @transform_5(%arg0: i32) -> (i32, i32) {
    %c0_i32 = arith.constant 0 : i32
    %c0_i32_0 = arith.constant 0 : i32
    %c0_i32_1 = arith.constant 0 : i32
    return %c0_i32, %c0_i32_0 : i32, i32
  }
  func.func @transform_6(%arg0: i32) -> (i32, i32) {
    %c0_i32 = arith.constant 0 : i32
    %c0_i32_0 = arith.constant 0 : i32
    %c0_i32_1 = arith.constant 0 : i32
    return %c0_i32, %c0_i32_0 : i32, i32
  }
  func.func @transform_7(%arg0: i32) -> (i32, i32) {
    %c0_i32 = arith.constant 0 : i32
    %c0_i32_0 = arith.constant 0 : i32
    %c0_i32_1 = arith.constant 0 : i32
    return %c0_i32, %c0_i32_0 : i32, i32
  }
  func.func @transform_8(%arg0: i32) -> (i32, i32) {
    %c0_i32 = arith.constant 0 : i32
    %c0_i32_0 = arith.constant 0 : i32
    %c0_i32_1 = arith.constant 0 : i32
    return %c0_i32, %c0_i32_0 : i32, i32
  }
  func.func @transform_9(%arg0: i32) -> (i32, i32) {
    %c0_i32 = arith.constant 0 : i32
    %c0_i32_0 = arith.constant 0 : i32
    return %arg0, %c0_i32 : i32, i32
  }
}

</mosaic_0001>

<llo_original>
// kernel: tpu_custom_call.1
$region0: #{tpu_custom_call.1}
  #allocation0 [shape = 'u32[]', space=smem, size = 0x4, offset = 0x4, fixed_abs, tag = 'smem constant byte address 0x4 - core index']
  #allocation1 [shape = 'u32[72,128]{1,0:T(1,128)}', space=vmem, size = 0x9000, scoped, tag = 'internal scratch']
  %s0 = inlined_call_operand.hbm [shape: f32[8,13], index: 0, kind: input, shape index: {}]
  %s1 = inlined_call_operand.hbm [shape: bf16[13,1024], index: 1, kind: input, shape index: {}]
  %s2 = inlined_call_operand.hbm [shape: f32[1,1024], index: 2, kind: input, shape index: {}]
  %s3 = inlined_call_operand.hbm [shape: bf16[1024,1024], index: 3, kind: input, shape index: {}]
  %s4 = inlined_call_operand.hbm [shape: f32[1,1024], index: 4, kind: input, shape index: {}]
  %s5 = inlined_call_operand.hbm [shape: bf16[1024,128], index: 5, kind: input, shape index: {}]
  %s6 = inlined_call_operand.hbm [shape: f32[1,128], index: 6, kind: input, shape index: {}]
  %s7 = inlined_call_operand.hbm [shape: bf16[128,128], index: 7, kind: input, shape index: {}]
  %s8 = inlined_call_operand.hbm [shape: f32[1,128], index: 8, kind: input, shape index: {}]
  %s9 = inlined_call_operand.hbm [shape: f32[8,128], index: 9, kind: output, shape index: {}]
  %s10 = sld [smem:[#allocation0]]
  $region82: #{tpu_custom_call.1} parent=0
    _
  %s12 = ssub.s32 1, %s10
  %s13 = scalar_select 0, %s12, %s10
  $region1: #{tpu_custom_call.1} parent=0
    #allocation2 [shape = 'u8[4096]{0}', space=vmem, size = 0x1000, scoped, tag = 'input window, operand 0, single buffered']
    #allocation3 [shape = 's32[1]{0}', space=sflag, size = 0x4, scoped, tag = 'scoped memory for tpu_custom_call.1']
    #allocation4 [shape = 's32[1]{0}', space=sflag, size = 0x4, scoped, tag = 'scoped memory for tpu_custom_call.1']
    #allocation5 [shape = 'u8[32768]{0}', space=vmem, size = 0x8000, scoped, tag = 'input window, operand 1, single buffered']
    #allocation6 [shape = 's32[1]{0}', space=sflag, size = 0x4, scoped, tag = 'scoped memory for tpu_custom_call.1']
    #allocation7 [shape = 'u8[4096]{0}', space=vmem, size = 0x1000, scoped, tag = 'input window, operand 2, single buffered']
    #allocation8 [shape = 'u8[2097152]{0}', space=vmem, size = 0x200000, scoped, tag = 'input window, operand 3, single buffered']
    #allocation9 [shape = 's32[1]{0}', space=sflag, size = 0x4, scoped, tag = 'scoped memory for tpu_custom_call.1']
    #allocation10 [shape = 'u8[4096]{0}', space=vmem, size = 0x1000, scoped, tag = 'input window, operand 4, single buffered']
    #allocation11 [shape = 'u8[262144]{0}', space=vmem, size = 0x40000, scoped, tag = 'input window, operand 5, single buffered']
    #allocation12 [shape = 's32[1]{0}', space=sflag, size = 0x4, scoped, tag = 'scoped memory for tpu_custom_call.1']
    #allocation13 [shape = 'u8[512]{0}', space=vmem, size = 0x400, scoped, tag = 'input window, operand 6, single buffered']
    #allocation14 [shape = 'u8[32768]{0}', space=vmem, size = 0x8000, scoped, tag = 'input window, operand 7, single buffered']
    #allocation15 [shape = 's32[1]{0}', space=sflag, size = 0x4, scoped, tag = 'scoped memory for tpu_custom_call.1']
    #allocation16 [shape = 'u8[512]{0}', space=vmem, size = 0x400, scoped, tag = 'input window, operand 8, single buffered']
    #allocation17 [shape = 'u8[4096]{0}', space=vmem, size = 0x1000, scoped, tag = 'output window, operand 0, single buffered']
    %14 = vsyncpa [#allocation3], 0
    %15 = vsyncpa [#allocation6], 0
    %16 = vsyncpa [#allocation9], 0
    %17 = vsyncpa [#allocation12], 0
    %18 = vsyncpa [#allocation15], 0
    %19 = vsyncpa [#allocation4], 0
    // Predicated region
    $region2: #{tpu_custom_call.1} parent=1 // pred_check
      _
    $region3: #{tpu_custom_call.1} parent=1 // pred_check_branch
      %21 = sbr.rel (0) target = $region5
    $region4: #{tpu_custom_call.1} parent=1 // pred_region
      %23 = vsyncadd [#allocation3], 0
      %s25 = sshll.u32 %s0, 4
      %s26 = int_to_ptr.hbm [resolvable:$true] %s25
      %s27 = sshll.u32 [#allocation2], 4
      %s28 = int_to_ptr.vmem [resolvable:$true] %s27
      %30 = dma.hbm_to_vmem [thread:$0]  %s26, 128, %s28, [#allocation3]
    $region5: #{tpu_custom_call.1} parent=1 // pred_fallthru
      _
    // Predicated region
    $region6: #{tpu_custom_call.1} parent=1 // pred_check
      _
    $region7: #{tpu_custom_call.1} parent=1 // pred_check_branch
      %32 = sbr.rel (0) target = $region9
    $region8: #{tpu_custom_call.1} parent=1 // pred_region
      %34 = vsyncadd [#allocation6], 0
      %s35 = sshll.u32 %s1, 4
      %s36 = int_to_ptr.hbm [resolvable:$true] %s35
      %s37 = sshll.u32 [#allocation5], 4
      %s38 = int_to_ptr.vmem [resolvable:$true] %s37
      %43 = dma.hbm_to_vmem [thread:$0]  %s36, 1024, %s38, [#allocation6], 512, 512, 32
    $region9: #{tpu_custom_call.1} parent=1 // pred_fallthru
      _
    // Predicated region
    $region10: #{tpu_custom_call.1} parent=1 // pred_check
      _
    $region11: #{tpu_custom_call.1} parent=1 // pred_check_branch
      %45 = sbr.rel (0) target = $region13
    $region12: #{tpu_custom_call.1} parent=1 // pred_region
      %47 = vsyncadd [#allocation6], 0
      %s49 = sshll.u32 %s2, 4
      %s50 = int_to_ptr.hbm [resolvable:$true] %s49
      %s51 = sshll.u32 [#allocation7], 4
      %s52 = int_to_ptr.vmem [resolvable:$true] %s51
      %54 = dma.hbm_to_vmem [thread:$0]  %s50, 128, %s52, [#allocation6]
    $region13: #{tpu_custom_call.1} parent=1 // pred_fallthru
      _
    // Predicated region
    $region14: #{tpu_custom_call.1} parent=1 // pred_check
      _
    $region15: #{tpu_custom_call.1} parent=1 // pred_check_branch
      %56 = sbr.rel (0) target = $region17
    $region16: #{tpu_custom_call.1} parent=1 // pred_region
      %58 = vsyncadd [#allocation9], 0
      %s59 = sshll.u32 %s3, 4
      %s60 = int_to_ptr.hbm [resolvable:$true] %s59
      %s61 = sshll.u32 [#allocation8], 4
      %s62 = int_to_ptr.vmem [resolvable:$true] %s61
      %67 = dma.hbm_to_vmem [thread:$0]  %s60, 65536, %s62, [#allocation9], 512, 512, 32
    $region17: #{tpu_custom_call.1} parent=1 // pred_fallthru
      _
    // Predicated region
    $region18: #{tpu_custom_call.1} parent=1 // pred_check
      _
    $region19: #{tpu_custom_call.1} parent=1 // pred_check_branch
      %69 = sbr.rel (0) target = $region21
    $region20: #{tpu_custom_call.1} parent=1 // pred_region
      %71 = vsyncadd [#allocation9], 0
      %s73 = sshll.u32 %s4, 4
      %s74 = int_to_ptr.hbm [resolvable:$true] %s73
      %s75 = sshll.u32 [#allocation10], 4
      %s76 = int_to_ptr.vmem [resolvable:$true] %s75
      %78 = dma.hbm_to_vmem [thread:$0]  %s74, 128, %s76, [#allocation9]
    $region21: #{tpu_custom_call.1} parent=1 // pred_fallthru
      _
    // Predicated region
    $region22: #{tpu_custom_call.1} parent=1 // pred_check
      _
    $region23: #{tpu_custom_call.1} parent=1 // pred_check_branch
      %80 = sbr.rel (0) target = $region25
    $region24: #{tpu_custom_call.1} parent=1 // pred_region
      %82 = vsyncadd [#allocation12], 0
      %s83 = sshll.u32 %s5, 4
      %s84 = int_to_ptr.hbm [resolvable:$true] %s83
      %s85 = sshll.u32 [#allocation11], 4
      %s86 = int_to_ptr.vmem [resolvable:$true] %s85
      %91 = dma.hbm_to_vmem [thread:$0]  %s84, 8192, %s86, [#allocation12], 64, 64, 4
    $region25: #{tpu_custom_call.1} parent=1 // pred_fallthru
      _
    // Predicated region
    $region26: #{tpu_custom_call.1} parent=1 // pred_check
      _
    $region27: #{tpu_custom_call.1} parent=1 // pred_check_branch
      %93 = sbr.rel (0) target = $region29
    $region28: #{tpu_custom_call.1} parent=1 // pred_region
      %95 = vsyncadd [#allocation12], 0
      %s97 = sshll.u32 %s6, 4
      %s98 = int_to_ptr.hbm [resolvable:$true] %s97
      %s99 = sshll.u32 [#allocation13], 4
      %s100 = int_to_ptr.vmem [resolvable:$true] %s99
      %102 = dma.hbm_to_vmem [thread:$0]  %s98, 16, %s100, [#allocation12]
    $region29: #{tpu_custom_call.1} parent=1 // pred_fallthru
      _
    // Predicated region
    $region30: #{tpu_custom_call.1} parent=1 // pred_check
      _
    $region31: #{tpu_custom_call.1} parent=1 // pred_check_branch
      %104 = sbr.rel (0) target = $region33
    $region32: #{tpu_custom_call.1} parent=1 // pred_region
      %106 = vsyncadd [#allocation15], 0
      %s107 = sshll.u32 %s7, 4
      %s108 = int_to_ptr.hbm [resolvable:$true] %s107
      %s109 = sshll.u32 [#allocation14], 4
      %s110 = int_to_ptr.vmem [resolvable:$true] %s109
      %115 = dma.hbm_to_vmem [thread:$0]  %s108, 1024, %s110, [#allocation15], 64, 64, 4
    $region33: #{tpu_custom_call.1} parent=1 // pred_fallthru
      _
    // Predicated region
    $region34: #{tpu_custom_call.1} parent=1 // pred_check
      _
    $region35: #{tpu_custom_call.1} parent=1 // pred_check_branch
      %117 = sbr.rel (0) target = $region37
    $region36: #{tpu_custom_call.1} parent=1 // pred_region
      %119 = vsyncadd [#allocation15], 0
      %s121 = sshll.u32 %s8, 4
      %s122 = int_to_ptr.hbm [resolvable:$true] %s121
      %s123 = sshll.u32 [#allocation16], 4
      %s124 = int_to_ptr.vmem [resolvable:$true] %s123
      %126 = dma.hbm_to_vmem [thread:$0]  %s122, 16, %s124, [#allocation15]
    $region37: #{tpu_custom_call.1} parent=1 // pred_fallthru
      _
    // Predicated region
    $region38: #{tpu_custom_call.1} parent=1 // pred_check
      _
    $region39: #{tpu_custom_call.1} parent=1 // pred_check_branch
      %128 = sbr.rel (0) target = $region41
    $region40: #{tpu_custom_call.1} parent=1 // pred_region
      %130 = dma.done [#allocation3], 128
    $region41: #{tpu_custom_call.1} parent=1 // pred_fallthru
      _
    // Predicated region
    $region42: #{tpu_custom_call.1} parent=1 // pred_check
      _
    $region43: #{tpu_custom_call.1} parent=1 // pred_check_branch
      %132 = sbr.rel (0) target = $region45
    $region44: #{tpu_custom_call.1} parent=1 // pred_region
      %134 = dma.done [#allocation6], 1024
    $region45: #{tpu_custom_call.1} parent=1 // pred_fallthru
      _
    // Predicated region
    $region46: #{tpu_custom_call.1} parent=1 // pred_check
      _
    $region47: #{tpu_custom_call.1} parent=1 // pred_check_branch
      %136 = sbr.rel (0) target = $region49
    $region48: #{tpu_custom_call.1} parent=1 // pred_region
      %138 = dma.done [#allocation6], 128
    $region49: #{tpu_custom_call.1} parent=1 // pred_fallthru
      _
    // Predicated region
    $region50: #{tpu_custom_call.1} parent=1 // pred_check
      _
    $region51: #{tpu_custom_call.1} parent=1 // pred_check_branch
      %140 = sbr.rel (0) target = $region53
    $region52: #{tpu_custom_call.1} parent=1 // pred_region
      %142 = dma.done [#allocation9], 65536
    $region53: #{tpu_custom_call.1} parent=1 // pred_fallthru
      _
    // Predicated region
    $region54: #{tpu_custom_call.1} parent=1 // pred_check
      _
    $region55: #{tpu_custom_call.1} parent=1 // pred_check_branch
      %144 = sbr.rel (0) target = $region57
    $region56: #{tpu_custom_call.1} parent=1 // pred_region
      %146 = dma.done [#allocation9], 128
    $region57: #{tpu_custom_call.1} parent=1 // pred_fallthru
      _
    // Predicated region
    $region58: #{tpu_custom_call.1} parent=1 // pred_check
      _
    $region59: #{tpu_custom_call.1} parent=1 // pred_check_branch
      %148 = sbr.rel (0) target = $region61
    $region60: #{tpu_custom_call.1} parent=1 // pred_region
      %150 = dma.done [#allocation12], 8192
    $region61: #{tpu_custom_call.1} parent=1 // pred_fallthru
      _
    // Predicated region
    $region62: #{tpu_custom_call.1} parent=1 // pred_check
      _
    $region63: #{tpu_custom_call.1} parent=1 // pred_check_branch
      %152 = sbr.rel (0) target = $region65
    $region64: #{tpu_custom_call.1} parent=1 // pred_region
      %154 = dma.done [#allocation12], 16
    $region65: #{tpu_custom_call.1} parent=1 // pred_fallthru
      _
    // Predicated region
    $region66: #{tpu_custom_call.1} parent=1 // pred_check
      _
    $region67: #{tpu_custom_call.1} parent=1 // pred_check_branch
      %156 = sbr.rel (0) target = $region69
    $region68: #{tpu_custom_call.1} parent=1 // pred_region
      %158 = dma.done [#allocation15], 1024
    $region69: #{tpu_custom_call.1} parent=1 // pred_fallthru
      _
    // Predicated region
    $region70: #{tpu_custom_call.1} parent=1 // pred_check
      _
    $region71: #{tpu_custom_call.1} parent=1 // pred_check_branch
      %160 = sbr.rel (0) target = $region73
    $region72: #{tpu_custom_call.1} parent=1 // pred_region
      %162 = dma.done [#allocation15], 16
    $region73: #{tpu_custom_call.1} parent=1 // pred_fallthru
      _
    %v164 = vld [vmem:[#allocation2] sm:$0xff]
    %v165 = vpack.c.bf16 %v164, %v164
    %v166 = vld [vmem:[#allocation5] sm:$0xff]
    %v167 = vld [vmem:[#allocation5 + $0x8] sm:$0xff]
    %v168 = vld [vmem:[#allocation5 + $0x10] sm:$0xff]
    %v169 = vld [vmem:[#allocation5 + $0x18] sm:$0xff]
    %v170 = vld [vmem:[#allocation5 + $0x20] sm:$0x77]
    %v171 = vld [vmem:[#allocation5 + $0x28] sm:$0x77]
    %v172 = vld [vmem:[#allocation5 + $0x30] sm:$0x77]
    %v173 = vld [vmem:[#allocation5 + $0x38] sm:$0x77]
    %v174 = vld [vmem:[#allocation7] sm:$0xff]
    %v176 = vperm.slane %v174, 0
    %v177 = vperm.slane %v174, 1
    %v178 = vperm.slane %v174, 2
    %v179 = vperm.slane %v174, 3
    %v180 = vperm.slane %v174, 4
    %v181 = vperm.slane %v174, 5
    %v182 = vperm.slane %v174, 6
    %v183 = vperm.slane %v174, 7
    %v200 = vunpack.c.l.b16 %v166
    %v201 = vunpack.c.h.b16 %v166
    %v202 = vunpack.c.l.b16 %v167
    %v203 = vunpack.c.h.b16 %v167
    %v204 = vunpack.c.l.b16 %v168
    %v205 = vunpack.c.h.b16 %v168
    %v206 = vunpack.c.l.b16 %v169
    %v207 = vunpack.c.h.b16 %v169
    %v208 = vunpack.c.l.b16 %v170
    %v209 = vunpack.c.h.b16 %v170
    %v210 = vunpack.c.l.b16 %v171
    %v211 = vunpack.c.h.b16 %v171
    %v212 = vunpack.c.l.b16 %v172
    %v213 = vunpack.c.h.b16 %v172
    %v214 = vunpack.c.l.b16 %v173
    %v215 = vunpack.c.h.b16 %v173
    %v216 = vpack.c.b16 %v208, %v200
    %v217 = vpack.c.b16 %v209, %v201
    %v218 = vpack.c.b16 %v210, %v202
    %v219 = vpack.c.b16 %v211, %v203
    %v220 = vpack.c.b16 %v212, %v204
    %v221 = vpack.c.b16 %v213, %v205
    %v222 = vpack.c.b16 %v214, %v206
    %v223 = vpack.c.b16 %v215, %v207
    %vm224 = vcmask 105472
    %v226 = vsel %vm224, %v165, 0
    %vm228 = vcmask 1045504
    %vm229 = vcmask 1046528
    %v230 = vsel %vm228, 4294967295, 65535
    %v231 = vsel %vm229, %v230, 0
    %v233 = vand.u32 %v216, %v231
    %v236 = vand.u32 %v217, %v231
    %v239 = vand.u32 %v218, %v231
    %v242 = vand.u32 %v219, %v231
    %v245 = vand.u32 %v220, %v231
    %v248 = vand.u32 %v221, %v231
    %v251 = vand.u32 %v222, %v231
    %v254 = vand.u32 %v223, %v231
    %256 = vmatpush.bf16.msra.mxu0 0
    %257 = vmatpush.bf16.msra.mxu0 0
    %258 = vmatpush.bf16.msra.mxu0 0
    %259 = vmatpush.bf16.msra.mxu0 0
    %260 = vmatpush.bf16.msra.mxu0 0
    %261 = vmatpush.bf16.msra.mxu0 0
    %262 = vmatpush.bf16.msra.mxu0 0
    %263 = vmatpush.bf16.msra.mxu0 %v233
    %264 = vmatmul.bf16.gmra.mxu0 %v226
    %v265 = vpop.f32.mrf.mxu0
    %v266 = vadd.f32 %v176, %v265
    %v267 = vpop.f32.mrf.mxu0
    %268 = vdwg.mxu0
    %269 = vmatpush.bf16.msra.mxu0 0
    %270 = vmatpush.bf16.msra.mxu0 0
    %271 = vmatpush.bf16.msra.mxu0 0
    %272 = vmatpush.bf16.msra.mxu0 0
    %273 = vmatpush.bf16.msra.mxu0 0
    %274 = vmatpush.bf16.msra.mxu0 0
    %275 = vmatpush.bf16.msra.mxu0 0
    %276 = vmatpush.bf16.msra.mxu0 %v236
    %277 = vmatmul.bf16.gmra.mxu0 %v226
    %v278 = vpop.f32.mrf.mxu0
    %v279 = vadd.f32 %v177, %v278
    %v280 = vpop.f32.mrf.mxu0
    %281 = vdwg.mxu0
    %282 = vmatpush.bf16.msra.mxu0 0
    %283 = vmatpush.bf16.msra.mxu0 0
    %284 = vmatpush.bf16.msra.mxu0 0
    %285 = vmatpush.bf16.msra.mxu0 0
    %286 = vmatpush.bf16.msra.mxu0 0
    %287 = vmatpush.bf16.msra.mxu0 0
    %288 = vmatpush.bf16.msra.mxu0 0
    %289 = vmatpush.bf16.msra.mxu0 %v239
    %290 = vmatmul.bf16.gmra.mxu0 %v226
    %v291 = vpop.f32.mrf.mxu0
    %v292 = vadd.f32 %v178, %v291
    %v293 = vpop.f32.mrf.mxu0
    %294 = vdwg.mxu0
    %295 = vmatpush.bf16.msra.mxu0 0
    %296 = vmatpush.bf16.msra.mxu0 0
    %297 = vmatpush.bf16.msra.mxu0 0
    %298 = vmatpush.bf16.msra.mxu0 0
    %299 = vmatpush.bf16.msra.mxu0 0
    %300 = vmatpush.bf16.msra.mxu0 0
    %301 = vmatpush.bf16.msra.mxu0 0
    %302 = vmatpush.bf16.msra.mxu0 %v242
    %303 = vmatmul.bf16.gmra.mxu0 %v226
    %v304 = vpop.f32.mrf.mxu0
    %v305 = vadd.f32 %v179, %v304
    %v306 = vpop.f32.mrf.mxu0
    %307 = vdwg.mxu0
    %308 = vmatpush.bf16.msra.mxu0 0
    %309 = vmatpush.bf16.msra.mxu0 0
    %310 = vmatpush.bf16.msra.mxu0 0
    %311 = vmatpush.bf16.msra.mxu0 0
    %312 = vmatpush.bf16.msra.mxu0 0
    %313 = vmatpush.bf16.msra.mxu0 0
    %314 = vmatpush.bf16.msra.mxu0 0
    %315 = vmatpush.bf16.msra.mxu0 %v245
    %316 = vmatmul.bf16.gmra.mxu0 %v226
    %v317 = vpop.f32.mrf.mxu0
    %v318 = vadd.f32 %v180, %v317
    %v319 = vpop.f32.mrf.mxu0
    %320 = vdwg.mxu0
    %321 = vmatpush.bf16.msra.mxu0 0
    %322 = vmatpush.bf16.msra.mxu0 0
    %323 = vmatpush.bf16.msra.mxu0 0
    %324 = vmatpush.bf16.msra.mxu0 0
    %325 = vmatpush.bf16.msra.mxu0 0
    %326 = vmatpush.bf16.msra.mxu0 0
    %327 = vmatpush.bf16.msra.mxu0 0
    %328 = vmatpush.bf16.msra.mxu0 %v248
    %329 = vmatmul.bf16.gmra.mxu0 %v226
    %v330 = vpop.f32.mrf.mxu0
    %v331 = vadd.f32 %v181, %v330
    %v332 = vpop.f32.mrf.mxu0
    %333 = vdwg.mxu0
    %334 = vmatpush.bf16.msra.mxu0 0
    %335 = vmatpush.bf16.msra.mxu0 0
    %336 = vmatpush.bf16.msra.mxu0 0
    %337 = vmatpush.bf16.msra.mxu0 0
    %338 = vmatpush.bf16.msra.mxu0 0
    %339 = vmatpush.bf16.msra.mxu0 0
    %340 = vmatpush.bf16.msra.mxu0 0
    %341 = vmatpush.bf16.msra.mxu0 %v251
    %342 = vmatmul.bf16.gmra.mxu0 %v226
    %v343 = vpop.f32.mrf.mxu0
    %v344 = vadd.f32 %v182, %v343
    %v345 = vpop.f32.mrf.mxu0
    %346 = vdwg.mxu0
    %347 = vmatpush.bf16.msra.mxu0 0
    %348 = vmatpush.bf16.msra.mxu0 0
    %349 = vmatpush.bf16.msra.mxu0 0
    %350 = vmatpush.bf16.msra.mxu0 0
    %351 = vmatpush.bf16.msra.mxu0 0
    %352 = vmatpush.bf16.msra.mxu0 0
    %353 = vmatpush.bf16.msra.mxu0 0
    %354 = vmatpush.bf16.msra.mxu0 %v254
    %355 = vmatmul.bf16.gmra.mxu0 %v226
    %v356 = vpop.f32.mrf.mxu0
    %v357 = vadd.f32 %v183, %v356
    %v358 = vpop.f32.mrf.mxu0
    %359 = vdwg.mxu0
    %v360 = vmax.f32 %v266, 0.0
    %v361 = vmax.f32 %v279, 0.0
    %v362 = vmax.f32 %v292, 0.0
    %v363 = vmax.f32 %v305, 0.0
    %v364 = vmax.f32 %v318, 0.0
    %v365 = vmax.f32 %v331, 0.0
    %v366 = vmax.f32 %v344, 0.0
    %v367 = vmax.f32 %v357, 0.0
    %v368 = vmin.f32 %v360, 6.0
    %v369 = vmin.f32 %v361, 6.0
    %v370 = vmin.f32 %v362, 6.0
    %v371 = vmin.f32 %v363, 6.0
    %v372 = vmin.f32 %v364, 6.0
    %v373 = vmin.f32 %v365, 6.0
    %v374 = vmin.f32 %v366, 6.0
    %v375 = vmin.f32 %v367, 6.0
    %v376 = vpack.c.bf16 %v368, %v368
    %v377 = vpack.c.bf16 %v369, %v369
    %v378 = vpack.c.bf16 %v370, %v370
    %v379 = vpack.c.bf16 %v371, %v371
    %v380 = vpack.c.bf16 %v372, %v372
    %v381 = vpack.c.bf16 %v373, %v373
    %v382 = vpack.c.bf16 %v374, %v374
    %v383 = vpack.c.bf16 %v375, %v375
    %v384 = vld [vmem:[#allocation8] sm:$0xff]
    %v385 = vld [vmem:[#allocation8 + $0x8] sm:$0xff]
    %v386 = vld [vmem:[#allocation8 + $0x10] sm:$0xff]
    %v387 = vld [vmem:[#allocation8 + $0x18] sm:$0xff]
    %v388 = vld [vmem:[#allocation8 + $0x20] sm:$0xff]
    %v389 = vld [vmem:[#allocation8 + $0x28] sm:$0xff]
    %v390 = vld [vmem:[#allocation8 + $0x30] sm:$0xff]
    %v391 = vld [vmem:[#allocation8 + $0x38] sm:$0xff]
    %v392 = vld [vmem:[#allocation8 + $0x40] sm:$0xff]
    %v393 = vld [vmem:[#allocation8 + $0x48] sm:$0xff]
    %v394 = vld [vmem:[#allocation8 + $0x50] sm:$0xff]
    %v395 = vld [vmem:[#allocation8 + $0x58] sm:$0xff]
    %v396 = vld [vmem:[#allocation8 + $0x60] sm:$0xff]
    %v397 = vld [vmem:[#allocation8 + $0x68] sm:$0xff]
    %v398 = vld [vmem:[#allocation8 + $0x70] sm:$0xff]
    %v399 = vld [vmem:[#allocation8 + $0x78] sm:$0xff]
    %v400 = vld [vmem:[#allocation8 + $0x80] sm:$0xff]
    %v401 = vld [vmem:[#allocation8 + $0x88] sm:$0xff]
    %v402 = vld [vmem:[#allocation8 + $0x90] sm:$0xff]
    %v403 = vld [vmem:[#allocation8 + $0x98] sm:$0xff]
    %v404 = vld [vmem:[#allocation8 + $0xa0] sm:$0xff]
    %v405 = vld [vmem:[#allocation8 + $0xa8] sm:$0xff]
    %v406 = vld [vmem:[#allocation8 + $0xb0] sm:$0xff]
    %v407 = vld [vmem:[#allocation8 + $0xb8] sm:$0xff]
    %v408 = vld [vmem:[#allocation8 + $0xc0] sm:$0xff]
    %v409 = vld [vmem:[#allocation8 + $0xc8] sm:$0xff]
    %v410 = vld [vmem:[#allocation8 + $0xd0] sm:$0xff]
    %v411 = vld [vmem:[#allocation8 + $0xd8] sm:$0xff]
    %v412 = vld [vmem:[#allocation8 + $0xe0] sm:$0xff]
    %v413 = vld [vmem:[#allocation8 + $0xe8] sm:$0xff]
    %v414 = vld [vmem:[#allocation8 + $0xf0] sm:$0xff]
    %v415 = vld [vmem:[#allocation8 + $0xf8] sm:$0xff]
    %v416 = vld [vmem:[#allocation8 + $0x100] sm:$0xff]
    %v417 = vld [vmem:[#allocation8 + $0x108] sm:$0xff]
    %v418 = vld [vmem:[#allocation8 + $0x110] sm:$0xff]
    %v419 = vld [vmem:[#allocation8 + $0x118] sm:$0xff]
    %v420 = vld [vmem:[#allocation8 + $0x120] sm:$0xff]
    %v421 = vld [vmem:[#allocation8 + $0x128] sm:$0xff]
    %v422 = vld [vmem:[#allocation8 + $0x130] sm:$0xff]
    %v423 = vld [vmem:[#allocation8 + $0x138] sm:$0xff]
    %v424 = vld [vmem:[#allocation8 + $0x140] sm:$0xff]
    %v425 = vld [vmem:[#allocation8 + $0x148] sm:$0xff]
    %v426 = vld [vmem:[#allocation8 + $0x150] sm:$0xff]
    %v427 = vld [vmem:[#allocation8 + $0x158] sm:$0xff]
    %v428 = vld [vmem:[#allocation8 + $0x160] sm:$0xff]
    %v429 = vld [vmem:[#allocation8 + $0x168] sm:$0xff]
    %v430 = vld [vmem:[#allocation8 + $0x170] sm:$0xff]
    %v431 = vld [vmem:[#allocation8 + $0x178] sm:$0xff]
    %v432 = vld [vmem:[#allocation8 + $0x180] sm:$0xff]
    %v433 = vld [vmem:[#allocation8 + $0x188] sm:$0xff]
    %v434 = vld [vmem:[#allocation8 + $0x190] sm:$0xff]
    %v435 = vld [vmem:[#allocation8 + $0x198] sm:$0xff]
    %v436 = vld [vmem:[#allocation8 + $0x1a0] sm:$0xff]
    %v437 = vld [vmem:[#allocation8 + $0x1a8] sm:$0xff]
    %v438 = vld [vmem:[#allocation8 + $0x1b0] sm:$0xff]
    %v439 = vld [vmem:[#allocation8 + $0x1b8] sm:$0xff]
    %v440 = vld [vmem:[#allocation8 + $0x1c0] sm:$0xff]
    %v441 = vld [vmem:[#allocation8 + $0x1c8] sm:$0xff]
    %v442 = vld [vmem:[#allocation8 + $0x1d0] sm:$0xff]
    %v443 = vld [vmem:[#allocation8 + $0x1d8] sm:$0xff]
    %v444 = vld [vmem:[#allocation8 + $0x1e0] sm:$0xff]
    %v445 = vld [vmem:[#allocation8 + $0x1e8] sm:$0xff]
    %v446 = vld [vmem:[#allocation8 + $0x1f0] sm:$0xff]
    %v447 = vld [vmem:[#allocation8 + $0x1f8] sm:$0xff]
    %v448 = vld [vmem:[#allocation8 + $0x200] sm:$0xff]
    %v449 = vld [vmem:[#allocation8 + $0x208] sm:$0xff]
    %v450 = vld [vmem:[#allocation8 + $0x210] sm:$0xff]
    %v451 = vld [vmem:[#allocation8 + $0x218] sm:$0xff]
    %v452 = vld [vmem:[#allocation8 + $0x220] sm:$0xff]
    %v453 = vld [vmem:[#allocation8 + $0x228] sm:$0xff]
    %v454 = vld [vmem:[#allocation8 + $0x230] sm:$0xff]
    %v455 = vld [vmem:[#allocation8 + $0x238] sm:$0xff]
    %v456 = vld [vmem:[#allocation8 + $0x240] sm:$0xff]
    %v457 = vld [vmem:[#allocation8 + $0x248] sm:$0xff]
    %v458 = vld [vmem:[#allocation8 + $0x250] sm:$0xff]
    %v459 = vld [vmem:[#allocation8 + $0x258] sm:$0xff]
    %v460 = vld [vmem:[#allocation8 + $0x260] sm:$0xff]
    %v461 = vld [vmem:[#allocation8 + $0x268] sm:$0xff]
    %v462 = vld [vmem:[#allocation8 + $0x270] sm:$0xff]
    %v463 = vld [vmem:[#allocation8 + $0x278] sm:$0xff]
    %v464 = vld [vmem:[#allocation8 + $0x280] sm:$0xff]
    %v465 = vld [vmem:[#allocation8 + $0x288] sm:$0xff]
    %v466 = vld [vmem:[#allocation8 + $0x290] sm:$0xff]
    %v467 = vld [vmem:[#allocation8 + $0x298] sm:$0xff]
    %v468 = vld [vmem:[#allocation8 + $0x2a0] sm:$0xff]
    %v469 = vld [vmem:[#allocation8 + $0x2a8] sm:$0xff]
    %v470 = vld [vmem:[#allocation8 + $0x2b0] sm:$0xff]
    %v471 = vld [vmem:[#allocation8 + $0x2b8] sm:$0xff]
    %v472 = vld [vmem:[#allocation8 + $0x2c0] sm:$0xff]
    %v473 = vld [vmem:[#allocation8 + $0x2c8] sm:$0xff]
    %v474 = vld [vmem:[#allocation8 + $0x2d0] sm:$0xff]
    %v475 = vld [vmem:[#allocation8 + $0x2d8] sm:$0xff]
    %v476 = vld [vmem:[#allocation8 + $0x2e0] sm:$0xff]
    %v477 = vld [vmem:[#allocation8 + $0x2e8] sm:$0xff]
    %v478 = vld [vmem:[#allocation8 + $0x2f0] sm:$0xff]
    %v479 = vld [vmem:[#allocation8 + $0x2f8] sm:$0xff]
    %v480 = vld [vmem:[#allocation8 + $0x300] sm:$0xff]
    %v481 = vld [vmem:[#allocation8 + $0x308] sm:$0xff]
    %v482 = vld [vmem:[#allocation8 + $0x310] sm:$0xff]
    %v483 = vld [vmem:[#allocation8 + $0x318] sm:$0xff]
    %v484 = vld [vmem:[#allocation8 + $0x320] sm:$0xff]
    %v485 = vld [vmem:[#allocation8 + $0x328] sm:$0xff]
    %v486 = vld [vmem:[#allocation8 + $0x330] sm:$0xff]
    %v487 = vld [vmem:[#allocation8 + $0x338] sm:$0xff]
    %v488 = vld [vmem:[#allocation8 + $0x340] sm:$0xff]
    %v489 = vld [vmem:[#allocation8 + $0x348] sm:$0xff]
    %v490 = vld [vmem:[#allocation8 + $0x350] sm:$0xff]
    %v491 = vld [vmem:[#allocation8 + $0x358] sm:$0xff]
    %v492 = vld [vmem:[#allocation8 + $0x360] sm:$0xff]
    %v493 = vld [vmem:[#allocation8 + $0x368] sm:$0xff]
    %v494 = vld [vmem:[#allocation8 + $0x370] sm:$0xff]
    %v495 = vld [vmem:[#allocation8 + $0x378] sm:$0xff]
    %v496 = vld [vmem:[#allocation8 + $0x380] sm:$0xff]
    %v497 = vld [vmem:[#allocation8 + $0x388] sm:$0xff]
    %v498 = vld [vmem:[#allocation8 + $0x390] sm:$0xff]
    %v499 = vld [vmem:[#allocation8 + $0x398] sm:$0xff]
    %v500 = vld [vmem:[#allocation8 + $0x3a0] sm:$0xff]
    %v501 = vld [vmem:[#allocation8 + $0x3a8] sm:$0xff]
    %v502 = vld [vmem:[#allocation8 + $0x3b0] sm:$0xff]
    %v503 = vld [vmem:[#allocation8 + $0x3b8] sm:$0xff]
    %v504 = vld [vmem:[#allocation8 + $0x3c0] sm:$0xff]
    %v505 = vld [vmem:[#allocation8 + $0x3c8] sm:$0xff]
    %v506 = vld [vmem:[#allocation8 + $0x3d0] sm:$0xff]
    %v507 = vld [vmem:[#allocation8 + $0x3d8] sm:$0xff]
    %v508 = vld [vmem:[#allocation8 + $0x3e0] sm:$0xff]
    %v509 = vld [vmem:[#allocation8 + $0x3e8] sm:$0xff]
    %v510 = vld [vmem:[#allocation8 + $0x3f0] sm:$0xff]
    %v511 = vld [vmem:[#allocation8 + $0x3f8] sm:$0xff]
    %v512 = vld [vmem:[#allocation8 + $0x400] sm:$0xff]
    %v513 = vld [vmem:[#allocation8 + $0x408] sm:$0xff]
    %v514 = vld [vmem:[#allocation8 + $0x410] sm:$0xff]
    %v515 = vld [vmem:[#allocation8 + $0x418] sm:$0xff]
    %v516 = vld [vmem:[#allocation8 + $0x420] sm:$0xff]
    %v517 = vld [vmem:[#allocation8 + $0x428] sm:$0xff]
    %v518 = vld [vmem:[#allocation8 + $0x430] sm:$0xff]
    %v519 = vld [vmem:[#allocation8 + $0x438] sm:$0xff]
    %v520 = vld [vmem:[#allocation8 + $0x440] sm:$0xff]
    %v521 = vld [vmem:[#allocation8 + $0x448] sm:$0xff]
    %v522 = vld [vmem:[#allocation8 + $0x450] sm:$0xff]
    %v523 = vld [vmem:[#allocation8 + $0x458] sm:$0xff]
    %v524 = vld [vmem:[#allocation8 + $0x460] sm:$0xff]
    %v525 = vld [vmem:[#allocation8 + $0x468] sm:$0xff]
    %v526 = vld [vmem:[#allocation8 + $0x470] sm:$0xff]
    %v527 = vld [vmem:[#allocation8 + $0x478] sm:$0xff]
    %v528 = vld [vmem:[#allocation8 + $0x480] sm:$0xff]
    %v529 = vld [vmem:[#allocation8 + $0x488] sm:$0xff]
    %v530 = vld [vmem:[#allocation8 + $0x490] sm:$0xff]
    %v531 = vld [vmem:[#allocation8 + $0x498] sm:$0xff]
    %v532 = vld [vmem:[#allocation8 + $0x4a0] sm:$0xff]
    %v533 = vld [vmem:[#allocation8 + $0x4a8] sm:$0xff]
    %v534 = vld [vmem:[#allocation8 + $0x4b0] sm:$0xff]
    %v535 = vld [vmem:[#allocation8 + $0x4b8] sm:$0xff]
    %v536 = vld [vmem:[#allocation8 + $0x4c0] sm:$0xff]
    %v537 = vld [vmem:[#allocation8 + $0x4c8] sm:$0xff]
    %v538 = vld [vmem:[#allocation8 + $0x4d0] sm:$0xff]
    %v539 = vld [vmem:[#allocation8 + $0x4d8] sm:$0xff]
    %v540 = vld [vmem:[#allocation8 + $0x4e0] sm:$0xff]
    %v541 = vld [vmem:[#allocation8 + $0x4e8] sm:$0xff]
    %v542 = vld [vmem:[#allocation8 + $0x4f0] sm:$0xff]
    %v543 = vld [vmem:[#allocation8 + $0x4f8] sm:$0xff]
    %v544 = vld [vmem:[#allocation8 + $0x500] sm:$0xff]
    %v545 = vld [vmem:[#allocation8 + $0x508] sm:$0xff]
    %v546 = vld [vmem:[#allocation8 + $0x510] sm:$0xff]
    %v547 = vld [vmem:[#allocation8 + $0x518] sm:$0xff]
    %v548 = vld [vmem:[#allocation8 + $0x520] sm:$0xff]
    %v549 = vld [vmem:[#allocation8 + $0x528] sm:$0xff]
    %v550 = vld [vmem:[#allocation8 + $0x530] sm:$0xff]
    %v551 = vld [vmem:[#allocation8 + $0x538] sm:$0xff]
    %v552 = vld [vmem:[#allocation8 + $0x540] sm:$0xff]
    %v553 = vld [vmem:[#allocation8 + $0x548] sm:$0xff]
    %v554 = vld [vmem:[#allocation8 + $0x550] sm:$0xff]
    %v555 = vld [vmem:[#allocation8 + $0x558] sm:$0xff]
    %v556 = vld [vmem:[#allocation8 + $0x560] sm:$0xff]
    %v557 = vld [vmem:[#allocation8 + $0x568] sm:$0xff]
    %v558 = vld [vmem:[#allocation8 + $0x570] sm:$0xff]
    %v559 = vld [vmem:[#allocation8 + $0x578] sm:$0xff]
    %v560 = vld [vmem:[#allocation8 + $0x580] sm:$0xff]
    %v561 = vld [vmem:[#allocation8 + $0x588] sm:$0xff]
    %v562 = vld [vmem:[#allocation8 + $0x590] sm:$0xff]
    %v563 = vld [vmem:[#allocation8 + $0x598] sm:$0xff]
    %v564 = vld [vmem:[#allocation8 + $0x5a0] sm:$0xff]
    %v565 = vld [vmem:[#allocation8 + $0x5a8] sm:$0xff]
    %v566 = vld [vmem:[#allocation8 + $0x5b0] sm:$0xff]
    %v567 = vld [vmem:[#allocation8 + $0x5b8] sm:$0xff]
    %v568 = vld [vmem:[#allocation8 + $0x5c0] sm:$0xff]
    %v569 = vld [vmem:[#allocation8 + $0x5c8] sm:$0xff]
    %v570 = vld [vmem:[#allocation8 + $0x5d0] sm:$0xff]
    %v571 = vld [vmem:[#allocation8 + $0x5d8] sm:$0xff]
    %v572 = vld [vmem:[#allocation8 + $0x5e0] sm:$0xff]
    %v573 = vld [vmem:[#allocation8 + $0x5e8] sm:$0xff]
    %v574 = vld [vmem:[#allocation8 + $0x5f0] sm:$0xff]
    %v575 = vld [vmem:[#allocation8 + $0x5f8] sm:$0xff]
    %v576 = vld [vmem:[#allocation8 + $0x600] sm:$0xff]
    %v577 = vld [vmem:[#allocation8 + $0x608] sm:$0xff]
    %v578 = vld [vmem:[#allocation8 + $0x610] sm:$0xff]
    %v579 = vld [vmem:[#allocation8 + $0x618] sm:$0xff]
    %v580 = vld [vmem:[#allocation8 + $0x620] sm:$0xff]
    %v581 = vld [vmem:[#allocation8 + $0x628] sm:$0xff]
    %v582 = vld [vmem:[#allocation8 + $0x630] sm:$0xff]
    %v583 = vld [vmem:[#allocation8 + $0x638] sm:$0xff]
    %v584 = vld [vmem:[#allocation8 + $0x640] sm:$0xff]
    %v585 = vld [vmem:[#allocation8 + $0x648] sm:$0xff]
    %v586 = vld [vmem:[#allocation8 + $0x650] sm:$0xff]
    %v587 = vld [vmem:[#allocation8 + $0x658] sm:$0xff]
    %v588 = vld [vmem:[#allocation8 + $0x660] sm:$0xff]
    %v589 = vld [vmem:[#allocation8 + $0x668] sm:$0xff]
    %v590 = vld [vmem:[#allocation8 + $0x670] sm:$0xff]
    %v591 = vld [vmem:[#allocation8 + $0x678] sm:$0xff]
    %v592 = vld [vmem:[#allocation8 + $0x680] sm:$0xff]
    %v593 = vld [vmem:[#allocation8 + $0x688] sm:$0xff]
    %v594 = vld [vmem:[#allocation8 + $0x690] sm:$0xff]
    %v595 = vld [vmem:[#allocation8 + $0x698] sm:$0xff]
    %v596 = vld [vmem:[#allocation8 + $0x6a0] sm:$0xff]
    %v597 = vld [vmem:[#allocation8 + $0x6a8] sm:$0xff]
    %v598 = vld [vmem:[#allocation8 + $0x6b0] sm:$0xff]
    %v599 = vld [vmem:[#allocation8 + $0x6b8] sm:$0xff]
    %v600 = vld [vmem:[#allocation8 + $0x6c0] sm:$0xff]
    %v601 = vld [vmem:[#allocation8 + $0x6c8] sm:$0xff]
    %v602 = vld [vmem:[#allocation8 + $0x6d0] sm:$0xff]
    %v603 = vld [vmem:[#allocation8 + $0x6d8] sm:$0xff]
    %v604 = vld [vmem:[#allocation8 + $0x6e0] sm:$0xff]
    %v605 = vld [vmem:[#allocation8 + $0x6e8] sm:$0xff]
    %v606 = vld [vmem:[#allocation8 + $0x6f0] sm:$0xff]
    %v607 = vld [vmem:[#allocation8 + $0x6f8] sm:$0xff]
    %v608 = vld [vmem:[#allocation8 + $0x700] sm:$0xff]
    %v609 = vld [vmem:[#allocation8 + $0x708] sm:$0xff]
    %v610 = vld [vmem:[#allocation8 + $0x710] sm:$0xff]
    %v611 = vld [vmem:[#allocation8 + $0x718] sm:$0xff]
    %v612 = vld [vmem:[#allocation8 + $0x720] sm:$0xff]
    %v613 = vld [vmem:[#allocation8 + $0x728] sm:$0xff]
    %v614 = vld [vmem:[#allocation8 + $0x730] sm:$0xff]
    %v615 = vld [vmem:[#allocation8 + $0x738] sm:$0xff]
    %v616 = vld [vmem:[#allocation8 + $0x740] sm:$0xff]
    %v617 = vld [vmem:[#allocation8 + $0x748] sm:$0xff]
    %v618 = vld [vmem:[#allocation8 + $0x750] sm:$0xff]
    %v619 = vld [vmem:[#allocation8 + $0x758] sm:$0xff]
    %v620 = vld [vmem:[#allocation8 + $0x760] sm:$0xff]
    %v621 = vld [vmem:[#allocation8 + $0x768] sm:$0xff]
    %v622 = vld [vmem:[#allocation8 + $0x770] sm:$0xff]
    %v623 = vld [vmem:[#allocation8 + $0x778] sm:$0xff]
    %v624 = vld [vmem:[#allocation8 + $0x780] sm:$0xff]
    %v625 = vld [vmem:[#allocation8 + $0x788] sm:$0xff]
    %v626 = vld [vmem:[#allocation8 + $0x790] sm:$0xff]
    %v627 = vld [vmem:[#allocation8 + $0x798] sm:$0xff]
    %v628 = vld [vmem:[#allocation8 + $0x7a0] sm:$0xff]
    %v629 = vld [vmem:[#allocation8 + $0x7a8] sm:$0xff]
    %v630 = vld [vmem:[#allocation8 + $0x7b0] sm:$0xff]
    %v631 = vld [vmem:[#allocation8 + $0x7b8] sm:$0xff]
    %v632 = vld [vmem:[#allocation8 + $0x7c0] sm:$0xff]
    %v633 = vld [vmem:[#allocation8 + $0x7c8] sm:$0xff]
    %v634 = vld [vmem:[#allocation8 + $0x7d0] sm:$0xff]
    %v635 = vld [vmem:[#allocation8 + $0x7d8] sm:$0xff]
    %v636 = vld [vmem:[#allocation8 + $0x7e0] sm:$0xff]
    %v637 = vld [vmem:[#allocation8 + $0x7e8] sm:$0xff]
    %v638 = vld [vmem:[#allocation8 + $0x7f0] sm:$0xff]
    %v639 = vld [vmem:[#allocation8 + $0x7f8] sm:$0xff]
    %v640 = vld [vmem:[#allocation8 + $0x800] sm:$0xff]
    %v641 = vld [vmem:[#allocation8 + $0x808] sm:$0xff]
    %v642 = vld [vmem:[#allocation8 + $0x810] sm:$0xff]
    %v643 = vld [vmem:[#allocation8 + $0x818] sm:$0xff]
    %v644 = vld [vmem:[#allocation8 + $0x820] sm:$0xff]
    %v645 = vld [vmem:[#allocation8 + $0x828] sm:$0xff]
    %v646 = vld [vmem:[#allocation8 + $0x830] sm:$0xff]
    %v647 = vld [vmem:[#allocation8 + $0x838] sm:$0xff]
    %v648 = vld [vmem:[#allocation8 + $0x840] sm:$0xff]
    %v649 = vld [vmem:[#allocation8 + $0x848] sm:$0xff]
    %v650 = vld [vmem:[#allocation8 + $0x850] sm:$0xff]
    %v651 = vld [vmem:[#allocation8 + $0x858] sm:$0xff]
    %v652 = vld [vmem:[#allocation8 + $0x860] sm:$0xff]
    %v653 = vld [vmem:[#allocation8 + $0x868] sm:$0xff]
    %v654 = vld [vmem:[#allocation8 + $0x870] sm:$0xff]
    %v655 = vld [vmem:[#allocation8 + $0x878] sm:$0xff]
    %v656 = vld [vmem:[#allocation8 + $0x880] sm:$0xff]
    %v657 = vld [vmem:[#allocation8 + $0x888] sm:$0xff]
    %v658 = vld [vmem:[#allocation8 + $0x890] sm:$0xff]
    %v659 = vld [vmem:[#allocation8 + $0x898] sm:$0xff]
    %v660 = vld [vmem:[#allocation8 + $0x8a0] sm:$0xff]
    %v661 = vld [vmem:[#allocation8 + $0x8a8] sm:$0xff]
    %v662 = vld [vmem:[#allocation8 + $0x8b0] sm:$0xff]
    %v663 = vld [vmem:[#allocation8 + $0x8b8] sm:$0xff]
    %v664 = vld [vmem:[#allocation8 + $0x8c0] sm:$0xff]
    %v665 = vld [vmem:[#allocation8 + $0x8c8] sm:$0xff]
    %v666 = vld [vmem:[#allocation8 + $0x8d0] sm:$0xff]
    %v667 = vld [vmem:[#allocation8 + $0x8d8] sm:$0xff]
    %v668 = vld [vmem:[#allocation8 + $0x8e0] sm:$0xff]
    %v669 = vld [vmem:[#allocation8 + $0x8e8] sm:$0xff]
    %v670 = vld [vmem:[#allocation8 + $0x8f0] sm:$0xff]
    %v671 = vld [vmem:[#allocation8 + $0x8f8] sm:$0xff]
    %v672 = vld [vmem:[#allocation8 + $0x900] sm:$0xff]
    %v673 = vld [vmem:[#allocation8 + $0x908] sm:$0xff]
    %v674 = vld [vmem:[#allocation8 + $0x910] sm:$0xff]
    %v675 = vld [vmem:[#allocation8 + $0x918] sm:$0xff]
    %v676 = vld [vmem:[#allocation8 + $0x920] sm:$0xff]
    %v677 = vld [vmem:[#allocation8 + $0x928] sm:$0xff]
    %v678 = vld [vmem:[#allocation8 + $0x930] sm:$0xff]
    %v679 = vld [vmem:[#allocation8 + $0x938] sm:$0xff]
    %v680 = vld [vmem:[#allocation8 + $0x940] sm:$0xff]
    %v681 = vld [vmem:[#allocation8 + $0x948] sm:$0xff]
    %v682 = vld [vmem:[#allocation8 + $0x950] sm:$0xff]
    %v683 = vld [vmem:[#allocation8 + $0x958] sm:$0xff]
    %v684 = vld [vmem:[#allocation8 + $0x960] sm:$0xff]
    %v685 = vld [vmem:[#allocation8 + $0x968] sm:$0xff]
    %v686 = vld [vmem:[#allocation8 + $0x970] sm:$0xff]
    %v687 = vld [vmem:[#allocation8 + $0x978] sm:$0xff]
    %v688 = vld [vmem:[#allocation8 + $0x980] sm:$0xff]
    %v689 = vld [vmem:[#allocation8 + $0x988] sm:$0xff]
    %v690 = vld [vmem:[#allocation8 + $0x990] sm:$0xff]
    %v691 = vld [vmem:[#allocation8 + $0x998] sm:$0xff]
    %v692 = vld [vmem:[#allocation8 + $0x9a0] sm:$0xff]
    %v693 = vld [vmem:[#allocation8 + $0x9a8] sm:$0xff]
    %v694 = vld [vmem:[#allocation8 + $0x9b0] sm:$0xff]
    %v695 = vld [vmem:[#allocation8 + $0x9b8] sm:$0xff]
    %v696 = vld [vmem:[#allocation8 + $0x9c0] sm:$0xff]
    %v697 = vld [vmem:[#allocation8 + $0x9c8] sm:$0xff]
    %v698 = vld [vmem:[#allocation8 + $0x9d0] sm:$0xff]
    %v699 = vld [vmem:[#allocation8 + $0x9d8] sm:$0xff]
    %v700 = vld [vmem:[#allocation8 + $0x9e0] sm:$0xff]
    %v701 = vld [vmem:[#allocation8 + $0x9e8] sm:$0xff]
    %v702 = vld [vmem:[#allocation8 + $0x9f0] sm:$0xff]
    %v703 = vld [vmem:[#allocation8 + $0x9f8] sm:$0xff]
    %v704 = vld [vmem:[#allocation8 + $0xa00] sm:$0xff]
    %v705 = vld [vmem:[#allocation8 + $0xa08] sm:$0xff]
    %v706 = vld [vmem:[#allocation8 + $0xa10] sm:$0xff]
    %v707 = vld [vmem:[#allocation8 + $0xa18] sm:$0xff]
    %v708 = vld [vmem:[#allocation8 + $0xa20] sm:$0xff]
    %v709 = vld [vmem:[#allocation8 + $0xa28] sm:$0xff]
    %v710 = vld [vmem:[#allocation8 + $0xa30] sm:$0xff]
    %v711 = vld [vmem:[#allocation8 + $0xa38] sm:$0xff]
    %v712 = vld [vmem:[#allocation8 + $0xa40] sm:$0xff]
    %v713 = vld [vmem:[#allocation8 + $0xa48] sm:$0xff]
    %v714 = vld [vmem:[#allocation8 + $0xa50] sm:$0xff]
    %v715 = vld [vmem:[#allocation8 + $0xa58] sm:$0xff]
    %v716 = vld [vmem:[#allocation8 + $0xa60] sm:$0xff]
    %v717 = vld [vmem:[#allocation8 + $0xa68] sm:$0xff]
    %v718 = vld [vmem:[#allocation8 + $0xa70] sm:$0xff]
    %v719 = vld [vmem:[#allocation8 + $0xa78] sm:$0xff]
    %v720 = vld [vmem:[#allocation8 + $0xa80] sm:$0xff]
    %v721 = vld [vmem:[#allocation8 + $0xa88] sm:$0xff]
    %v722 = vld [vmem:[#allocation8 + $0xa90] sm:$0xff]
    %v723 = vld [vmem:[#allocation8 + $0xa98] sm:$0xff]
    %v724 = vld [vmem:[#allocation8 + $0xaa0] sm:$0xff]
    %v725 = vld [vmem:[#allocation8 + $0xaa8] sm:$0xff]
    %v726 = vld [vmem:[#allocation8 + $0xab0] sm:$0xff]
    %v727 = vld [vmem:[#allocation8 + $0xab8] sm:$0xff]
    %v728 = vld [vmem:[#allocation8 + $0xac0] sm:$0xff]
    %v729 = vld [vmem:[#allocation8 + $0xac8] sm:$0xff]
    %v730 = vld [vmem:[#allocation8 + $0xad0] sm:$0xff]
    %v731 = vld [vmem:[#allocation8 + $0xad8] sm:$0xff]
    %v732 = vld [vmem:[#allocation8 + $0xae0] sm:$0xff]
    %v733 = vld [vmem:[#allocation8 + $0xae8] sm:$0xff]
    %v734 = vld [vmem:[#allocation8 + $0xaf0] sm:$0xff]
    %v735 = vld [vmem:[#allocation8 + $0xaf8] sm:$0xff]
    %v736 = vld [vmem:[#allocation8 + $0xb00] sm:$0xff]
    %v737 = vld [vmem:[#allocation8 + $0xb08] sm:$0xff]
    %v738 = vld [vmem:[#allocation8 + $0xb10] sm:$0xff]
    %v739 = vld [vmem:[#allocation8 + $0xb18] sm:$0xff]
    %v740 = vld [vmem:[#allocation8 + $0xb20] sm:$0xff]
    %v741 = vld [vmem:[#allocation8 + $0xb28] sm:$0xff]
    %v742 = vld [vmem:[#allocation8 + $0xb30] sm:$0xff]
    %v743 = vld [vmem:[#allocation8 + $0xb38] sm:$0xff]
    %v744 = vld [vmem:[#allocation8 + $0xb40] sm:$0xff]
    %v745 = vld [vmem:[#allocation8 + $0xb48] sm:$0xff]
    %v746 = vld [vmem:[#allocation8 + $0xb50] sm:$0xff]
    %v747 = vld [vmem:[#allocation8 + $0xb58] sm:$0xff]
    %v748 = vld [vmem:[#allocation8 + $0xb60] sm:$0xff]
    %v749 = vld [vmem:[#allocation8 + $0xb68] sm:$0xff]
    %v750 = vld [vmem:[#allocation8 + $0xb70] sm:$0xff]
    %v751 = vld [vmem:[#allocation8 + $0xb78] sm:$0xff]
    %v752 = vld [vmem:[#allocation8 + $0xb80] sm:$0xff]
    %v753 = vld [vmem:[#allocation8 + $0xb88] sm:$0xff]
    %v754 = vld [vmem:[#allocation8 + $0xb90] sm:$0xff]
    %v755 = vld [vmem:[#allocation8 + $0xb98] sm:$0xff]
    %v756 = vld [vmem:[#allocation8 + $0xba0] sm:$0xff]
    %v757 = vld [vmem:[#allocation8 + $0xba8] sm:$0xff]
    %v758 = vld [vmem:[#allocation8 + $0xbb0] sm:$0xff]
    %v759 = vld [vmem:[#allocation8 + $0xbb8] sm:$0xff]
    %v760 = vld [vmem:[#allocation8 + $0xbc0] sm:$0xff]
    %v761 = vld [vmem:[#allocation8 + $0xbc8] sm:$0xff]
    %v762 = vld [vmem:[#allocation8 + $0xbd0] sm:$0xff]
    %v763 = vld [vmem:[#allocation8 + $0xbd8] sm:$0xff]
    %v764 = vld [vmem:[#allocation8 + $0xbe0] sm:$0xff]
    %v765 = vld [vmem:[#allocation8 + $0xbe8] sm:$0xff]
    %v766 = vld [vmem:[#allocation8 + $0xbf0] sm:$0xff]
    %v767 = vld [vmem:[#allocation8 + $0xbf8] sm:$0xff]
    %v768 = vld [vmem:[#allocation8 + $0xc00] sm:$0xff]
    %v769 = vld [vmem:[#allocation8 + $0xc08] sm:$0xff]
    %v770 = vld [vmem:[#allocation8 + $0xc10] sm:$0xff]
    %v771 = vld [vmem:[#allocation8 + $0xc18] sm:$0xff]
    %v772 = vld [vmem:[#allocation8 + $0xc20] sm:$0xff]
    %v773 = vld [vmem:[#allocation8 + $0xc28] sm:$0xff]
    %v774 = vld [vmem:[#allocation8 + $0xc30] sm:$0xff]
    %v775 = vld [vmem:[#allocation8 + $0xc38] sm:$0xff]
    %v776 = vld [vmem:[#allocation8 + $0xc40] sm:$0xff]
    %v777 = vld [vmem:[#allocation8 + $0xc48] sm:$0xff]
    %v778 = vld [vmem:[#allocation8 + $0xc50] sm:$0xff]
    %v779 = vld [vmem:[#allocation8 + $0xc58] sm:$0xff]
    %v780 = vld [vmem:[#allocation8 + $0xc60] sm:$0xff]
    %v781 = vld [vmem:[#allocation8 + $0xc68] sm:$0xff]
    %v782 = vld [vmem:[#allocation8 + $0xc70] sm:$0xff]
    %v783 = vld [vmem:[#allocation8 + $0xc78] sm:$0xff]
    %v784 = vld [vmem:[#allocation8 + $0xc80] sm:$0xff]
    %v785 = vld [vmem:[#allocation8 + $0xc88] sm:$0xff]
    %v786 = vld [vmem:[#allocation8 + $0xc90] sm:$0xff]
    %v787 = vld [vmem:[#allocation8 + $0xc98] sm:$0xff]
    %v788 = vld [vmem:[#allocation8 + $0xca0] sm:$0xff]
    %v789 = vld [vmem:[#allocation8 + $0xca8] sm:$0xff]
    %v790 = vld [vmem:[#allocation8 + $0xcb0] sm:$0xff]
    %v791 = vld [vmem:[#allocation8 + $0xcb8] sm:$0xff]
    %v792 = vld [vmem:[#allocation8 + $0xcc0] sm:$0xff]
    %v793 = vld [vmem:[#allocation8 + $0xcc8] sm:$0xff]
    %v794 = vld [vmem:[#allocation8 + $0xcd0] sm:$0xff]
    %v795 = vld [vmem:[#allocation8 + $0xcd8] sm:$0xff]
    %v796 = vld [vmem:[#allocation8 + $0xce0] sm:$0xff]
    %v797 = vld [vmem:[#allocation8 + $0xce8] sm:$0xff]
    %v798 = vld [vmem:[#allocation8 + $0xcf0] sm:$0xff]
    %v799 = vld [vmem:[#allocation8 + $0xcf8] sm:$0xff]
    %v800 = vld [vmem:[#allocation8 + $0xd00] sm:$0xff]
    %v801 = vld [vmem:[#allocation8 + $0xd08] sm:$0xff]
    %v802 = vld [vmem:[#allocation8 + $0xd10] sm:$0xff]
    %v803 = vld [vmem:[#allocation8 + $0xd18] sm:$0xff]
    %v804 = vld [vmem:[#allocation8 + $0xd20] sm:$0xff]
    %v805 = vld [vmem:[#allocation8 + $0xd28] sm:$0xff]
    %v806 = vld [vmem:[#allocation8 + $0xd30] sm:$0xff]
    %v807 = vld [vmem:[#allocation8 + $0xd38] sm:$0xff]
    %v808 = vld [vmem:[#allocation8 + $0xd40] sm:$0xff]
    %v809 = vld [vmem:[#allocation8 + $0xd48] sm:$0xff]
    %v810 = vld [vmem:[#allocation8 + $0xd50] sm:$0xff]
    %v811 = vld [vmem:[#allocation8 + $0xd58] sm:$0xff]
    %v812 = vld [vmem:[#allocation8 + $0xd60] sm:$0xff]
    %v813 = vld [vmem:[#allocation8 + $0xd68] sm:$0xff]
    %v814 = vld [vmem:[#allocation8 + $0xd70] sm:$0xff]
    %v815 = vld [vmem:[#allocation8 + $0xd78] sm:$0xff]
    %v816 = vld [vmem:[#allocation8 + $0xd80] sm:$0xff]
    %v817 = vld [vmem:[#allocation8 + $0xd88] sm:$0xff]
    %v818 = vld [vmem:[#allocation8 + $0xd90] sm:$0xff]
    %v819 = vld [vmem:[#allocation8 + $0xd98] sm:$0xff]
    %v820 = vld [vmem:[#allocation8 + $0xda0] sm:$0xff]
    %v821 = vld [vmem:[#allocation8 + $0xda8] sm:$0xff]
    %v822 = vld [vmem:[#allocation8 + $0xdb0] sm:$0xff]
    %v823 = vld [vmem:[#allocation8 + $0xdb8] sm:$0xff]
    %v824 = vld [vmem:[#allocation8 + $0xdc0] sm:$0xff]
    %v825 = vld [vmem:[#allocation8 + $0xdc8] sm:$0xff]
    %v826 = vld [vmem:[#allocation8 + $0xdd0] sm:$0xff]
    %v827 = vld [vmem:[#allocation8 + $0xdd8] sm:$0xff]
    %v828 = vld [vmem:[#allocation8 + $0xde0] sm:$0xff]
    %v829 = vld [vmem:[#allocation8 + $0xde8] sm:$0xff]
    %v830 = vld [vmem:[#allocation8 + $0xdf0] sm:$0xff]
    %v831 = vld [vmem:[#allocation8 + $0xdf8] sm:$0xff]
    %v832 = vld [vmem:[#allocation8 + $0xe00] sm:$0xff]
    %v833 = vld [vmem:[#allocation8 + $0xe08] sm:$0xff]
    %v834 = vld [vmem:[#allocation8 + $0xe10] sm:$0xff]
    %v835 = vld [vmem:[#allocation8 + $0xe18] sm:$0xff]
    %v836 = vld [vmem:[#allocation8 + $0xe20] sm:$0xff]
    %v837 = vld [vmem:[#allocation8 + $0xe28] sm:$0xff]
    %v838 = vld [vmem:[#allocation8 + $0xe30] sm:$0xff]
    %v839 = vld [vmem:[#allocation8 + $0xe38] sm:$0xff]
    %v840 = vld [vmem:[#allocation8 + $0xe40] sm:$0xff]
    %v841 = vld [vmem:[#allocation8 + $0xe48] sm:$0xff]
    %v842 = vld [vmem:[#allocation8 + $0xe50] sm:$0xff]
    %v843 = vld [vmem:[#allocation8 + $0xe58] sm:$0xff]
    %v844 = vld [vmem:[#allocation8 + $0xe60] sm:$0xff]
    %v845 = vld [vmem:[#allocation8 + $0xe68] sm:$0xff]
    %v846 = vld [vmem:[#allocation8 + $0xe70] sm:$0xff]
    %v847 = vld [vmem:[#allocation8 + $0xe78] sm:$0xff]
    %v848 = vld [vmem:[#allocation8 + $0xe80] sm:$0xff]
    %v849 = vld [vmem:[#allocation8 + $0xe88] sm:$0xff]
    %v850 = vld [vmem:[#allocation8 + $0xe90] sm:$0xff]
    %v851 = vld [vmem:[#allocation8 + $0xe98] sm:$0xff]
    %v852 = vld [vmem:[#allocation8 + $0xea0] sm:$0xff]
    %v853 = vld [vmem:[#allocation8 + $0xea8] sm:$0xff]
    %v854 = vld [vmem:[#allocation8 + $0xeb0] sm:$0xff]
    %v855 = vld [vmem:[#allocation8 + $0xeb8] sm:$0xff]
    %v856 = vld [vmem:[#allocation8 + $0xec0] sm:$0xff]
    %v857 = vld [vmem:[#allocation8 + $0xec8] sm:$0xff]
    %v858 = vld [vmem:[#allocation8 + $0xed0] sm:$0xff]
    %v859 = vld [vmem:[#allocation8 + $0xed8] sm:$0xff]
    %v860 = vld [vmem:[#allocation8 + $0xee0] sm:$0xff]
    %v861 = vld [vmem:[#allocation8 + $0xee8] sm:$0xff]
    %v862 = vld [vmem:[#allocation8 + $0xef0] sm:$0xff]
    %v863 = vld [vmem:[#allocation8 + $0xef8] sm:$0xff]
    %v864 = vld [vmem:[#allocation8 + $0xf00] sm:$0xff]
    %v865 = vld [vmem:[#allocation8 + $0xf08] sm:$0xff]
    %v866 = vld [vmem:[#allocation8 + $0xf10] sm:$0xff]
    %v867 = vld [vmem:[#allocation8 + $0xf18] sm:$0xff]
    %v868 = vld [vmem:[#allocation8 + $0xf20] sm:$0xff]
    %v869 = vld [vmem:[#allocation8 + $0xf28] sm:$0xff]
    %v870 = vld [vmem:[#allocation8 + $0xf30] sm:$0xff]
    %v871 = vld [vmem:[#allocation8 + $0xf38] sm:$0xff]
    %v872 = vld [vmem:[#allocation8 + $0xf40] sm:$0xff]
    %v873 = vld [vmem:[#allocation8 + $0xf48] sm:$0xff]
    %v874 = vld [vmem:[#allocation8 + $0xf50] sm:$0xff]
    %v875 = vld [vmem:[#allocation8 + $0xf58] sm:$0xff]
    %v876 = vld [vmem:[#allocation8 + $0xf60] sm:$0xff]
    %v877 = vld [vmem:[#allocation8 + $0xf68] sm:$0xff]
    %v878 = vld [vmem:[#allocation8 + $0xf70] sm:$0xff]
    %v879 = vld [vmem:[#allocation8 + $0xf78] sm:$0xff]
    %v880 = vld [vmem:[#allocation8 + $0xf80] sm:$0xff]
    %v881 = vld [vmem:[#allocation8 + $0xf88] sm:$0xff]
    %v882 = vld [vmem:[#allocation8 + $0xf90] sm:$0xff]
    %v883 = vld [vmem:[#allocation8 + $0xf98] sm:$0xff]
    %v884 = vld [vmem:[#allocation8 + $0xfa0] sm:$0xff]
    %v885 = vld [vmem:[#allocation8 + $0xfa8] sm:$0xff]
    %v886 = vld [vmem:[#allocation8 + $0xfb0] sm:$0xff]
    %v887 = vld [vmem:[#allocation8 + $0xfb8] sm:$0xff]
    %v888 = vld [vmem:[#allocation8 + $0xfc0] sm:$0xff]
    %v889 = vld [vmem:[#allocation8 + $0xfc8] sm:$0xff]
    %v890 = vld [vmem:[#allocation8 + $0xfd0] sm:$0xff]
    %v891 = vld [vmem:[#allocation8 + $0xfd8] sm:$0xff]
    %v892 = vld [vmem:[#allocation8 + $0xfe0] sm:$0xff]
    %v893 = vld [vmem:[#allocation8 + $0xfe8] sm:$0xff]
    %v894 = vld [vmem:[#allocation8 + $0xff0] sm:$0xff]
    %v895 = vld [vmem:[#allocation8 + $0xff8] sm:$0xff]
    %v896 = vld [vmem:[#allocation10] sm:$0xff]
    %v898 = vperm.slane %v896, 0
    %v899 = vperm.slane %v896, 1
    %v900 = vperm.slane %v896, 2
    %v901 = vperm.slane %v896, 3
    %v902 = vperm.slane %v896, 4
    %v903 = vperm.slane %v896, 5
    %v904 = vperm.slane %v896, 6
    %v905 = vperm.slane %v896, 7
    %v1426 = vunpack.c.l.b16 %v384
    %v1427 = vunpack.c.h.b16 %v384
    %v1428 = vunpack.c.l.b16 %v385
    %v1429 = vunpack.c.h.b16 %v385
    %v1430 = vunpack.c.l.b16 %v386
    %v1431 = vunpack.c.h.b16 %v386
    %v1432 = vunpack.c.l.b16 %v387
    %v1433 = vunpack.c.h.b16 %v387
    %v1434 = vunpack.c.l.b16 %v388
    %v1435 = vunpack.c.h.b16 %v388
    %v1436 = vunpack.c.l.b16 %v389
    %v1437 = vunpack.c.h.b16 %v389
    %v1438 = vunpack.c.l.b16 %v390
    %v1439 = vunpack.c.h.b16 %v390
    %v1440 = vunpack.c.l.b16 %v391
    %v1441 = vunpack.c.h.b16 %v391
    %v1442 = vunpack.c.l.b16 %v392
    %v1443 = vunpack.c.h.b16 %v392
    %v1444 = vunpack.c.l.b16 %v393
    %v1445 = vunpack.c.h.b16 %v393
    %v1446 = vunpack.c.l.b16 %v394
    %v1447 = vunpack.c.h.b16 %v394
    %v1448 = vunpack.c.l.b16 %v395
    %v1449 = vunpack.c.h.b16 %v395
    %v1450 = vunpack.c.l.b16 %v396
    %v1451 = vunpack.c.h.b16 %v396
    %v1452 = vunpack.c.l.b16 %v397
    %v1453 = vunpack.c.h.b16 %v397
    %v1454 = vunpack.c.l.b16 %v398
    %v1455 = vunpack.c.h.b16 %v398
    %v1456 = vunpack.c.l.b16 %v399
    %v1457 = vunpack.c.h.b16 %v399
    %v1458 = vunpack.c.l.b16 %v400
    %v1459 = vunpack.c.h.b16 %v400
    %v1460 = vunpack.c.l.b16 %v401
    %v1461 = vunpack.c.h.b16 %v401
    %v1462 = vunpack.c.l.b16 %v402
    %v1463 = vunpack.c.h.b16 %v402
    %v1464 = vunpack.c.l.b16 %v403
    %v1465 = vunpack.c.h.b16 %v403
    %v1466 = vunpack.c.l.b16 %v404
    %v1467 = vunpack.c.h.b16 %v404
    %v1468 = vunpack.c.l.b16 %v405
    %v1469 = vunpack.c.h.b16 %v405
    %v1470 = vunpack.c.l.b16 %v406
    %v1471 = vunpack.c.h.b16 %v406
    %v1472 = vunpack.c.l.b16 %v407
    %v1473 = vunpack.c.h.b16 %v407
    %v1474 = vunpack.c.l.b16 %v408
    %v1475 = vunpack.c.h.b16 %v408
    %v1476 = vunpack.c.l.b16 %v409
    %v1477 = vunpack.c.h.b16 %v409
    %v1478 = vunpack.c.l.b16 %v410
    %v1479 = vunpack.c.h.b16 %v410
    %v1480 = vunpack.c.l.b16 %v411
    %v1481 = vunpack.c.h.b16 %v411
    %v1482 = vunpack.c.l.b16 %v412
    %v1483 = vunpack.c.h.b16 %v412
    %v1484 = vunpack.c.l.b16 %v413
    %v1485 = vunpack.c.h.b16 %v413
    %v1486 = vunpack.c.l.b16 %v414
    %v1487 = vunpack.c.h.b16 %v414
    %v1488 = vunpack.c.l.b16 %v415
    %v1489 = vunpack.c.h.b16 %v415
    %v1490 = vunpack.c.l.b16 %v416
    %v1491 = vunpack.c.h.b16 %v416
    %v1492 = vunpack.c.l.b16 %v417
    %v1493 = vunpack.c.h.b16 %v417
    %v1494 = vunpack.c.l.b16 %v418
    %v1495 = vunpack.c.h.b16 %v418
    %v1496 = vunpack.c.l.b16 %v419
    %v1497 = vunpack.c.h.b16 %v419
    %v1498 = vunpack.c.l.b16 %v420
    %v1499 = vunpack.c.h.b16 %v420
    %v1500 = vunpack.c.l.b16 %v421
    %v1501 = vunpack.c.h.b16 %v421
    %v1502 = vunpack.c.l.b16 %v422
    %v1503 = vunpack.c.h.b16 %v422
    %v1504 = vunpack.c.l.b16 %v423
    %v1505 = vunpack.c.h.b16 %v423
    %v1506 = vunpack.c.l.b16 %v424
    %v1507 = vunpack.c.h.b16 %v424
    %v1508 = vunpack.c.l.b16 %v425
    %v1509 = vunpack.c.h.b16 %v425
    %v1510 = vunpack.c.l.b16 %v426
    %v1511 = vunpack.c.h.b16 %v426
    %v1512 = vunpack.c.l.b16 %v427
    %v1513 = vunpack.c.h.b16 %v427
    %v1514 = vunpack.c.l.b16 %v428
    %v1515 = vunpack.c.h.b16 %v428
    %v1516 = vunpack.c.l.b16 %v429
    %v1517 = vunpack.c.h.b16 %v429
    %v1518 = vunpack.c.l.b16 %v430
    %v1519 = vunpack.c.h.b16 %v430
    %v1520 = vunpack.c.l.b16 %v431
    %v1521 = vunpack.c.h.b16 %v431
    %v1522 = vunpack.c.l.b16 %v432
    %v1523 = vunpack.c.h.b16 %v432
    %v1524 = vunpack.c.l.b16 %v433
    %v1525 = vunpack.c.h.b16 %v433
    %v1526 = vunpack.c.l.b16 %v434
    %v1527 = vunpack.c.h.b16 %v434
    %v1528 = vunpack.c.l.b16 %v435
    %v1529 = vunpack.c.h.b16 %v435
    %v1530 = vunpack.c.l.b16 %v436
    %v1531 = vunpack.c.h.b16 %v436
    %v1532 = vunpack.c.l.b16 %v437
    %v1533 = vunpack.c.h.b16 %v437
    %v1534 = vunpack.c.l.b16 %v438
    %v1535 = vunpack.c.h.b16 %v438
    %v1536 = vunpack.c.l.b16 %v439
    %v1537 = vunpack.c.h.b16 %v439
    %v1538 = vunpack.c.l.b16 %v440
    %v1539 = vunpack.c.h.b16 %v440
    %v1540 = vunpack.c.l.b16 %v441
    %v1541 = vunpack.c.h.b16 %v441
    %v1542 = vunpack.c.l.b16 %v442
    %v1543 = vunpack.c.h.b16 %v442
    %v1544 = vunpack.c.l.b16 %v443
    %v1545 = vunpack.c.h.b16 %v443
    %v1546 = vunpack.c.l.b16 %v444
    %v1547 = vunpack.c.h.b16 %v444
    %v1548 = vunpack.c.l.b16 %v445
    %v1549 = vunpack.c.h.b16 %v445
    %v1550 = vunpack.c.l.b16 %v446
    %v1551 = vunpack.c.h.b16 %v446
    %v1552 = vunpack.c.l.b16 %v447
    %v1553 = vunpack.c.h.b16 %v447
    %v1554 = vunpack.c.l.b16 %v448
    %v1555 = vunpack.c.h.b16 %v448
    %v1556 = vunpack.c.l.b16 %v449
    %v1557 = vunpack.c.h.b16 %v449
    %v1558 = vunpack.c.l.b16 %v450
    %v1559 = vunpack.c.h.b16 %v450
    %v1560 = vunpack.c.l.b16 %v451
    %v1561 = vunpack.c.h.b16 %v451
    %v1562 = vunpack.c.l.b16 %v452
    %v1563 = vunpack.c.h.b16 %v452
    %v1564 = vunpack.c.l.b16 %v453
    %v1565 = vunpack.c.h.b16 %v453
    %v1566 = vunpack.c.l.b16 %v454
    %v1567 = vunpack.c.h.b16 %v454
    %v1568 = vunpack.c.l.b16 %v455
    %v1569 = vunpack.c.h.b16 %v455
    %v1570 = vunpack.c.l.b16 %v456
    %v1571 = vunpack.c.h.b16 %v456
    %v1572 = vunpack.c.l.b16 %v457
    %v1573 = vunpack.c.h.b16 %v457
    %v1574 = vunpack.c.l.b16 %v458
    %v1575 = vunpack.c.h.b16 %v458
    %v1576 = vunpack.c.l.b16 %v459
    %v1577 = vunpack.c.h.b16 %v459
    %v1578 = vunpack.c.l.b16 %v460
    %v1579 = vunpack.c.h.b16 %v460
    %v1580 = vunpack.c.l.b16 %v461
    %v1581 = vunpack.c.h.b16 %v461
    %v1582 = vunpack.c.l.b16 %v462
    %v1583 = vunpack.c.h.b16 %v462
    %v1584 = vunpack.c.l.b16 %v463
    %v1585 = vunpack.c.h.b16 %v463
    %v1586 = vunpack.c.l.b16 %v464
    %v1587 = vunpack.c.h.b16 %v464
    %v1588 = vunpack.c.l.b16 %v465
    %v1589 = vunpack.c.h.b16 %v465
    %v1590 = vunpack.c.l.b16 %v466
    %v1591 = vunpack.c.h.b16 %v466
    %v1592 = vunpack.c.l.b16 %v467
    %v1593 = vunpack.c.h.b16 %v467
    %v1594 = vunpack.c.l.b16 %v468
    %v1595 = vunpack.c.h.b16 %v468
    %v1596 = vunpack.c.l.b16 %v469
    %v1597 = vunpack.c.h.b16 %v469
    %v1598 = vunpack.c.l.b16 %v470
    %v1599 = vunpack.c.h.b16 %v470
    %v1600 = vunpack.c.l.b16 %v471
    %v1601 = vunpack.c.h.b16 %v471
    %v1602 = vunpack.c.l.b16 %v472
    %v1603 = vunpack.c.h.b16 %v472
    %v1604 = vunpack.c.l.b16 %v473
    %v1605 = vunpack.c.h.b16 %v473
    %v1606 = vunpack.c.l.b16 %v474
    %v1607 = vunpack.c.h.b16 %v474
    %v1608 = vunpack.c.l.b16 %v475
    %v1609 = vunpack.c.h.b16 %v475
    %v1610 = vunpack.c.l.b16 %v476
    %v1611 = vunpack.c.h.b16 %v476
    %v1612 = vunpack.c.l.b16 %v477
    %v1613 = vunpack.c.h.b16 %v477
    %v1614 = vunpack.c.l.b16 %v478
    %v1615 = vunpack.c.h.b16 %v478
    %v1616 = vunpack.c.l.b16 %v479
    %v1617 = vunpack.c.h.b16 %v479
    %v1618 = vunpack.c.l.b16 %v480
    %v1619 = vunpack.c.h.b16 %v480
    %v1620 = vunpack.c.l.b16 %v481
    %v1621 = vunpack.c.h.b16 %v481
    %v1622 = vunpack.c.l.b16 %v482
    %v1623 = vunpack.c.h.b16 %v482
    %v1624 = vunpack.c.l.b16 %v483
    %v1625 = vunpack.c.h.b16 %v483
    %v1626 = vunpack.c.l.b16 %v484
    %v1627 = vunpack.c.h.b16 %v484
    %v1628 = vunpack.c.l.b16 %v485
    %v1629 = vunpack.c.h.b16 %v485
    %v1630 = vunpack.c.l.b16 %v486
    %v1631 = vunpack.c.h.b16 %v486
    %v1632 = vunpack.c.l.b16 %v487
    %v1633 = vunpack.c.h.b16 %v487
    %v1634 = vunpack.c.l.b16 %v488
    %v1635 = vunpack.c.h.b16 %v488
    %v1636 = vunpack.c.l.b16 %v489
    %v1637 = vunpack.c.h.b16 %v489
    %v1638 = vunpack.c.l.b16 %v490
    %v1639 = vunpack.c.h.b16 %v490
    %v1640 = vunpack.c.l.b16 %v491
    %v1641 = vunpack.c.h.b16 %v491
    %v1642 = vunpack.c.l.b16 %v492
    %v1643 = vunpack.c.h.b16 %v492
    %v1644 = vunpack.c.l.b16 %v493
    %v1645 = vunpack.c.h.b16 %v493
    %v1646 = vunpack.c.l.b16 %v494
    %v1647 = vunpack.c.h.b16 %v494
    %v1648 = vunpack.c.l.b16 %v495
    %v1649 = vunpack.c.h.b16 %v495
    %v1650 = vunpack.c.l.b16 %v496
    %v1651 = vunpack.c.h.b16 %v496
    %v1652 = vunpack.c.l.b16 %v497
    %v1653 = vunpack.c.h.b16 %v497
    %v1654 = vunpack.c.l.b16 %v498
    %v1655 = vunpack.c.h.b16 %v498
    %v1656 = vunpack.c.l.b16 %v499
    %v1657 = vunpack.c.h.b16 %v499
    %v1658 = vunpack.c.l.b16 %v500
    %v1659 = vunpack.c.h.b16 %v500
    %v1660 = vunpack.c.l.b16 %v501
    %v1661 = vunpack.c.h.b16 %v501
    %v1662 = vunpack.c.l.b16 %v502
    %v1663 = vunpack.c.h.b16 %v502
    %v1664 = vunpack.c.l.b16 %v503
    %v1665 = vunpack.c.h.b16 %v503
    %v1666 = vunpack.c.l.b16 %v504
    %v1667 = vunpack.c.h.b16 %v504
    %v1668 = vunpack.c.l.b16 %v505
    %v1669 = vunpack.c.h.b16 %v505
    %v1670 = vunpack.c.l.b16 %v506
    %v1671 = vunpack.c.h.b16 %v506
    %v1672 = vunpack.c.l.b16 %v507
    %v1673 = vunpack.c.h.b16 %v507
    %v1674 = vunpack.c.l.b16 %v508
    %v1675 = vunpack.c.h.b16 %v508
    %v1676 = vunpack.c.l.b16 %v509
    %v1677 = vunpack.c.h.b16 %v509
    %v1678 = vunpack.c.l.b16 %v510
    %v1679 = vunpack.c.h.b16 %v510
    %v1680 = vunpack.c.l.b16 %v511
    %v1681 = vunpack.c.h.b16 %v511
    %v1682 = vunpack.c.l.b16 %v512
    %v1683 = vunpack.c.h.b16 %v512
    %v1684 = vunpack.c.l.b16 %v513
    %v1685 = vunpack.c.h.b16 %v513
    %v1686 = vunpack.c.l.b16 %v514
    %v1687 = vunpack.c.h.b16 %v514
    %v1688 = vunpack.c.l.b16 %v515
    %v1689 = vunpack.c.h.b16 %v515
    %v1690 = vunpack.c.l.b16 %v516
    %v1691 = vunpack.c.h.b16 %v516
    %v1692 = vunpack.c.l.b16 %v517
    %v1693 = vunpack.c.h.b16 %v517
    %v1694 = vunpack.c.l.b16 %v518
    %v1695 = vunpack.c.h.b16 %v518
    %v1696 = vunpack.c.l.b16 %v519
    %v1697 = vunpack.c.h.b16 %v519
    %v1698 = vunpack.c.l.b16 %v520
    %v1699 = vunpack.c.h.b16 %v520
    %v1700 = vunpack.c.l.b16 %v521
    %v1701 = vunpack.c.h.b16 %v521
    %v1702 = vunpack.c.l.b16 %v522
    %v1703 = vunpack.c.h.b16 %v522
    %v1704 = vunpack.c.l.b16 %v523
    %v1705 = vunpack.c.h.b16 %v523
    %v1706 = vunpack.c.l.b16 %v524
    %v1707 = vunpack.c.h.b16 %v524
    %v1708 = vunpack.c.l.b16 %v525
    %v1709 = vunpack.c.h.b16 %v525
    %v1710 = vunpack.c.l.b16 %v526
    %v1711 = vunpack.c.h.b16 %v526
    %v1712 = vunpack.c.l.b16 %v527
    %v1713 = vunpack.c.h.b16 %v527
    %v1714 = vunpack.c.l.b16 %v528
    %v1715 = vunpack.c.h.b16 %v528
    %v1716 = vunpack.c.l.b16 %v529
    %v1717 = vunpack.c.h.b16 %v529
    %v1718 = vunpack.c.l.b16 %v530
    %v1719 = vunpack.c.h.b16 %v530
    %v1720 = vunpack.c.l.b16 %v531
    %v1721 = vunpack.c.h.b16 %v531
    %v1722 = vunpack.c.l.b16 %v532
    %v1723 = vunpack.c.h.b16 %v532
    %v1724 = vunpack.c.l.b16 %v533
    %v1725 = vunpack.c.h.b16 %v533
    %v1726 = vunpack.c.l.b16 %v534
    %v1727 = vunpack.c.h.b16 %v534
    %v1728 = vunpack.c.l.b16 %v535
    %v1729 = vunpack.c.h.b16 %v535
    %v1730 = vunpack.c.l.b16 %v536
    %v1731 = vunpack.c.h.b16 %v536
    %v1732 = vunpack.c.l.b16 %v537
    %v1733 = vunpack.c.h.b16 %v537
    %v1734 = vunpack.c.l.b16 %v538
    %v1735 = vunpack.c.h.b16 %v538
    %v1736 = vunpack.c.l.b16 %v539
    %v1737 = vunpack.c.h.b16 %v539
    %v1738 = vunpack.c.l.b16 %v540
    %v1739 = vunpack.c.h.b16 %v540
    %v1740 = vunpack.c.l.b16 %v541
    %v1741 = vunpack.c.h.b16 %v541
    %v1742 = vunpack.c.l.b16 %v542
    %v1743 = vunpack.c.h.b16 %v542
    %v1744 = vunpack.c.l.b16 %v543
    %v1745 = vunpack.c.h.b16 %v543
    %v1746 = vunpack.c.l.b16 %v544
    %v1747 = vunpack.c.h.b16 %v544
    %v1748 = vunpack.c.l.b16 %v545
    %v1749 = vunpack.c.h.b16 %v545
    %v1750 = vunpack.c.l.b16 %v546
    %v1751 = vunpack.c.h.b16 %v546
    %v1752 = vunpack.c.l.b16 %v547
    %v1753 = vunpack.c.h.b16 %v547
    %v1754 = vunpack.c.l.b16 %v548
    %v1755 = vunpack.c.h.b16 %v548
    %v1756 = vunpack.c.l.b16 %v549
    %v1757 = vunpack.c.h.b16 %v549
    %v1758 = vunpack.c.l.b16 %v550
    %v1759 = vunpack.c.h.b16 %v550
    %v1760 = vunpack.c.l.b16 %v551
    %v1761 = vunpack.c.h.b16 %v551
    %v1762 = vunpack.c.l.b16 %v552
    %v1763 = vunpack.c.h.b16 %v552
    %v1764 = vunpack.c.l.b16 %v553
    %v1765 = vunpack.c.h.b16 %v553
    %v1766 = vunpack.c.l.b16 %v554
    %v1767 = vunpack.c.h.b16 %v554
    %v1768 = vunpack.c.l.b16 %v555
    %v1769 = vunpack.c.h.b16 %v555
    %v1770 = vunpack.c.l.b16 %v556
    %v1771 = vunpack.c.h.b16 %v556
    %v1772 = vunpack.c.l.b16 %v557
    %v1773 = vunpack.c.h.b16 %v557
    %v1774 = vunpack.c.l.b16 %v558
    %v1775 = vunpack.c.h.b16 %v558
    %v1776 = vunpack.c.l.b16 %v559
    %v1777 = vunpack.c.h.b16 %v559
    %v1778 = vunpack.c.l.b16 %v560
    %v1779 = vunpack.c.h.b16 %v560
    %v1780 = vunpack.c.l.b16 %v561
    %v1781 = vunpack.c.h.b16 %v561
    %v1782 = vunpack.c.l.b16 %v562
    %v1783 = vunpack.c.h.b16 %v562
    %v1784 = vunpack.c.l.b16 %v563
    %v1785 = vunpack.c.h.b16 %v563
    %v1786 = vunpack.c.l.b16 %v564
    %v1787 = vunpack.c.h.b16 %v564
    %v1788 = vunpack.c.l.b16 %v565
    %v1789 = vunpack.c.h.b16 %v565
    %v1790 = vunpack.c.l.b16 %v566
    %v1791 = vunpack.c.h.b16 %v566
    %v1792 = vunpack.c.l.b16 %v567
    %v1793 = vunpack.c.h.b16 %v567
    %v1794 = vunpack.c.l.b16 %v568
    %v1795 = vunpack.c.h.b16 %v568
    %v1796 = vunpack.c.l.b16 %v569
    %v1797 = vunpack.c.h.b16 %v569
    %v1798 = vunpack.c.l.b16 %v570
    %v1799 = vunpack.c.h.b16 %v570
    %v1800 = vunpack.c.l.b16 %v571
    %v1801 = vunpack.c.h.b16 %v571
    %v1802 = vunpack.c.l.b16 %v572
    %v1803 = vunpack.c.h.b16 %v572
    %v1804 = vunpack.c.l.b16 %v573
    %v1805 = vunpack.c.h.b16 %v573
    %v1806 = vunpack.c.l.b16 %v574
    %v1807 = vunpack.c.h.b16 %v574
    %v1808 = vunpack.c.l.b16 %v575
    %v1809 = vunpack.c.h.b16 %v575
    %v1810 = vunpack.c.l.b16 %v576
    %v1811 = vunpack.c.h.b16 %v576
    %v1812 = vunpack.c.l.b16 %v577
    %v1813 = vunpack.c.h.b16 %v577
    %v1814 = vunpack.c.l.b16 %v578
    %v1815 = vunpack.c.h.b16 %v578
    %v1816 = vunpack.c.l.b16 %v579
    %v1817 = vunpack.c.h.b16 %v579
    %v1818 = vunpack.c.l.b16 %v580
    %v1819 = vunpack.c.h.b16 %v580
    %v1820 = vunpack.c.l.b16 %v581
    %v1821 = vunpack.c.h.b16 %v581
    %v1822 = vunpack.c.l.b16 %v582
    %v1823 = vunpack.c.h.b16 %v582
    %v1824 = vunpack.c.l.b16 %v583
    %v1825 = vunpack.c.h.b16 %v583
    %v1826 = vunpack.c.l.b16 %v584
    %v1827 = vunpack.c.h.b16 %v584
    %v1828 = vunpack.c.l.b16 %v585
    %v1829 = vunpack.c.h.b16 %v585
    %v1830 = vunpack.c.l.b16 %v586
    %v1831 = vunpack.c.h.b16 %v586
    %v1832 = vunpack.c.l.b16 %v587
    %v1833 = vunpack.c.h.b16 %v587
    %v1834 = vunpack.c.l.b16 %v588
    %v1835 = vunpack.c.h.b16 %v588
    %v1836 = vunpack.c.l.b16 %v589
    %v1837 = vunpack.c.h.b16 %v589
    %v1838 = vunpack.c.l.b16 %v590
    %v1839 = vunpack.c.h.b16 %v590
    %v1840 = vunpack.c.l.b16 %v591
    %v1841 = vunpack.c.h.b16 %v591
    %v1842 = vunpack.c.l.b16 %v592
    %v1843 = vunpack.c.h.b16 %v592
    %v1844 = vunpack.c.l.b16 %v593
    %v1845 = vunpack.c.h.b16 %v593
    %v1846 = vunpack.c.l.b16 %v594
    %v1847 = vunpack.c.h.b16 %v594
    %v1848 = vunpack.c.l.b16 %v595
    %v1849 = vunpack.c.h.b16 %v595
    %v1850 = vunpack.c.l.b16 %v596
    %v1851 = vunpack.c.h.b16 %v596
    %v1852 = vunpack.c.l.b16 %v597
    %v1853 = vunpack.c.h.b16 %v597
    %v1854 = vunpack.c.l.b16 %v598
    %v1855 = vunpack.c.h.b16 %v598
    %v1856 = vunpack.c.l.b16 %v599
    %v1857 = vunpack.c.h.b16 %v599
    %v1858 = vunpack.c.l.b16 %v600
    %v1859 = vunpack.c.h.b16 %v600
    %v1860 = vunpack.c.l.b16 %v601
    %v1861 = vunpack.c.h.b16 %v601
    %v1862 = vunpack.c.l.b16 %v602
    %v1863 = vunpack.c.h.b16 %v602
    %v1864 = vunpack.c.l.b16 %v603
    %v1865 = vunpack.c.h.b16 %v603
    %v1866 = vunpack.c.l.b16 %v604
    %v1867 = vunpack.c.h.b16 %v604
    %v1868 = vunpack.c.l.b16 %v605
    %v1869 = vunpack.c.h.b16 %v605
    %v1870 = vunpack.c.l.b16 %v606
    %v1871 = vunpack.c.h.b16 %v606
    %v1872 = vunpack.c.l.b16 %v607
    %v1873 = vunpack.c.h.b16 %v607
    %v1874 = vunpack.c.l.b16 %v608
    %v1875 = vunpack.c.h.b16 %v608
    %v1876 = vunpack.c.l.b16 %v609
    %v1877 = vunpack.c.h.b16 %v609
    %v1878 = vunpack.c.l.b16 %v610
    %v1879 = vunpack.c.h.b16 %v610
    %v1880 = vunpack.c.l.b16 %v611
    %v1881 = vunpack.c.h.b16 %v611
    %v1882 = vunpack.c.l.b16 %v612
    %v1883 = vunpack.c.h.b16 %v612
    %v1884 = vunpack.c.l.b16 %v613
    %v1885 = vunpack.c.h.b16 %v613
    %v1886 = vunpack.c.l.b16 %v614
    %v1887 = vunpack.c.h.b16 %v614
    %v1888 = vunpack.c.l.b16 %v615
    %v1889 = vunpack.c.h.b16 %v615
    %v1890 = vunpack.c.l.b16 %v616
    %v1891 = vunpack.c.h.b16 %v616
    %v1892 = vunpack.c.l.b16 %v617
    %v1893 = vunpack.c.h.b16 %v617
    %v1894 = vunpack.c.l.b16 %v618
    %v1895 = vunpack.c.h.b16 %v618
    %v1896 = vunpack.c.l.b16 %v619
    %v1897 = vunpack.c.h.b16 %v619
    %v1898 = vunpack.c.l.b16 %v620
    %v1899 = vunpack.c.h.b16 %v620
    %v1900 = vunpack.c.l.b16 %v621
    %v1901 = vunpack.c.h.b16 %v621
    %v1902 = vunpack.c.l.b16 %v622
    %v1903 = vunpack.c.h.b16 %v622
    %v1904 = vunpack.c.l.b16 %v623
    %v1905 = vunpack.c.h.b16 %v623
    %v1906 = vunpack.c.l.b16 %v624
    %v1907 = vunpack.c.h.b16 %v624
    %v1908 = vunpack.c.l.b16 %v625
    %v1909 = vunpack.c.h.b16 %v625
    %v1910 = vunpack.c.l.b16 %v626
    %v1911 = vunpack.c.h.b16 %v626
    %v1912 = vunpack.c.l.b16 %v627
    %v1913 = vunpack.c.h.b16 %v627
    %v1914 = vunpack.c.l.b16 %v628
    %v1915 = vunpack.c.h.b16 %v628
    %v1916 = vunpack.c.l.b16 %v629
    %v1917 = vunpack.c.h.b16 %v629
    %v1918 = vunpack.c.l.b16 %v630
    %v1919 = vunpack.c.h.b16 %v630
    %v1920 = vunpack.c.l.b16 %v631
    %v1921 = vunpack.c.h.b16 %v631
    %v1922 = vunpack.c.l.b16 %v632
    %v1923 = vunpack.c.h.b16 %v632
    %v1924 = vunpack.c.l.b16 %v633
    %v1925 = vunpack.c.h.b16 %v633
    %v1926 = vunpack.c.l.b16 %v634
    %v1927 = vunpack.c.h.b16 %v634
    %v1928 = vunpack.c.l.b16 %v635
    %v1929 = vunpack.c.h.b16 %v635
    %v1930 = vunpack.c.l.b16 %v636
    %v1931 = vunpack.c.h.b16 %v636
    %v1932 = vunpack.c.l.b16 %v637
    %v1933 = vunpack.c.h.b16 %v637
    %v1934 = vunpack.c.l.b16 %v638
    %v1935 = vunpack.c.h.b16 %v638
    %v1936 = vunpack.c.l.b16 %v639
    %v1937 = vunpack.c.h.b16 %v639
    %v1938 = vunpack.c.l.b16 %v640
    %v1939 = vunpack.c.h.b16 %v640
    %v1940 = vunpack.c.l.b16 %v641
    %v1941 = vunpack.c.h.b16 %v641
    %v1942 = vunpack.c.l.b16 %v642
    %v1943 = vunpack.c.h.b16 %v642
    %v1944 = vunpack.c.l.b16 %v643
    %v1945 = vunpack.c.h.b16 %v643
    %v1946 = vunpack.c.l.b16 %v644
    %v1947 = vunpack.c.h.b16 %v644
    %v1948 = vunpack.c.l.b16 %v645
    %v1949 = vunpack.c.h.b16 %v645
    %v1950 = vunpack.c.l.b16 %v646
    %v1951 = vunpack.c.h.b16 %v646
    %v1952 = vunpack.c.l.b16 %v647
    %v1953 = vunpack.c.h.b16 %v647
    %v1954 = vunpack.c.l.b16 %v648
    %v1955 = vunpack.c.h.b16 %v648
    %v1956 = vunpack.c.l.b16 %v649
    %v1957 = vunpack.c.h.b16 %v649
    %v1958 = vunpack.c.l.b16 %v650
    %v1959 = vunpack.c.h.b16 %v650
    %v1960 = vunpack.c.l.b16 %v651
    %v1961 = vunpack.c.h.b16 %v651
    %v1962 = vunpack.c.l.b16 %v652
    %v1963 = vunpack.c.h.b16 %v652
    %v1964 = vunpack.c.l.b16 %v653
    %v1965 = vunpack.c.h.b16 %v653
    %v1966 = vunpack.c.l.b16 %v654
    %v1967 = vunpack.c.h.b16 %v654
    %v1968 = vunpack.c.l.b16 %v655
    %v1969 = vunpack.c.h.b16 %v655
    %v1970 = vunpack.c.l.b16 %v656
    %v1971 = vunpack.c.h.b16 %v656
    %v1972 = vunpack.c.l.b16 %v657
    %v1973 = vunpack.c.h.b16 %v657
    %v1974 = vunpack.c.l.b16 %v658
    %v1975 = vunpack.c.h.b16 %v658
    %v1976 = vunpack.c.l.b16 %v659
    %v1977 = vunpack.c.h.b16 %v659
    %v1978 = vunpack.c.l.b16 %v660
    %v1979 = vunpack.c.h.b16 %v660
    %v1980 = vunpack.c.l.b16 %v661
    %v1981 = vunpack.c.h.b16 %v661
    %v1982 = vunpack.c.l.b16 %v662
    %v1983 = vunpack.c.h.b16 %v662
    %v1984 = vunpack.c.l.b16 %v663
    %v1985 = vunpack.c.h.b16 %v663
    %v1986 = vunpack.c.l.b16 %v664
    %v1987 = vunpack.c.h.b16 %v664
    %v1988 = vunpack.c.l.b16 %v665
    %v1989 = vunpack.c.h.b16 %v665
    %v1990 = vunpack.c.l.b16 %v666
    %v1991 = vunpack.c.h.b16 %v666
    %v1992 = vunpack.c.l.b16 %v667
    %v1993 = vunpack.c.h.b16 %v667
    %v1994 = vunpack.c.l.b16 %v668
    %v1995 = vunpack.c.h.b16 %v668
    %v1996 = vunpack.c.l.b16 %v669
    %v1997 = vunpack.c.h.b16 %v669
    %v1998 = vunpack.c.l.b16 %v670
    %v1999 = vunpack.c.h.b16 %v670
    %v2000 = vunpack.c.l.b16 %v671
    %v2001 = vunpack.c.h.b16 %v671
    %v2002 = vunpack.c.l.b16 %v672
    %v2003 = vunpack.c.h.b16 %v672
    %v2004 = vunpack.c.l.b16 %v673
    %v2005 = vunpack.c.h.b16 %v673
    %v2006 = vunpack.c.l.b16 %v674
    %v2007 = vunpack.c.h.b16 %v674
    %v2008 = vunpack.c.l.b16 %v675
    %v2009 = vunpack.c.h.b16 %v675
    %v2010 = vunpack.c.l.b16 %v676
    %v2011 = vunpack.c.h.b16 %v676
    %v2012 = vunpack.c.l.b16 %v677
    %v2013 = vunpack.c.h.b16 %v677
    %v2014 = vunpack.c.l.b16 %v678
    %v2015 = vunpack.c.h.b16 %v678
    %v2016 = vunpack.c.l.b16 %v679
    %v2017 = vunpack.c.h.b16 %v679
    %v2018 = vunpack.c.l.b16 %v680
    %v2019 = vunpack.c.h.b16 %v680
    %v2020 = vunpack.c.l.b16 %v681
    %v2021 = vunpack.c.h.b16 %v681
    %v2022 = vunpack.c.l.b16 %v682
    %v2023 = vunpack.c.h.b16 %v682
    %v2024 = vunpack.c.l.b16 %v683
    %v2025 = vunpack.c.h.b16 %v683
    %v2026 = vunpack.c.l.b16 %v684
    %v2027 = vunpack.c.h.b16 %v684
    %v2028 = vunpack.c.l.b16 %v685
    %v2029 = vunpack.c.h.b16 %v685
    %v2030 = vunpack.c.l.b16 %v686
    %v2031 = vunpack.c.h.b16 %v686
    %v2032 = vunpack.c.l.b16 %v687
    %v2033 = vunpack.c.h.b16 %v687
    %v2034 = vunpack.c.l.b16 %v688
    %v2035 = vunpack.c.h.b16 %v688
    %v2036 = vunpack.c.l.b16 %v689
    %v2037 = vunpack.c.h.b16 %v689
    %v2038 = vunpack.c.l.b16 %v690
    %v2039 = vunpack.c.h.b16 %v690
    %v2040 = vunpack.c.l.b16 %v691
    %v2041 = vunpack.c.h.b16 %v691
    %v2042 = vunpack.c.l.b16 %v692
    %v2043 = vunpack.c.h.b16 %v692
    %v2044 = vunpack.c.l.b16 %v693
    %v2045 = vunpack.c.h.b16 %v693
    %v2046 = vunpack.c.l.b16 %v694
    %v2047 = vunpack.c.h.b16 %v694
    %v2048 = vunpack.c.l.b16 %v695
    %v2049 = vunpack.c.h.b16 %v695
    %v2050 = vunpack.c.l.b16 %v696
    %v2051 = vunpack.c.h.b16 %v696
    %v2052 = vunpack.c.l.b16 %v697
    %v2053 = vunpack.c.h.b16 %v697
    %v2054 = vunpack.c.l.b16 %v698
    %v2055 = vunpack.c.h.b16 %v698
    %v2056 = vunpack.c.l.b16 %v699
    %v2057 = vunpack.c.h.b16 %v699
    %v2058 = vunpack.c.l.b16 %v700
    %v2059 = vunpack.c.h.b16 %v700
    %v2060 = vunpack.c.l.b16 %v701
    %v2061 = vunpack.c.h.b16 %v701
    %v2062 = vunpack.c.l.b16 %v702
    %v2063 = vunpack.c.h.b16 %v702
    %v2064 = vunpack.c.l.b16 %v703
    %v2065 = vunpack.c.h.b16 %v703
    %v2066 = vunpack.c.l.b16 %v704
    %v2067 = vunpack.c.h.b16 %v704
    %v2068 = vunpack.c.l.b16 %v705
    %v2069 = vunpack.c.h.b16 %v705
    %v2070 = vunpack.c.l.b16 %v706
    %v2071 = vunpack.c.h.b16 %v706
    %v2072 = vunpack.c.l.b16 %v707
    %v2073 = vunpack.c.h.b16 %v707
    %v2074 = vunpack.c.l.b16 %v708
    %v2075 = vunpack.c.h.b16 %v708
    %v2076 = vunpack.c.l.b16 %v709
    %v2077 = vunpack.c.h.b16 %v709
    %v2078 = vunpack.c.l.b16 %v710
    %v2079 = vunpack.c.h.b16 %v710
    %v2080 = vunpack.c.l.b16 %v711
    %v2081 = vunpack.c.h.b16 %v711
    %v2082 = vunpack.c.l.b16 %v712
    %v2083 = vunpack.c.h.b16 %v712
    %v2084 = vunpack.c.l.b16 %v713
    %v2085 = vunpack.c.h.b16 %v713
    %v2086 = vunpack.c.l.b16 %v714
    %v2087 = vunpack.c.h.b16 %v714
    %v2088 = vunpack.c.l.b16 %v715
    %v2089 = vunpack.c.h.b16 %v715
    %v2090 = vunpack.c.l.b16 %v716
    %v2091 = vunpack.c.h.b16 %v716
    %v2092 = vunpack.c.l.b16 %v717
    %v2093 = vunpack.c.h.b16 %v717
    %v2094 = vunpack.c.l.b16 %v718
    %v2095 = vunpack.c.h.b16 %v718
    %v2096 = vunpack.c.l.b16 %v719
    %v2097 = vunpack.c.h.b16 %v719
    %v2098 = vunpack.c.l.b16 %v720
    %v2099 = vunpack.c.h.b16 %v720
    %v2100 = vunpack.c.l.b16 %v721
    %v2101 = vunpack.c.h.b16 %v721
    %v2102 = vunpack.c.l.b16 %v722
    %v2103 = vunpack.c.h.b16 %v722
    %v2104 = vunpack.c.l.b16 %v723
    %v2105 = vunpack.c.h.b16 %v723
    %v2106 = vunpack.c.l.b16 %v724
    %v2107 = vunpack.c.h.b16 %v724
    %v2108 = vunpack.c.l.b16 %v725
    %v2109 = vunpack.c.h.b16 %v725
    %v2110 = vunpack.c.l.b16 %v726
    %v2111 = vunpack.c.h.b16 %v726
    %v2112 = vunpack.c.l.b16 %v727
    %v2113 = vunpack.c.h.b16 %v727
    %v2114 = vunpack.c.l.b16 %v728
    %v2115 = vunpack.c.h.b16 %v728
    %v2116 = vunpack.c.l.b16 %v729
    %v2117 = vunpack.c.h.b16 %v729
    %v2118 = vunpack.c.l.b16 %v730
    %v2119 = vunpack.c.h.b16 %v730
    %v2120 = vunpack.c.l.b16 %v731
    %v2121 = vunpack.c.h.b16 %v731
    %v2122 = vunpack.c.l.b16 %v732
    %v2123 = vunpack.c.h.b16 %v732
    %v2124 = vunpack.c.l.b16 %v733
    %v2125 = vunpack.c.h.b16 %v733
    %v2126 = vunpack.c.l.b16 %v734
    %v2127 = vunpack.c.h.b16 %v734
    %v2128 = vunpack.c.l.b16 %v735
    %v2129 = vunpack.c.h.b16 %v735
    %v2130 = vunpack.c.l.b16 %v736
    %v2131 = vunpack.c.h.b16 %v736
    %v2132 = vunpack.c.l.b16 %v737
    %v2133 = vunpack.c.h.b16 %v737
    %v2134 = vunpack.c.l.b16 %v738
    %v2135 = vunpack.c.h.b16 %v738
    %v2136 = vunpack.c.l.b16 %v739
    %v2137 = vunpack.c.h.b16 %v739
    %v2138 = vunpack.c.l.b16 %v740
    %v2139 = vunpack.c.h.b16 %v740
    %v2140 = vunpack.c.l.b16 %v741
    %v2141 = vunpack.c.h.b16 %v741
    %v2142 = vunpack.c.l.b16 %v742
    %v2143 = vunpack.c.h.b16 %v742
    %v2144 = vunpack.c.l.b16 %v743
    %v2145 = vunpack.c.h.b16 %v743
    %v2146 = vunpack.c.l.b16 %v744
    %v2147 = vunpack.c.h.b16 %v744
    %v2148 = vunpack.c.l.b16 %v745
    %v2149 = vunpack.c.h.b16 %v745
    %v2150 = vunpack.c.l.b16 %v746
    %v2151 = vunpack.c.h.b16 %v746
    %v2152 = vunpack.c.l.b16 %v747
    %v2153 = vunpack.c.h.b16 %v747
    %v2154 = vunpack.c.l.b16 %v748
    %v2155 = vunpack.c.h.b16 %v748
    %v2156 = vunpack.c.l.b16 %v749
    %v2157 = vunpack.c.h.b16 %v749
    %v2158 = vunpack.c.l.b16 %v750
    %v2159 = vunpack.c.h.b16 %v750
    %v2160 = vunpack.c.l.b16 %v751
    %v2161 = vunpack.c.h.b16 %v751
    %v2162 = vunpack.c.l.b16 %v752
    %v2163 = vunpack.c.h.b16 %v752
    %v2164 = vunpack.c.l.b16 %v753
    %v2165 = vunpack.c.h.b16 %v753
    %v2166 = vunpack.c.l.b16 %v754
    %v2167 = vunpack.c.h.b16 %v754
    %v2168 = vunpack.c.l.b16 %v755
    %v2169 = vunpack.c.h.b16 %v755
    %v2170 = vunpack.c.l.b16 %v756
    %v2171 = vunpack.c.h.b16 %v756
    %v2172 = vunpack.c.l.b16 %v757
    %v2173 = vunpack.c.h.b16 %v757
    %v2174 = vunpack.c.l.b16 %v758
    %v2175 = vunpack.c.h.b16 %v758
    %v2176 = vunpack.c.l.b16 %v759
    %v2177 = vunpack.c.h.b16 %v759
    %v2178 = vunpack.c.l.b16 %v760
    %v2179 = vunpack.c.h.b16 %v760
    %v2180 = vunpack.c.l.b16 %v761
    %v2181 = vunpack.c.h.b16 %v761
    %v2182 = vunpack.c.l.b16 %v762
    %v2183 = vunpack.c.h.b16 %v762
    %v2184 = vunpack.c.l.b16 %v763
    %v2185 = vunpack.c.h.b16 %v763
    %v2186 = vunpack.c.l.b16 %v764
    %v2187 = vunpack.c.h.b16 %v764
    %v2188 = vunpack.c.l.b16 %v765
    %v2189 = vunpack.c.h.b16 %v765
    %v2190 = vunpack.c.l.b16 %v766
    %v2191 = vunpack.c.h.b16 %v766
    %v2192 = vunpack.c.l.b16 %v767
    %v2193 = vunpack.c.h.b16 %v767
    %v2194 = vunpack.c.l.b16 %v768
    %v2195 = vunpack.c.h.b16 %v768
    %v2196 = vunpack.c.l.b16 %v769
    %v2197 = vunpack.c.h.b16 %v769
    %v2198 = vunpack.c.l.b16 %v770
    %v2199 = vunpack.c.h.b16 %v770
    %v2200 = vunpack.c.l.b16 %v771
    %v2201 = vunpack.c.h.b16 %v771
    %v2202 = vunpack.c.l.b16 %v772
    %v2203 = vunpack.c.h.b16 %v772
    %v2204 = vunpack.c.l.b16 %v773
    %v2205 = vunpack.c.h.b16 %v773
    %v2206 = vunpack.c.l.b16 %v774
    %v2207 = vunpack.c.h.b16 %v774
    %v2208 = vunpack.c.l.b16 %v775
    %v2209 = vunpack.c.h.b16 %v775
    %v2210 = vunpack.c.l.b16 %v776
    %v2211 = vunpack.c.h.b16 %v776
    %v2212 = vunpack.c.l.b16 %v777
    %v2213 = vunpack.c.h.b16 %v777
    %v2214 = vunpack.c.l.b16 %v778
    %v2215 = vunpack.c.h.b16 %v778
    %v2216 = vunpack.c.l.b16 %v779
    %v2217 = vunpack.c.h.b16 %v779
    %v2218 = vunpack.c.l.b16 %v780
    %v2219 = vunpack.c.h.b16 %v780
    %v2220 = vunpack.c.l.b16 %v781
    %v2221 = vunpack.c.h.b16 %v781
    %v2222 = vunpack.c.l.b16 %v782
    %v2223 = vunpack.c.h.b16 %v782
    %v2224 = vunpack.c.l.b16 %v783
    %v2225 = vunpack.c.h.b16 %v783
    %v2226 = vunpack.c.l.b16 %v784
    %v2227 = vunpack.c.h.b16 %v784
    %v2228 = vunpack.c.l.b16 %v785
    %v2229 = vunpack.c.h.b16 %v785
    %v2230 = vunpack.c.l.b16 %v786
    %v2231 = vunpack.c.h.b16 %v786
    %v2232 = vunpack.c.l.b16 %v787
    %v2233 = vunpack.c.h.b16 %v787
    %v2234 = vunpack.c.l.b16 %v788
    %v2235 = vunpack.c.h.b16 %v788
    %v2236 = vunpack.c.l.b16 %v789
    %v2237 = vunpack.c.h.b16 %v789
    %v2238 = vunpack.c.l.b16 %v790
    %v2239 = vunpack.c.h.b16 %v790
    %v2240 = vunpack.c.l.b16 %v791
    %v2241 = vunpack.c.h.b16 %v791
    %v2242 = vunpack.c.l.b16 %v792
    %v2243 = vunpack.c.h.b16 %v792
    %v2244 = vunpack.c.l.b16 %v793
    %v2245 = vunpack.c.h.b16 %v793
    %v2246 = vunpack.c.l.b16 %v794
    %v2247 = vunpack.c.h.b16 %v794
    %v2248 = vunpack.c.l.b16 %v795
    %v2249 = vunpack.c.h.b16 %v795
    %v2250 = vunpack.c.l.b16 %v796
    %v2251 = vunpack.c.h.b16 %v796
    %v2252 = vunpack.c.l.b16 %v797
    %v2253 = vunpack.c.h.b16 %v797
    %v2254 = vunpack.c.l.b16 %v798
    %v2255 = vunpack.c.h.b16 %v798
    %v2256 = vunpack.c.l.b16 %v799
    %v2257 = vunpack.c.h.b16 %v799
    %v2258 = vunpack.c.l.b16 %v800
    %v2259 = vunpack.c.h.b16 %v800
    %v2260 = vunpack.c.l.b16 %v801
    %v2261 = vunpack.c.h.b16 %v801
    %v2262 = vunpack.c.l.b16 %v802
    %v2263 = vunpack.c.h.b16 %v802
    %v2264 = vunpack.c.l.b16 %v803
    %v2265 = vunpack.c.h.b16 %v803
    %v2266 = vunpack.c.l.b16 %v804
    %v2267 = vunpack.c.h.b16 %v804
    %v2268 = vunpack.c.l.b16 %v805
    %v2269 = vunpack.c.h.b16 %v805
    %v2270 = vunpack.c.l.b16 %v806
    %v2271 = vunpack.c.h.b16 %v806
    %v2272 = vunpack.c.l.b16 %v807
    %v2273 = vunpack.c.h.b16 %v807
    %v2274 = vunpack.c.l.b16 %v808
    %v2275 = vunpack.c.h.b16 %v808
    %v2276 = vunpack.c.l.b16 %v809
    %v2277 = vunpack.c.h.b16 %v809
    %v2278 = vunpack.c.l.b16 %v810
    %v2279 = vunpack.c.h.b16 %v810
    %v2280 = vunpack.c.l.b16 %v811
    %v2281 = vunpack.c.h.b16 %v811
    %v2282 = vunpack.c.l.b16 %v812
    %v2283 = vunpack.c.h.b16 %v812
    %v2284 = vunpack.c.l.b16 %v813
    %v2285 = vunpack.c.h.b16 %v813
    %v2286 = vunpack.c.l.b16 %v814
    %v2287 = vunpack.c.h.b16 %v814
    %v2288 = vunpack.c.l.b16 %v815
    %v2289 = vunpack.c.h.b16 %v815
    %v2290 = vunpack.c.l.b16 %v816
    %v2291 = vunpack.c.h.b16 %v816
    %v2292 = vunpack.c.l.b16 %v817
    %v2293 = vunpack.c.h.b16 %v817
    %v2294 = vunpack.c.l.b16 %v818
    %v2295 = vunpack.c.h.b16 %v818
    %v2296 = vunpack.c.l.b16 %v819
    %v2297 = vunpack.c.h.b16 %v819
    %v2298 = vunpack.c.l.b16 %v820
    %v2299 = vunpack.c.h.b16 %v820
    %v2300 = vunpack.c.l.b16 %v821
    %v2301 = vunpack.c.h.b16 %v821
    %v2302 = vunpack.c.l.b16 %v822
    %v2303 = vunpack.c.h.b16 %v822
    %v2304 = vunpack.c.l.b16 %v823
    %v2305 = vunpack.c.h.b16 %v823
    %v2306 = vunpack.c.l.b16 %v824
    %v2307 = vunpack.c.h.b16 %v824
    %v2308 = vunpack.c.l.b16 %v825
    %v2309 = vunpack.c.h.b16 %v825
    %v2310 = vunpack.c.l.b16 %v826
    %v2311 = vunpack.c.h.b16 %v826
    %v2312 = vunpack.c.l.b16 %v827
    %v2313 = vunpack.c.h.b16 %v827
    %v2314 = vunpack.c.l.b16 %v828
    %v2315 = vunpack.c.h.b16 %v828
    %v2316 = vunpack.c.l.b16 %v829
    %v2317 = vunpack.c.h.b16 %v829
    %v2318 = vunpack.c.l.b16 %v830
    %v2319 = vunpack.c.h.b16 %v830
    %v2320 = vunpack.c.l.b16 %v831
    %v2321 = vunpack.c.h.b16 %v831
    %v2322 = vunpack.c.l.b16 %v832
    %v2323 = vunpack.c.h.b16 %v832
    %v2324 = vunpack.c.l.b16 %v833
    %v2325 = vunpack.c.h.b16 %v833
    %v2326 = vunpack.c.l.b16 %v834
    %v2327 = vunpack.c.h.b16 %v834
    %v2328 = vunpack.c.l.b16 %v835
    %v2329 = vunpack.c.h.b16 %v835
    %v2330 = vunpack.c.l.b16 %v836
    %v2331 = vunpack.c.h.b16 %v836
    %v2332 = vunpack.c.l.b16 %v837
    %v2333 = vunpack.c.h.b16 %v837
    %v2334 = vunpack.c.l.b16 %v838
    %v2335 = vunpack.c.h.b16 %v838
    %v2336 = vunpack.c.l.b16 %v839
    %v2337 = vunpack.c.h.b16 %v839
    %v2338 = vunpack.c.l.b16 %v840
    %v2339 = vunpack.c.h.b16 %v840
    %v2340 = vunpack.c.l.b16 %v841
    %v2341 = vunpack.c.h.b16 %v841
    %v2342 = vunpack.c.l.b16 %v842
    %v2343 = vunpack.c.h.b16 %v842
    %v2344 = vunpack.c.l.b16 %v843
    %v2345 = vunpack.c.h.b16 %v843
    %v2346 = vunpack.c.l.b16 %v844
    %v2347 = vunpack.c.h.b16 %v844
    %v2348 = vunpack.c.l.b16 %v845
    %v2349 = vunpack.c.h.b16 %v845
    %v2350 = vunpack.c.l.b16 %v846
    %v2351 = vunpack.c.h.b16 %v846
    %v2352 = vunpack.c.l.b16 %v847
    %v2353 = vunpack.c.h.b16 %v847
    %v2354 = vunpack.c.l.b16 %v848
    %v2355 = vunpack.c.h.b16 %v848
    %v2356 = vunpack.c.l.b16 %v849
    %v2357 = vunpack.c.h.b16 %v849
    %v2358 = vunpack.c.l.b16 %v850
    %v2359 = vunpack.c.h.b16 %v850
    %v2360 = vunpack.c.l.b16 %v851
    %v2361 = vunpack.c.h.b16 %v851
    %v2362 = vunpack.c.l.b16 %v852
    %v2363 = vunpack.c.h.b16 %v852
    %v2364 = vunpack.c.l.b16 %v853
    %v2365 = vunpack.c.h.b16 %v853
    %v2366 = vunpack.c.l.b16 %v854
    %v2367 = vunpack.c.h.b16 %v854
    %v2368 = vunpack.c.l.b16 %v855
    %v2369 = vunpack.c.h.b16 %v855
    %v2370 = vunpack.c.l.b16 %v856
    %v2371 = vunpack.c.h.b16 %v856
    %v2372 = vunpack.c.l.b16 %v857
    %v2373 = vunpack.c.h.b16 %v857
    %v2374 = vunpack.c.l.b16 %v858
    %v2375 = vunpack.c.h.b16 %v858
    %v2376 = vunpack.c.l.b16 %v859
    %v2377 = vunpack.c.h.b16 %v859
    %v2378 = vunpack.c.l.b16 %v860
    %v2379 = vunpack.c.h.b16 %v860
    %v2380 = vunpack.c.l.b16 %v861
    %v2381 = vunpack.c.h.b16 %v861
    %v2382 = vunpack.c.l.b16 %v862
    %v2383 = vunpack.c.h.b16 %v862
    %v2384 = vunpack.c.l.b16 %v863
    %v2385 = vunpack.c.h.b16 %v863
    %v2386 = vunpack.c.l.b16 %v864
    %v2387 = vunpack.c.h.b16 %v864
    %v2388 = vunpack.c.l.b16 %v865
    %v2389 = vunpack.c.h.b16 %v865
    %v2390 = vunpack.c.l.b16 %v866
    %v2391 = vunpack.c.h.b16 %v866
    %v2392 = vunpack.c.l.b16 %v867
    %v2393 = vunpack.c.h.b16 %v867
    %v2394 = vunpack.c.l.b16 %v868
    %v2395 = vunpack.c.h.b16 %v868
    %v2396 = vunpack.c.l.b16 %v869
    %v2397 = vunpack.c.h.b16 %v869
    %v2398 = vunpack.c.l.b16 %v870
    %v2399 = vunpack.c.h.b16 %v870
    %v2400 = vunpack.c.l.b16 %v871
    %v2401 = vunpack.c.h.b16 %v871
    %v2402 = vunpack.c.l.b16 %v872
    %v2403 = vunpack.c.h.b16 %v872
    %v2404 = vunpack.c.l.b16 %v873
    %v2405 = vunpack.c.h.b16 %v873
    %v2406 = vunpack.c.l.b16 %v874
    %v2407 = vunpack.c.h.b16 %v874
    %v2408 = vunpack.c.l.b16 %v875
    %v2409 = vunpack.c.h.b16 %v875
    %v2410 = vunpack.c.l.b16 %v876
    %v2411 = vunpack.c.h.b16 %v876
    %v2412 = vunpack.c.l.b16 %v877
    %v2413 = vunpack.c.h.b16 %v877
    %v2414 = vunpack.c.l.b16 %v878
    %v2415 = vunpack.c.h.b16 %v878
    %v2416 = vunpack.c.l.b16 %v879
    %v2417 = vunpack.c.h.b16 %v879
    %v2418 = vunpack.c.l.b16 %v880
    %v2419 = vunpack.c.h.b16 %v880
    %v2420 = vunpack.c.l.b16 %v881
    %v2421 = vunpack.c.h.b16 %v881
    %v2422 = vunpack.c.l.b16 %v882
    %v2423 = vunpack.c.h.b16 %v882
    %v2424 = vunpack.c.l.b16 %v883
    %v2425 = vunpack.c.h.b16 %v883
    %v2426 = vunpack.c.l.b16 %v884
    %v2427 = vunpack.c.h.b16 %v884
    %v2428 = vunpack.c.l.b16 %v885
    %v2429 = vunpack.c.h.b16 %v885
    %v2430 = vunpack.c.l.b16 %v886
    %v2431 = vunpack.c.h.b16 %v886
    %v2432 = vunpack.c.l.b16 %v887
    %v2433 = vunpack.c.h.b16 %v887
    %v2434 = vunpack.c.l.b16 %v888
    %v2435 = vunpack.c.h.b16 %v888
    %v2436 = vunpack.c.l.b16 %v889
    %v2437 = vunpack.c.h.b16 %v889
    %v2438 = vunpack.c.l.b16 %v890
    %v2439 = vunpack.c.h.b16 %v890
    %v2440 = vunpack.c.l.b16 %v891
    %v2441 = vunpack.c.h.b16 %v891
    %v2442 = vunpack.c.l.b16 %v892
    %v2443 = vunpack.c.h.b16 %v892
    %v2444 = vunpack.c.l.b16 %v893
    %v2445 = vunpack.c.h.b16 %v893
    %v2446 = vunpack.c.l.b16 %v894
    %v2447 = vunpack.c.h.b16 %v894
    %v2448 = vunpack.c.l.b16 %v895
    %v2449 = vunpack.c.h.b16 %v895
    %v2450 = vpack.c.b16 %v1434, %v1426
    %v2451 = vpack.c.b16 %v1435, %v1427
    %v2452 = vpack.c.b16 %v1436, %v1428
    %v2453 = vpack.c.b16 %v1437, %v1429
    %v2454 = vpack.c.b16 %v1438, %v1430
    %v2455 = vpack.c.b16 %v1439, %v1431
    %v2456 = vpack.c.b16 %v1440, %v1432
    %v2457 = vpack.c.b16 %v1441, %v1433
    %v2458 = vpack.c.b16 %v1450, %v1442
    %v2459 = vpack.c.b16 %v1451, %v1443
    %v2460 = vpack.c.b16 %v1452, %v1444
    %v2461 = vpack.c.b16 %v1453, %v1445
    %v2462 = vpack.c.b16 %v1454, %v1446
    %v2463 = vpack.c.b16 %v1455, %v1447
    %v2464 = vpack.c.b16 %v1456, %v1448
    %v2465 = vpack.c.b16 %v1457, %v1449
    %v2466 = vpack.c.b16 %v1466, %v1458
    %v2467 = vpack.c.b16 %v1467, %v1459
    %v2468 = vpack.c.b16 %v1468, %v1460
    %v2469 = vpack.c.b16 %v1469, %v1461
    %v2470 = vpack.c.b16 %v1470, %v1462
    %v2471 = vpack.c.b16 %v1471, %v1463
    %v2472 = vpack.c.b16 %v1472, %v1464
    %v2473 = vpack.c.b16 %v1473, %v1465
    %v2474 = vpack.c.b16 %v1482, %v1474
    %v2475 = vpack.c.b16 %v1483, %v1475
    %v2476 = vpack.c.b16 %v1484, %v1476
    %v2477 = vpack.c.b16 %v1485, %v1477
    %v2478 = vpack.c.b16 %v1486, %v1478
    %v2479 = vpack.c.b16 %v1487, %v1479
    %v2480 = vpack.c.b16 %v1488, %v1480
    %v2481 = vpack.c.b16 %v1489, %v1481
    %v2482 = vpack.c.b16 %v1498, %v1490
    %v2483 = vpack.c.b16 %v1499, %v1491
    %v2484 = vpack.c.b16 %v1500, %v1492
    %v2485 = vpack.c.b16 %v1501, %v1493
    %v2486 = vpack.c.b16 %v1502, %v1494
    %v2487 = vpack.c.b16 %v1503, %v1495
    %v2488 = vpack.c.b16 %v1504, %v1496
    %v2489 = vpack.c.b16 %v1505, %v1497
    %v2490 = vpack.c.b16 %v1514, %v1506
    %v2491 = vpack.c.b16 %v1515, %v1507
    %v2492 = vpack.c.b16 %v1516, %v1508
    %v2493 = vpack.c.b16 %v1517, %v1509
    %v2494 = vpack.c.b16 %v1518, %v1510
    %v2495 = vpack.c.b16 %v1519, %v1511
    %v2496 = vpack.c.b16 %v1520, %v1512
    %v2497 = vpack.c.b16 %v1521, %v1513
    %v2498 = vpack.c.b16 %v1530, %v1522
    %v2499 = vpack.c.b16 %v1531, %v1523
    %v2500 = vpack.c.b16 %v1532, %v1524
    %v2501 = vpack.c.b16 %v1533, %v1525
    %v2502 = vpack.c.b16 %v1534, %v1526
    %v2503 = vpack.c.b16 %v1535, %v1527
    %v2504 = vpack.c.b16 %v1536, %v1528
    %v2505 = vpack.c.b16 %v1537, %v1529
    %v2506 = vpack.c.b16 %v1546, %v1538
    %v2507 = vpack.c.b16 %v1547, %v1539
    %v2508 = vpack.c.b16 %v1548, %v1540
    %v2509 = vpack.c.b16 %v1549, %v1541
    %v2510 = vpack.c.b16 %v1550, %v1542
    %v2511 = vpack.c.b16 %v1551, %v1543
    %v2512 = vpack.c.b16 %v1552, %v1544
    %v2513 = vpack.c.b16 %v1553, %v1545
    %v2514 = vpack.c.b16 %v1562, %v1554
    %v2515 = vpack.c.b16 %v1563, %v1555
    %v2516 = vpack.c.b16 %v1564, %v1556
    %v2517 = vpack.c.b16 %v1565, %v1557
    %v2518 = vpack.c.b16 %v1566, %v1558
    %v2519 = vpack.c.b16 %v1567, %v1559
    %v2520 = vpack.c.b16 %v1568, %v1560
    %v2521 = vpack.c.b16 %v1569, %v1561
    %v2522 = vpack.c.b16 %v1578, %v1570
    %v2523 = vpack.c.b16 %v1579, %v1571
    %v2524 = vpack.c.b16 %v1580, %v1572
    %v2525 = vpack.c.b16 %v1581, %v1573
    %v2526 = vpack.c.b16 %v1582, %v1574
    %v2527 = vpack.c.b16 %v1583, %v1575
    %v2528 = vpack.c.b16 %v1584, %v1576
    %v2529 = vpack.c.b16 %v1585, %v1577
    %v2530 = vpack.c.b16 %v1594, %v1586
    %v2531 = vpack.c.b16 %v1595, %v1587
    %v2532 = vpack.c.b16 %v1596, %v1588
    %v2533 = vpack.c.b16 %v1597, %v1589
    %v2534 = vpack.c.b16 %v1598, %v1590
    %v2535 = vpack.c.b16 %v1599, %v1591
    %v2536 = vpack.c.b16 %v1600, %v1592
    %v2537 = vpack.c.b16 %v1601, %v1593
    %v2538 = vpack.c.b16 %v1610, %v1602
    %v2539 = vpack.c.b16 %v1611, %v1603
    %v2540 = vpack.c.b16 %v1612, %v1604
    %v2541 = vpack.c.b16 %v1613, %v1605
    %v2542 = vpack.c.b16 %v1614, %v1606
    %v2543 = vpack.c.b16 %v1615, %v1607
    %v2544 = vpack.c.b16 %v1616, %v1608
    %v2545 = vpack.c.b16 %v1617, %v1609
    %v2546 = vpack.c.b16 %v1626, %v1618
    %v2547 = vpack.c.b16 %v1627, %v1619
    %v2548 = vpack.c.b16 %v1628, %v1620
    %v2549 = vpack.c.b16 %v1629, %v1621
    %v2550 = vpack.c.b16 %v1630, %v1622
    %v2551 = vpack.c.b16 %v1631, %v1623
    %v2552 = vpack.c.b16 %v1632, %v1624
    %v2553 = vpack.c.b16 %v1633, %v1625
    %v2554 = vpack.c.b16 %v1642, %v1634
    %v2555 = vpack.c.b16 %v1643, %v1635
    %v2556 = vpack.c.b16 %v1644, %v1636
    %v2557 = vpack.c.b16 %v1645, %v1637
    %v2558 = vpack.c.b16 %v1646, %v1638
    %v2559 = vpack.c.b16 %v1647, %v1639
    %v2560 = vpack.c.b16 %v1648, %v1640
    %v2561 = vpack.c.b16 %v1649, %v1641
    %v2562 = vpack.c.b16 %v1658, %v1650
    %v2563 = vpack.c.b16 %v1659, %v1651
    %v2564 = vpack.c.b16 %v1660, %v1652
    %v2565 = vpack.c.b16 %v1661, %v1653
    %v2566 = vpack.c.b16 %v1662, %v1654
    %v2567 = vpack.c.b16 %v1663, %v1655
    %v2568 = vpack.c.b16 %v1664, %v1656
    %v2569 = vpack.c.b16 %v1665, %v1657
    %v2570 = vpack.c.b16 %v1674, %v1666
    %v2571 = vpack.c.b16 %v1675, %v1667
    %v2572 = vpack.c.b16 %v1676, %v1668
    %v2573 = vpack.c.b16 %v1677, %v1669
    %v2574 = vpack.c.b16 %v1678, %v1670
    %v2575 = vpack.c.b16 %v1679, %v1671
    %v2576 = vpack.c.b16 %v1680, %v1672
    %v2577 = vpack.c.b16 %v1681, %v1673
    %v2578 = vpack.c.b16 %v1690, %v1682
    %v2579 = vpack.c.b16 %v1691, %v1683
    %v2580 = vpack.c.b16 %v1692, %v1684
    %v2581 = vpack.c.b16 %v1693, %v1685
    %v2582 = vpack.c.b16 %v1694, %v1686
    %v2583 = vpack.c.b16 %v1695, %v1687
    %v2584 = vpack.c.b16 %v1696, %v1688
    %v2585 = vpack.c.b16 %v1697, %v1689
    %v2586 = vpack.c.b16 %v1706, %v1698
    %v2587 = vpack.c.b16 %v1707, %v1699
    %v2588 = vpack.c.b16 %v1708, %v1700
    %v2589 = vpack.c.b16 %v1709, %v1701
    %v2590 = vpack.c.b16 %v1710, %v1702
    %v2591 = vpack.c.b16 %v1711, %v1703
    %v2592 = vpack.c.b16 %v1712, %v1704
    %v2593 = vpack.c.b16 %v1713, %v1705
    %v2594 = vpack.c.b16 %v1722, %v1714
    %v2595 = vpack.c.b16 %v1723, %v1715
    %v2596 = vpack.c.b16 %v1724, %v1716
    %v2597 = vpack.c.b16 %v1725, %v1717
    %v2598 = vpack.c.b16 %v1726, %v1718
    %v2599 = vpack.c.b16 %v1727, %v1719
    %v2600 = vpack.c.b16 %v1728, %v1720
    %v2601 = vpack.c.b16 %v1729, %v1721
    %v2602 = vpack.c.b16 %v1738, %v1730
    %v2603 = vpack.c.b16 %v1739, %v1731
    %v2604 = vpack.c.b16 %v1740, %v1732
    %v2605 = vpack.c.b16 %v1741, %v1733
    %v2606 = vpack.c.b16 %v1742, %v1734
    %v2607 = vpack.c.b16 %v1743, %v1735
    %v2608 = vpack.c.b16 %v1744, %v1736
    %v2609 = vpack.c.b16 %v1745, %v1737
    %v2610 = vpack.c.b16 %v1754, %v1746
    %v2611 = vpack.c.b16 %v1755, %v1747
    %v2612 = vpack.c.b16 %v1756, %v1748
    %v2613 = vpack.c.b16 %v1757, %v1749
    %v2614 = vpack.c.b16 %v1758, %v1750
    %v2615 = vpack.c.b16 %v1759, %v1751
    %v2616 = vpack.c.b16 %v1760, %v1752
    %v2617 = vpack.c.b16 %v1761, %v1753
    %v2618 = vpack.c.b16 %v1770, %v1762
    %v2619 = vpack.c.b16 %v1771, %v1763
    %v2620 = vpack.c.b16 %v1772, %v1764
    %v2621 = vpack.c.b16 %v1773, %v1765
    %v2622 = vpack.c.b16 %v1774, %v1766
    %v2623 = vpack.c.b16 %v1775, %v1767
    %v2624 = vpack.c.b16 %v1776, %v1768
    %v2625 = vpack.c.b16 %v1777, %v1769
    %v2626 = vpack.c.b16 %v1786, %v1778
    %v2627 = vpack.c.b16 %v1787, %v1779
    %v2628 = vpack.c.b16 %v1788, %v1780
    %v2629 = vpack.c.b16 %v1789, %v1781
    %v2630 = vpack.c.b16 %v1790, %v1782
    %v2631 = vpack.c.b16 %v1791, %v1783
    %v2632 = vpack.c.b16 %v1792, %v1784
    %v2633 = vpack.c.b16 %v1793, %v1785
    %v2634 = vpack.c.b16 %v1802, %v1794
    %v2635 = vpack.c.b16 %v1803, %v1795
    %v2636 = vpack.c.b16 %v1804, %v1796
    %v2637 = vpack.c.b16 %v1805, %v1797
    %v2638 = vpack.c.b16 %v1806, %v1798
    %v2639 = vpack.c.b16 %v1807, %v1799
    %v2640 = vpack.c.b16 %v1808, %v1800
    %v2641 = vpack.c.b16 %v1809, %v1801
    %v2642 = vpack.c.b16 %v1818, %v1810
    %v2643 = vpack.c.b16 %v1819, %v1811
    %v2644 = vpack.c.b16 %v1820, %v1812
    %v2645 = vpack.c.b16 %v1821, %v1813
    %v2646 = vpack.c.b16 %v1822, %v1814
    %v2647 = vpack.c.b16 %v1823, %v1815
    %v2648 = vpack.c.b16 %v1824, %v1816
    %v2649 = vpack.c.b16 %v1825, %v1817
    %v2650 = vpack.c.b16 %v1834, %v1826
    %v2651 = vpack.c.b16 %v1835, %v1827
    %v2652 = vpack.c.b16 %v1836, %v1828
    %v2653 = vpack.c.b16 %v1837, %v1829
    %v2654 = vpack.c.b16 %v1838, %v1830
    %v2655 = vpack.c.b16 %v1839, %v1831
    %v2656 = vpack.c.b16 %v1840, %v1832
    %v2657 = vpack.c.b16 %v1841, %v1833
    %v2658 = vpack.c.b16 %v1850, %v1842
    %v2659 = vpack.c.b16 %v1851, %v1843
    %v2660 = vpack.c.b16 %v1852, %v1844
    %v2661 = vpack.c.b16 %v1853, %v1845
    %v2662 = vpack.c.b16 %v1854, %v1846
    %v2663 = vpack.c.b16 %v1855, %v1847
    %v2664 = vpack.c.b16 %v1856, %v1848
    %v2665 = vpack.c.b16 %v1857, %v1849
    %v2666 = vpack.c.b16 %v1866, %v1858
    %v2667 = vpack.c.b16 %v1867, %v1859
    %v2668 = vpack.c.b16 %v1868, %v1860
    %v2669 = vpack.c.b16 %v1869, %v1861
    %v2670 = vpack.c.b16 %v1870, %v1862
    %v2671 = vpack.c.b16 %v1871, %v1863
    %v2672 = vpack.c.b16 %v1872, %v1864
    %v2673 = vpack.c.b16 %v1873, %v1865
    %v2674 = vpack.c.b16 %v1882, %v1874
    %v2675 = vpack.c.b16 %v1883, %v1875
    %v2676 = vpack.c.b16 %v1884, %v1876
    %v2677 = vpack.c.b16 %v1885, %v1877
    %v2678 = vpack.c.b16 %v1886, %v1878
    %v2679 = vpack.c.b16 %v1887, %v1879
    %v2680 = vpack.c.b16 %v1888, %v1880
    %v2681 = vpack.c.b16 %v1889, %v1881
    %v2682 = vpack.c.b16 %v1898, %v1890
    %v2683 = vpack.c.b16 %v1899, %v1891
    %v2684 = vpack.c.b16 %v1900, %v1892
    %v2685 = vpack.c.b16 %v1901, %v1893
    %v2686 = vpack.c.b16 %v1902, %v1894
    %v2687 = vpack.c.b16 %v1903, %v1895
    %v2688 = vpack.c.b16 %v1904, %v1896
    %v2689 = vpack.c.b16 %v1905, %v1897
    %v2690 = vpack.c.b16 %v1914, %v1906
    %v2691 = vpack.c.b16 %v1915, %v1907
    %v2692 = vpack.c.b16 %v1916, %v1908
    %v2693 = vpack.c.b16 %v1917, %v1909
    %v2694 = vpack.c.b16 %v1918, %v1910
    %v2695 = vpack.c.b16 %v1919, %v1911
    %v2696 = vpack.c.b16 %v1920, %v1912
    %v2697 = vpack.c.b16 %v1921, %v1913
    %v2698 = vpack.c.b16 %v1930, %v1922
    %v2699 = vpack.c.b16 %v1931, %v1923
    %v2700 = vpack.c.b16 %v1932, %v1924
    %v2701 = vpack.c.b16 %v1933, %v1925
    %v2702 = vpack.c.b16 %v1934, %v1926
    %v2703 = vpack.c.b16 %v1935, %v1927
    %v2704 = vpack.c.b16 %v1936, %v1928
    %v2705 = vpack.c.b16 %v1937, %v1929
    %v2706 = vpack.c.b16 %v1946, %v1938
    %v2707 = vpack.c.b16 %v1947, %v1939
    %v2708 = vpack.c.b16 %v1948, %v1940
    %v2709 = vpack.c.b16 %v1949, %v1941
    %v2710 = vpack.c.b16 %v1950, %v1942
    %v2711 = vpack.c.b16 %v1951, %v1943
    %v2712 = vpack.c.b16 %v1952, %v1944
    %v2713 = vpack.c.b16 %v1953, %v1945
    %v2714 = vpack.c.b16 %v1962, %v1954
    %v2715 = vpack.c.b16 %v1963, %v1955
    %v2716 = vpack.c.b16 %v1964, %v1956
    %v2717 = vpack.c.b16 %v1965, %v1957
    %v2718 = vpack.c.b16 %v1966, %v1958
    %v2719 = vpack.c.b16 %v1967, %v1959
    %v2720 = vpack.c.b16 %v1968, %v1960
    %v2721 = vpack.c.b16 %v1969, %v1961
    %v2722 = vpack.c.b16 %v1978, %v1970
    %v2723 = vpack.c.b16 %v1979, %v1971
    %v2724 = vpack.c.b16 %v1980, %v1972
    %v2725 = vpack.c.b16 %v1981, %v1973
    %v2726 = vpack.c.b16 %v1982, %v1974
    %v2727 = vpack.c.b16 %v1983, %v1975
    %v2728 = vpack.c.b16 %v1984, %v1976
    %v2729 = vpack.c.b16 %v1985, %v1977
    %v2730 = vpack.c.b16 %v1994, %v1986
    %v2731 = vpack.c.b16 %v1995, %v1987
    %v2732 = vpack.c.b16 %v1996, %v1988
    %v2733 = vpack.c.b16 %v1997, %v1989
    %v2734 = vpack.c.b16 %v1998, %v1990
    %v2735 = vpack.c.b16 %v1999, %v1991
    %v2736 = vpack.c.b16 %v2000, %v1992
    %v2737 = vpack.c.b16 %v2001, %v1993
    %v2738 = vpack.c.b16 %v2010, %v2002
    %v2739 = vpack.c.b16 %v2011, %v2003
    %v2740 = vpack.c.b16 %v2012, %v2004
    %v2741 = vpack.c.b16 %v2013, %v2005
    %v2742 = vpack.c.b16 %v2014, %v2006
    %v2743 = vpack.c.b16 %v2015, %v2007
    %v2744 = vpack.c.b16 %v2016, %v2008
    %v2745 = vpack.c.b16 %v2017, %v2009
    %v2746 = vpack.c.b16 %v2026, %v2018
    %v2747 = vpack.c.b16 %v2027, %v2019
    %v2748 = vpack.c.b16 %v2028, %v2020
    %v2749 = vpack.c.b16 %v2029, %v2021
    %v2750 = vpack.c.b16 %v2030, %v2022
    %v2751 = vpack.c.b16 %v2031, %v2023
    %v2752 = vpack.c.b16 %v2032, %v2024
    %v2753 = vpack.c.b16 %v2033, %v2025
    %v2754 = vpack.c.b16 %v2042, %v2034
    %v2755 = vpack.c.b16 %v2043, %v2035
    %v2756 = vpack.c.b16 %v2044, %v2036
    %v2757 = vpack.c.b16 %v2045, %v2037
    %v2758 = vpack.c.b16 %v2046, %v2038
    %v2759 = vpack.c.b16 %v2047, %v2039
    %v2760 = vpack.c.b16 %v2048, %v2040
    %v2761 = vpack.c.b16 %v2049, %v2041
    %v2762 = vpack.c.b16 %v2058, %v2050
    %v2763 = vpack.c.b16 %v2059, %v2051
    %v2764 = vpack.c.b16 %v2060, %v2052
    %v2765 = vpack.c.b16 %v2061, %v2053
    %v2766 = vpack.c.b16 %v2062, %v2054
    %v2767 = vpack.c.b16 %v2063, %v2055
    %v2768 = vpack.c.b16 %v2064, %v2056
    %v2769 = vpack.c.b16 %v2065, %v2057
    %v2770 = vpack.c.b16 %v2074, %v2066
    %v2771 = vpack.c.b16 %v2075, %v2067
    %v2772 = vpack.c.b16 %v2076, %v2068
    %v2773 = vpack.c.b16 %v2077, %v2069
    %v2774 = vpack.c.b16 %v2078, %v2070
    %v2775 = vpack.c.b16 %v2079, %v2071
    %v2776 = vpack.c.b16 %v2080, %v2072
    %v2777 = vpack.c.b16 %v2081, %v2073
    %v2778 = vpack.c.b16 %v2090, %v2082
    %v2779 = vpack.c.b16 %v2091, %v2083
    %v2780 = vpack.c.b16 %v2092, %v2084
    %v2781 = vpack.c.b16 %v2093, %v2085
    %v2782 = vpack.c.b16 %v2094, %v2086
    %v2783 = vpack.c.b16 %v2095, %v2087
    %v2784 = vpack.c.b16 %v2096, %v2088
    %v2785 = vpack.c.b16 %v2097, %v2089
    %v2786 = vpack.c.b16 %v2106, %v2098
    %v2787 = vpack.c.b16 %v2107, %v2099
    %v2788 = vpack.c.b16 %v2108, %v2100
    %v2789 = vpack.c.b16 %v2109, %v2101
    %v2790 = vpack.c.b16 %v2110, %v2102
    %v2791 = vpack.c.b16 %v2111, %v2103
    %v2792 = vpack.c.b16 %v2112, %v2104
    %v2793 = vpack.c.b16 %v2113, %v2105
    %v2794 = vpack.c.b16 %v2122, %v2114
    %v2795 = vpack.c.b16 %v2123, %v2115
    %v2796 = vpack.c.b16 %v2124, %v2116
    %v2797 = vpack.c.b16 %v2125, %v2117
    %v2798 = vpack.c.b16 %v2126, %v2118
    %v2799 = vpack.c.b16 %v2127, %v2119
    %v2800 = vpack.c.b16 %v2128, %v2120
    %v2801 = vpack.c.b16 %v2129, %v2121
    %v2802 = vpack.c.b16 %v2138, %v2130
    %v2803 = vpack.c.b16 %v2139, %v2131
    %v2804 = vpack.c.b16 %v2140, %v2132
    %v2805 = vpack.c.b16 %v2141, %v2133
    %v2806 = vpack.c.b16 %v2142, %v2134
    %v2807 = vpack.c.b16 %v2143, %v2135
    %v2808 = vpack.c.b16 %v2144, %v2136
    %v2809 = vpack.c.b16 %v2145, %v2137
    %v2810 = vpack.c.b16 %v2154, %v2146
    %v2811 = vpack.c.b16 %v2155, %v2147
    %v2812 = vpack.c.b16 %v2156, %v2148
    %v2813 = vpack.c.b16 %v2157, %v2149
    %v2814 = vpack.c.b16 %v2158, %v2150
    %v2815 = vpack.c.b16 %v2159, %v2151
    %v2816 = vpack.c.b16 %v2160, %v2152
    %v2817 = vpack.c.b16 %v2161, %v2153
    %v2818 = vpack.c.b16 %v2170, %v2162
    %v2819 = vpack.c.b16 %v2171, %v2163
    %v2820 = vpack.c.b16 %v2172, %v2164
    %v2821 = vpack.c.b16 %v2173, %v2165
    %v2822 = vpack.c.b16 %v2174, %v2166
    %v2823 = vpack.c.b16 %v2175, %v2167
    %v2824 = vpack.c.b16 %v2176, %v2168
    %v2825 = vpack.c.b16 %v2177, %v2169
    %v2826 = vpack.c.b16 %v2186, %v2178
    %v2827 = vpack.c.b16 %v2187, %v2179
    %v2828 = vpack.c.b16 %v2188, %v2180
    %v2829 = vpack.c.b16 %v2189, %v2181
    %v2830 = vpack.c.b16 %v2190, %v2182
    %v2831 = vpack.c.b16 %v2191, %v2183
    %v2832 = vpack.c.b16 %v2192, %v2184
    %v2833 = vpack.c.b16 %v2193, %v2185
    %v2834 = vpack.c.b16 %v2202, %v2194
    %v2835 = vpack.c.b16 %v2203, %v2195
    %v2836 = vpack.c.b16 %v2204, %v2196
    %v2837 = vpack.c.b16 %v2205, %v2197
    %v2838 = vpack.c.b16 %v2206, %v2198
    %v2839 = vpack.c.b16 %v2207, %v2199
    %v2840 = vpack.c.b16 %v2208, %v2200
    %v2841 = vpack.c.b16 %v2209, %v2201
    %v2842 = vpack.c.b16 %v2218, %v2210
    %v2843 = vpack.c.b16 %v2219, %v2211
    %v2844 = vpack.c.b16 %v2220, %v2212
    %v2845 = vpack.c.b16 %v2221, %v2213
    %v2846 = vpack.c.b16 %v2222, %v2214
    %v2847 = vpack.c.b16 %v2223, %v2215
    %v2848 = vpack.c.b16 %v2224, %v2216
    %v2849 = vpack.c.b16 %v2225, %v2217
    %v2850 = vpack.c.b16 %v2234, %v2226
    %v2851 = vpack.c.b16 %v2235, %v2227
    %v2852 = vpack.c.b16 %v2236, %v2228
    %v2853 = vpack.c.b16 %v2237, %v2229
    %v2854 = vpack.c.b16 %v2238, %v2230
    %v2855 = vpack.c.b16 %v2239, %v2231
    %v2856 = vpack.c.b16 %v2240, %v2232
    %v2857 = vpack.c.b16 %v2241, %v2233
    %v2858 = vpack.c.b16 %v2250, %v2242
    %v2859 = vpack.c.b16 %v2251, %v2243
    %v2860 = vpack.c.b16 %v2252, %v2244
    %v2861 = vpack.c.b16 %v2253, %v2245
    %v2862 = vpack.c.b16 %v2254, %v2246
    %v2863 = vpack.c.b16 %v2255, %v2247
    %v2864 = vpack.c.b16 %v2256, %v2248
    %v2865 = vpack.c.b16 %v2257, %v2249
    %v2866 = vpack.c.b16 %v2266, %v2258
    %v2867 = vpack.c.b16 %v2267, %v2259
    %v2868 = vpack.c.b16 %v2268, %v2260
    %v2869 = vpack.c.b16 %v2269, %v2261
    %v2870 = vpack.c.b16 %v2270, %v2262
    %v2871 = vpack.c.b16 %v2271, %v2263
    %v2872 = vpack.c.b16 %v2272, %v2264
    %v2873 = vpack.c.b16 %v2273, %v2265
    %v2874 = vpack.c.b16 %v2282, %v2274
    %v2875 = vpack.c.b16 %v2283, %v2275
    %v2876 = vpack.c.b16 %v2284, %v2276
    %v2877 = vpack.c.b16 %v2285, %v2277
    %v2878 = vpack.c.b16 %v2286, %v2278
    %v2879 = vpack.c.b16 %v2287, %v2279
    %v2880 = vpack.c.b16 %v2288, %v2280
    %v2881 = vpack.c.b16 %v2289, %v2281
    %v2882 = vpack.c.b16 %v2298, %v2290
    %v2883 = vpack.c.b16 %v2299, %v2291
    %v2884 = vpack.c.b16 %v2300, %v2292
    %v2885 = vpack.c.b16 %v2301, %v2293
    %v2886 = vpack.c.b16 %v2302, %v2294
    %v2887 = vpack.c.b16 %v2303, %v2295
    %v2888 = vpack.c.b16 %v2304, %v2296
    %v2889 = vpack.c.b16 %v2305, %v2297
    %v2890 = vpack.c.b16 %v2314, %v2306
    %v2891 = vpack.c.b16 %v2315, %v2307
    %v2892 = vpack.c.b16 %v2316, %v2308
    %v2893 = vpack.c.b16 %v2317, %v2309
    %v2894 = vpack.c.b16 %v2318, %v2310
    %v2895 = vpack.c.b16 %v2319, %v2311
    %v2896 = vpack.c.b16 %v2320, %v2312
    %v2897 = vpack.c.b16 %v2321, %v2313
    %v2898 = vpack.c.b16 %v2330, %v2322
    %v2899 = vpack.c.b16 %v2331, %v2323
    %v2900 = vpack.c.b16 %v2332, %v2324
    %v2901 = vpack.c.b16 %v2333, %v2325
    %v2902 = vpack.c.b16 %v2334, %v2326
    %v2903 = vpack.c.b16 %v2335, %v2327
    %v2904 = vpack.c.b16 %v2336, %v2328
    %v2905 = vpack.c.b16 %v2337, %v2329
    %v2906 = vpack.c.b16 %v2346, %v2338
    %v2907 = vpack.c.b16 %v2347, %v2339
    %v2908 = vpack.c.b16 %v2348, %v2340
    %v2909 = vpack.c.b16 %v2349, %v2341
    %v2910 = vpack.c.b16 %v2350, %v2342
    %v2911 = vpack.c.b16 %v2351, %v2343
    %v2912 = vpack.c.b16 %v2352, %v2344
    %v2913 = vpack.c.b16 %v2353, %v2345
    %v2914 = vpack.c.b16 %v2362, %v2354
    %v2915 = vpack.c.b16 %v2363, %v2355
    %v2916 = vpack.c.b16 %v2364, %v2356
    %v2917 = vpack.c.b16 %v2365, %v2357
    %v2918 = vpack.c.b16 %v2366, %v2358
    %v2919 = vpack.c.b16 %v2367, %v2359
    %v2920 = vpack.c.b16 %v2368, %v2360
    %v2921 = vpack.c.b16 %v2369, %v2361
    %v2922 = vpack.c.b16 %v2378, %v2370
    %v2923 = vpack.c.b16 %v2379, %v2371
    %v2924 = vpack.c.b16 %v2380, %v2372
    %v2925 = vpack.c.b16 %v2381, %v2373
    %v2926 = vpack.c.b16 %v2382, %v2374
    %v2927 = vpack.c.b16 %v2383, %v2375
    %v2928 = vpack.c.b16 %v2384, %v2376
    %v2929 = vpack.c.b16 %v2385, %v2377
    %v2930 = vpack.c.b16 %v2394, %v2386
    %v2931 = vpack.c.b16 %v2395, %v2387
    %v2932 = vpack.c.b16 %v2396, %v2388
    %v2933 = vpack.c.b16 %v2397, %v2389
    %v2934 = vpack.c.b16 %v2398, %v2390
    %v2935 = vpack.c.b16 %v2399, %v2391
    %v2936 = vpack.c.b16 %v2400, %v2392
    %v2937 = vpack.c.b16 %v2401, %v2393
    %v2938 = vpack.c.b16 %v2410, %v2402
    %v2939 = vpack.c.b16 %v2411, %v2403
    %v2940 = vpack.c.b16 %v2412, %v2404
    %v2941 = vpack.c.b16 %v2413, %v2405
    %v2942 = vpack.c.b16 %v2414, %v2406
    %v2943 = vpack.c.b16 %v2415, %v2407
    %v2944 = vpack.c.b16 %v2416, %v2408
    %v2945 = vpack.c.b16 %v2417, %v2409
    %v2946 = vpack.c.b16 %v2426, %v2418
    %v2947 = vpack.c.b16 %v2427, %v2419
    %v2948 = vpack.c.b16 %v2428, %v2420
    %v2949 = vpack.c.b16 %v2429, %v2421
    %v2950 = vpack.c.b16 %v2430, %v2422
    %v2951 = vpack.c.b16 %v2431, %v2423
    %v2952 = vpack.c.b16 %v2432, %v2424
    %v2953 = vpack.c.b16 %v2433, %v2425
    %v2954 = vpack.c.b16 %v2442, %v2434
    %v2955 = vpack.c.b16 %v2443, %v2435
    %v2956 = vpack.c.b16 %v2444, %v2436
    %v2957 = vpack.c.b16 %v2445, %v2437
    %v2958 = vpack.c.b16 %v2446, %v2438
    %v2959 = vpack.c.b16 %v2447, %v2439
    %v2960 = vpack.c.b16 %v2448, %v2440
    %v2961 = vpack.c.b16 %v2449, %v2441
    %3474 = vmatpush.bf16.msra.mxu0 %v2506
    %3475 = vmatpush.bf16.msra.mxu0 %v2498
    %3476 = vmatpush.bf16.msra.mxu0 %v2490
    %3477 = vmatpush.bf16.msra.mxu0 %v2482
    %3478 = vmatpush.bf16.msra.mxu0 %v2474
    %3479 = vmatpush.bf16.msra.mxu0 %v2466
    %3480 = vmatpush.bf16.msra.mxu0 %v2458
    %3481 = vmatpush.bf16.msra.mxu0 %v2450
    %3482 = vmatmul.bf16.gmra.mxu0 %v376
    %v3483 = vpop.f32.mrf.mxu0
    %v3484 = vadd.f32 %v898, %v3483
    %v3485 = vpop.f32.mrf.mxu0
    %3486 = vdwg.mxu0
    %3487 = vmatpush.bf16.msra.mxu0 %v2570
    %3488 = vmatpush.bf16.msra.mxu0 %v2562
    %3489 = vmatpush.bf16.msra.mxu0 %v2554
    %3490 = vmatpush.bf16.msra.mxu0 %v2546
    %3491 = vmatpush.bf16.msra.mxu0 %v2538
    %3492 = vmatpush.bf16.msra.mxu0 %v2530
    %3493 = vmatpush.bf16.msra.mxu0 %v2522
    %3494 = vmatpush.bf16.msra.mxu0 %v2514
    %3495 = vmatmul.bf16.gmra.mxu0 %v377
    %v3496 = vpop.f32.mrf.mxu0
    %v3497 = vadd.f32 %v3484, %v3496
    %v3498 = vpop.f32.mrf.mxu0
    %3499 = vdwg.mxu0
    %3500 = vmatpush.bf16.msra.mxu0 %v2634
    %3501 = vmatpush.bf16.msra.mxu0 %v2626
    %3502 = vmatpush.bf16.msra.mxu0 %v2618
    %3503 = vmatpush.bf16.msra.mxu0 %v2610
    %3504 = vmatpush.bf16.msra.mxu0 %v2602
    %3505 = vmatpush.bf16.msra.mxu0 %v2594
    %3506 = vmatpush.bf16.msra.mxu0 %v2586
    %3507 = vmatpush.bf16.msra.mxu0 %v2578
    %3508 = vmatmul.bf16.gmra.mxu0 %v378
    %v3509 = vpop.f32.mrf.mxu0
    %v3510 = vadd.f32 %v3497, %v3509
    %v3511 = vpop.f32.mrf.mxu0
    %3512 = vdwg.mxu0
    %3513 = vmatpush.bf16.msra.mxu0 %v2698
    %3514 = vmatpush.bf16.msra.mxu0 %v2690
    %3515 = vmatpush.bf16.msra.mxu0 %v2682
    %3516 = vmatpush.bf16.msra.mxu0 %v2674
    %3517 = vmatpush.bf16.msra.mxu0 %v2666
    %3518 = vmatpush.bf16.msra.mxu0 %v2658
    %3519 = vmatpush.bf16.msra.mxu0 %v2650
    %3520 = vmatpush.bf16.msra.mxu0 %v2642
    %3521 = vmatmul.bf16.gmra.mxu0 %v379
    %v3522 = vpop.f32.mrf.mxu0
    %v3523 = vadd.f32 %v3510, %v3522
    %v3524 = vpop.f32.mrf.mxu0
    %3525 = vdwg.mxu0
    %3526 = vmatpush.bf16.msra.mxu0 %v2762
    %3527 = vmatpush.bf16.msra.mxu0 %v2754
    %3528 = vmatpush.bf16.msra.mxu0 %v2746
    %3529 = vmatpush.bf16.msra.mxu0 %v2738
    %3530 = vmatpush.bf16.msra.mxu0 %v2730
    %3531 = vmatpush.bf16.msra.mxu0 %v2722
    %3532 = vmatpush.bf16.msra.mxu0 %v2714
    %3533 = vmatpush.bf16.msra.mxu0 %v2706
    %3534 = vmatmul.bf16.gmra.mxu0 %v380
    %v3535 = vpop.f32.mrf.mxu0
    %v3536 = vadd.f32 %v3523, %v3535
    %v3537 = vpop.f32.mrf.mxu0
    %3538 = vdwg.mxu0
    %3539 = vmatpush.bf16.msra.mxu0 %v2826
    %3540 = vmatpush.bf16.msra.mxu0 %v2818
    %3541 = vmatpush.bf16.msra.mxu0 %v2810
    %3542 = vmatpush.bf16.msra.mxu0 %v2802
    %3543 = vmatpush.bf16.msra.mxu0 %v2794
    %3544 = vmatpush.bf16.msra.mxu0 %v2786
    %3545 = vmatpush.bf16.msra.mxu0 %v2778
    %3546 = vmatpush.bf16.msra.mxu0 %v2770
    %3547 = vmatmul.bf16.gmra.mxu0 %v381
    %v3548 = vpop.f32.mrf.mxu0
    %v3549 = vadd.f32 %v3536, %v3548
    %v3550 = vpop.f32.mrf.mxu0
    %3551 = vdwg.mxu0
    %3552 = vmatpush.bf16.msra.mxu0 %v2890
    %3553 = vmatpush.bf16.msra.mxu0 %v2882
    %3554 = vmatpush.bf16.msra.mxu0 %v2874
    %3555 = vmatpush.bf16.msra.mxu0 %v2866
    %3556 = vmatpush.bf16.msra.mxu0 %v2858
    %3557 = vmatpush.bf16.msra.mxu0 %v2850
    %3558 = vmatpush.bf16.msra.mxu0 %v2842
    %3559 = vmatpush.bf16.msra.mxu0 %v2834
    %3560 = vmatmul.bf16.gmra.mxu0 %v382
    %v3561 = vpop.f32.mrf.mxu0
    %v3562 = vadd.f32 %v3549, %v3561
    %v3563 = vpop.f32.mrf.mxu0
    %3564 = vdwg.mxu0
    %3565 = vmatpush.bf16.msra.mxu0 %v2954
    %3566 = vmatpush.bf16.msra.mxu0 %v2946
    %3567 = vmatpush.bf16.msra.mxu0 %v2938
    %3568 = vmatpush.bf16.msra.mxu0 %v2930
    %3569 = vmatpush.bf16.msra.mxu0 %v2922
    %3570 = vmatpush.bf16.msra.mxu0 %v2914
    %3571 = vmatpush.bf16.msra.mxu0 %v2906
    %3572 = vmatpush.bf16.msra.mxu0 %v2898
    %3573 = vmatmul.bf16.gmra.mxu0 %v383
    %v3574 = vpop.f32.mrf.mxu0
    %v3575 = vadd.f32 %v3562, %v3574
    %v3576 = vpop.f32.mrf.mxu0
    %3577 = vdwg.mxu0
    %3578 = vmatpush.bf16.msra.mxu0 %v2507
    %3579 = vmatpush.bf16.msra.mxu0 %v2499
    %3580 = vmatpush.bf16.msra.mxu0 %v2491
    %3581 = vmatpush.bf16.msra.mxu0 %v2483
    %3582 = vmatpush.bf16.msra.mxu0 %v2475
    %3583 = vmatpush.bf16.msra.mxu0 %v2467
    %3584 = vmatpush.bf16.msra.mxu0 %v2459
    %3585 = vmatpush.bf16.msra.mxu0 %v2451
    %3586 = vmatmul.bf16.gmra.mxu0 %v376
    %v3587 = vpop.f32.mrf.mxu0
    %v3588 = vadd.f32 %v899, %v3587
    %v3589 = vpop.f32.mrf.mxu0
    %3590 = vdwg.mxu0
    %3591 = vmatpush.bf16.msra.mxu0 %v2571
    %3592 = vmatpush.bf16.msra.mxu0 %v2563
    %3593 = vmatpush.bf16.msra.mxu0 %v2555
    %3594 = vmatpush.bf16.msra.mxu0 %v2547
    %3595 = vmatpush.bf16.msra.mxu0 %v2539
    %3596 = vmatpush.bf16.msra.mxu0 %v2531
    %3597 = vmatpush.bf16.msra.mxu0 %v2523
    %3598 = vmatpush.bf16.msra.mxu0 %v2515
    %3599 = vmatmul.bf16.gmra.mxu0 %v377
    %v3600 = vpop.f32.mrf.mxu0
    %v3601 = vadd.f32 %v3588, %v3600
    %v3602 = vpop.f32.mrf.mxu0
    %3603 = vdwg.mxu0
    %3604 = vmatpush.bf16.msra.mxu0 %v2635
    %3605 = vmatpush.bf16.msra.mxu0 %v2627
    %3606 = vmatpush.bf16.msra.mxu0 %v2619
    %3607 = vmatpush.bf16.msra.mxu0 %v2611
    %3608 = vmatpush.bf16.msra.mxu0 %v2603
    %3609 = vmatpush.bf16.msra.mxu0 %v2595
    %3610 = vmatpush.bf16.msra.mxu0 %v2587
    %3611 = vmatpush.bf16.msra.mxu0 %v2579
    %3612 = vmatmul.bf16.gmra.mxu0 %v378
    %v3613 = vpop.f32.mrf.mxu0
    %v3614 = vadd.f32 %v3601, %v3613
    %v3615 = vpop.f32.mrf.mxu0
    %3616 = vdwg.mxu0
    %3617 = vmatpush.bf16.msra.mxu0 %v2699
    %3618 = vmatpush.bf16.msra.mxu0 %v2691
    %3619 = vmatpush.bf16.msra.mxu0 %v2683
    %3620 = vmatpush.bf16.msra.mxu0 %v2675
    %3621 = vmatpush.bf16.msra.mxu0 %v2667
    %3622 = vmatpush.bf16.msra.mxu0 %v2659
    %3623 = vmatpush.bf16.msra.mxu0 %v2651
    %3624 = vmatpush.bf16.msra.mxu0 %v2643
    %3625 = vmatmul.bf16.gmra.mxu0 %v379
    %v3626 = vpop.f32.mrf.mxu0
    %v3627 = vadd.f32 %v3614, %v3626
    %v3628 = vpop.f32.mrf.mxu0
    %3629 = vdwg.mxu0
    %3630 = vmatpush.bf16.msra.mxu0 %v2763
    %3631 = vmatpush.bf16.msra.mxu0 %v2755
    %3632 = vmatpush.bf16.msra.mxu0 %v2747
    %3633 = vmatpush.bf16.msra.mxu0 %v2739
    %3634 = vmatpush.bf16.msra.mxu0 %v2731
    %3635 = vmatpush.bf16.msra.mxu0 %v2723
    %3636 = vmatpush.bf16.msra.mxu0 %v2715
    %3637 = vmatpush.bf16.msra.mxu0 %v2707
    %3638 = vmatmul.bf16.gmra.mxu0 %v380
    %v3639 = vpop.f32.mrf.mxu0
    %v3640 = vadd.f32 %v3627, %v3639
    %v3641 = vpop.f32.mrf.mxu0
    %3642 = vdwg.mxu0
    %3643 = vmatpush.bf16.msra.mxu0 %v2827
    %3644 = vmatpush.bf16.msra.mxu0 %v2819
    %3645 = vmatpush.bf16.msra.mxu0 %v2811
    %3646 = vmatpush.bf16.msra.mxu0 %v2803
    %3647 = vmatpush.bf16.msra.mxu0 %v2795
    %3648 = vmatpush.bf16.msra.mxu0 %v2787
    %3649 = vmatpush.bf16.msra.mxu0 %v2779
    %3650 = vmatpush.bf16.msra.mxu0 %v2771
    %3651 = vmatmul.bf16.gmra.mxu0 %v381
    %v3652 = vpop.f32.mrf.mxu0
    %v3653 = vadd.f32 %v3640, %v3652
    %v3654 = vpop.f32.mrf.mxu0
    %3655 = vdwg.mxu0
    %3656 = vmatpush.bf16.msra.mxu0 %v2891
    %3657 = vmatpush.bf16.msra.mxu0 %v2883
    %3658 = vmatpush.bf16.msra.mxu0 %v2875
    %3659 = vmatpush.bf16.msra.mxu0 %v2867
    %3660 = vmatpush.bf16.msra.mxu0 %v2859
    %3661 = vmatpush.bf16.msra.mxu0 %v2851
    %3662 = vmatpush.bf16.msra.mxu0 %v2843
    %3663 = vmatpush.bf16.msra.mxu0 %v2835
    %3664 = vmatmul.bf16.gmra.mxu0 %v382
    %v3665 = vpop.f32.mrf.mxu0
    %v3666 = vadd.f32 %v3653, %v3665
    %v3667 = vpop.f32.mrf.mxu0
    %3668 = vdwg.mxu0
    %3669 = vmatpush.bf16.msra.mxu0 %v2955
    %3670 = vmatpush.bf16.msra.mxu0 %v2947
    %3671 = vmatpush.bf16.msra.mxu0 %v2939
    %3672 = vmatpush.bf16.msra.mxu0 %v2931
    %3673 = vmatpush.bf16.msra.mxu0 %v2923
    %3674 = vmatpush.bf16.msra.mxu0 %v2915
    %3675 = vmatpush.bf16.msra.mxu0 %v2907
    %3676 = vmatpush.bf16.msra.mxu0 %v2899
    %3677 = vmatmul.bf16.gmra.mxu0 %v383
    %v3678 = vpop.f32.mrf.mxu0
    %v3679 = vadd.f32 %v3666, %v3678
    %v3680 = vpop.f32.mrf.mxu0
    %3681 = vdwg.mxu0
    %3682 = vmatpush.bf16.msra.mxu0 %v2508
    %3683 = vmatpush.bf16.msra.mxu0 %v2500
    %3684 = vmatpush.bf16.msra.mxu0 %v2492
    %3685 = vmatpush.bf16.msra.mxu0 %v2484
    %3686 = vmatpush.bf16.msra.mxu0 %v2476
    %3687 = vmatpush.bf16.msra.mxu0 %v2468
    %3688 = vmatpush.bf16.msra.mxu0 %v2460
    %3689 = vmatpush.bf16.msra.mxu0 %v2452
    %3690 = vmatmul.bf16.gmra.mxu0 %v376
    %v3691 = vpop.f32.mrf.mxu0
    %v3692 = vadd.f32 %v900, %v3691
    %v3693 = vpop.f32.mrf.mxu0
    %3694 = vdwg.mxu0
    %3695 = vmatpush.bf16.msra.mxu0 %v2572
    %3696 = vmatpush.bf16.msra.mxu0 %v2564
    %3697 = vmatpush.bf16.msra.mxu0 %v2556
    %3698 = vmatpush.bf16.msra.mxu0 %v2548
    %3699 = vmatpush.bf16.msra.mxu0 %v2540
    %3700 = vmatpush.bf16.msra.mxu0 %v2532
    %3701 = vmatpush.bf16.msra.mxu0 %v2524
    %3702 = vmatpush.bf16.msra.mxu0 %v2516
    %3703 = vmatmul.bf16.gmra.mxu0 %v377
    %v3704 = vpop.f32.mrf.mxu0
    %v3705 = vadd.f32 %v3692, %v3704
    %v3706 = vpop.f32.mrf.mxu0
    %3707 = vdwg.mxu0
    %3708 = vmatpush.bf16.msra.mxu0 %v2636
    %3709 = vmatpush.bf16.msra.mxu0 %v2628
    %3710 = vmatpush.bf16.msra.mxu0 %v2620
    %3711 = vmatpush.bf16.msra.mxu0 %v2612
    %3712 = vmatpush.bf16.msra.mxu0 %v2604
    %3713 = vmatpush.bf16.msra.mxu0 %v2596
    %3714 = vmatpush.bf16.msra.mxu0 %v2588
    %3715 = vmatpush.bf16.msra.mxu0 %v2580
    %3716 = vmatmul.bf16.gmra.mxu0 %v378
    %v3717 = vpop.f32.mrf.mxu0
    %v3718 = vadd.f32 %v3705, %v3717
    %v3719 = vpop.f32.mrf.mxu0
    %3720 = vdwg.mxu0
    %3721 = vmatpush.bf16.msra.mxu0 %v2700
    %3722 = vmatpush.bf16.msra.mxu0 %v2692
    %3723 = vmatpush.bf16.msra.mxu0 %v2684
    %3724 = vmatpush.bf16.msra.mxu0 %v2676
    %3725 = vmatpush.bf16.msra.mxu0 %v2668
    %3726 = vmatpush.bf16.msra.mxu0 %v2660
    %3727 = vmatpush.bf16.msra.mxu0 %v2652
    %3728 = vmatpush.bf16.msra.mxu0 %v2644
    %3729 = vmatmul.bf16.gmra.mxu0 %v379
    %v3730 = vpop.f32.mrf.mxu0
    %v3731 = vadd.f32 %v3718, %v3730
    %v3732 = vpop.f32.mrf.mxu0
    %3733 = vdwg.mxu0
    %3734 = vmatpush.bf16.msra.mxu0 %v2764
    %3735 = vmatpush.bf16.msra.mxu0 %v2756
    %3736 = vmatpush.bf16.msra.mxu0 %v2748
    %3737 = vmatpush.bf16.msra.mxu0 %v2740
    %3738 = vmatpush.bf16.msra.mxu0 %v2732
    %3739 = vmatpush.bf16.msra.mxu0 %v2724
    %3740 = vmatpush.bf16.msra.mxu0 %v2716
    %3741 = vmatpush.bf16.msra.mxu0 %v2708
    %3742 = vmatmul.bf16.gmra.mxu0 %v380
    %v3743 = vpop.f32.mrf.mxu0
    %v3744 = vadd.f32 %v3731, %v3743
    %v3745 = vpop.f32.mrf.mxu0
    %3746 = vdwg.mxu0
    %3747 = vmatpush.bf16.msra.mxu0 %v2828
    %3748 = vmatpush.bf16.msra.mxu0 %v2820
    %3749 = vmatpush.bf16.msra.mxu0 %v2812
    %3750 = vmatpush.bf16.msra.mxu0 %v2804
    %3751 = vmatpush.bf16.msra.mxu0 %v2796
    %3752 = vmatpush.bf16.msra.mxu0 %v2788
    %3753 = vmatpush.bf16.msra.mxu0 %v2780
    %3754 = vmatpush.bf16.msra.mxu0 %v2772
    %3755 = vmatmul.bf16.gmra.mxu0 %v381
    %v3756 = vpop.f32.mrf.mxu0
    %v3757 = vadd.f32 %v3744, %v3756
    %v3758 = vpop.f32.mrf.mxu0
    %3759 = vdwg.mxu0
    %3760 = vmatpush.bf16.msra.mxu0 %v2892
    %3761 = vmatpush.bf16.msra.mxu0 %v2884
    %3762 = vmatpush.bf16.msra.mxu0 %v2876
    %3763 = vmatpush.bf16.msra.mxu0 %v2868
    %3764 = vmatpush.bf16.msra.mxu0 %v2860
    %3765 = vmatpush.bf16.msra.mxu0 %v2852
    %3766 = vmatpush.bf16.msra.mxu0 %v2844
    %3767 = vmatpush.bf16.msra.mxu0 %v2836
    %3768 = vmatmul.bf16.gmra.mxu0 %v382
    %v3769 = vpop.f32.mrf.mxu0
    %v3770 = vadd.f32 %v3757, %v3769
    %v3771 = vpop.f32.mrf.mxu0
    %3772 = vdwg.mxu0
    %3773 = vmatpush.bf16.msra.mxu0 %v2956
    %3774 = vmatpush.bf16.msra.mxu0 %v2948
    %3775 = vmatpush.bf16.msra.mxu0 %v2940
    %3776 = vmatpush.bf16.msra.mxu0 %v2932
    %3777 = vmatpush.bf16.msra.mxu0 %v2924
    %3778 = vmatpush.bf16.msra.mxu0 %v2916
    %3779 = vmatpush.bf16.msra.mxu0 %v2908
    %3780 = vmatpush.bf16.msra.mxu0 %v2900
    %3781 = vmatmul.bf16.gmra.mxu0 %v383
    %v3782 = vpop.f32.mrf.mxu0
    %v3783 = vadd.f32 %v3770, %v3782
    %v3784 = vpop.f32.mrf.mxu0
    %3785 = vdwg.mxu0
    %3786 = vmatpush.bf16.msra.mxu0 %v2509
    %3787 = vmatpush.bf16.msra.mxu0 %v2501
    %3788 = vmatpush.bf16.msra.mxu0 %v2493
    %3789 = vmatpush.bf16.msra.mxu0 %v2485
    %3790 = vmatpush.bf16.msra.mxu0 %v2477
    %3791 = vmatpush.bf16.msra.mxu0 %v2469
    %3792 = vmatpush.bf16.msra.mxu0 %v2461
    %3793 = vmatpush.bf16.msra.mxu0 %v2453
    %3794 = vmatmul.bf16.gmra.mxu0 %v376
    %v3795 = vpop.f32.mrf.mxu0
    %v3796 = vadd.f32 %v901, %v3795
    %v3797 = vpop.f32.mrf.mxu0
    %3798 = vdwg.mxu0
    %3799 = vmatpush.bf16.msra.mxu0 %v2573
    %3800 = vmatpush.bf16.msra.mxu0 %v2565
    %3801 = vmatpush.bf16.msra.mxu0 %v2557
    %3802 = vmatpush.bf16.msra.mxu0 %v2549
    %3803 = vmatpush.bf16.msra.mxu0 %v2541
    %3804 = vmatpush.bf16.msra.mxu0 %v2533
    %3805 = vmatpush.bf16.msra.mxu0 %v2525
    %3806 = vmatpush.bf16.msra.mxu0 %v2517
    %3807 = vmatmul.bf16.gmra.mxu0 %v377
    %v3808 = vpop.f32.mrf.mxu0
    %v3809 = vadd.f32 %v3796, %v3808
    %v3810 = vpop.f32.mrf.mxu0
    %3811 = vdwg.mxu0
    %3812 = vmatpush.bf16.msra.mxu0 %v2637
    %3813 = vmatpush.bf16.msra.mxu0 %v2629
    %3814 = vmatpush.bf16.msra.mxu0 %v2621
    %3815 = vmatpush.bf16.msra.mxu0 %v2613
    %3816 = vmatpush.bf16.msra.mxu0 %v2605
    %3817 = vmatpush.bf16.msra.mxu0 %v2597
    %3818 = vmatpush.bf16.msra.mxu0 %v2589
    %3819 = vmatpush.bf16.msra.mxu0 %v2581
    %3820 = vmatmul.bf16.gmra.mxu0 %v378
    %v3821 = vpop.f32.mrf.mxu0
    %v3822 = vadd.f32 %v3809, %v3821
    %v3823 = vpop.f32.mrf.mxu0
    %3824 = vdwg.mxu0
    %3825 = vmatpush.bf16.msra.mxu0 %v2701
    %3826 = vmatpush.bf16.msra.mxu0 %v2693
    %3827 = vmatpush.bf16.msra.mxu0 %v2685
    %3828 = vmatpush.bf16.msra.mxu0 %v2677
    %3829 = vmatpush.bf16.msra.mxu0 %v2669
    %3830 = vmatpush.bf16.msra.mxu0 %v2661
    %3831 = vmatpush.bf16.msra.mxu0 %v2653
    %3832 = vmatpush.bf16.msra.mxu0 %v2645
    %3833 = vmatmul.bf16.gmra.mxu0 %v379
    %v3834 = vpop.f32.mrf.mxu0
    %v3835 = vadd.f32 %v3822, %v3834
    %v3836 = vpop.f32.mrf.mxu0
    %3837 = vdwg.mxu0
    %3838 = vmatpush.bf16.msra.mxu0 %v2765
    %3839 = vmatpush.bf16.msra.mxu0 %v2757
    %3840 = vmatpush.bf16.msra.mxu0 %v2749
    %3841 = vmatpush.bf16.msra.mxu0 %v2741
    %3842 = vmatpush.bf16.msra.mxu0 %v2733
    %3843 = vmatpush.bf16.msra.mxu0 %v2725
    %3844 = vmatpush.bf16.msra.mxu0 %v2717
    %3845 = vmatpush.bf16.msra.mxu0 %v2709
    %3846 = vmatmul.bf16.gmra.mxu0 %v380
    %v3847 = vpop.f32.mrf.mxu0
    %v3848 = vadd.f32 %v3835, %v3847
    %v3849 = vpop.f32.mrf.mxu0
    %3850 = vdwg.mxu0
    %3851 = vmatpush.bf16.msra.mxu0 %v2829
    %3852 = vmatpush.bf16.msra.mxu0 %v2821
    %3853 = vmatpush.bf16.msra.mxu0 %v2813
    %3854 = vmatpush.bf16.msra.mxu0 %v2805
    %3855 = vmatpush.bf16.msra.mxu0 %v2797
    %3856 = vmatpush.bf16.msra.mxu0 %v2789
    %3857 = vmatpush.bf16.msra.mxu0 %v2781
    %3858 = vmatpush.bf16.msra.mxu0 %v2773
    %3859 = vmatmul.bf16.gmra.mxu0 %v381
    %v3860 = vpop.f32.mrf.mxu0
    %v3861 = vadd.f32 %v3848, %v3860
    %v3862 = vpop.f32.mrf.mxu0
    %3863 = vdwg.mxu0
    %3864 = vmatpush.bf16.msra.mxu0 %v2893
    %3865 = vmatpush.bf16.msra.mxu0 %v2885
    %3866 = vmatpush.bf16.msra.mxu0 %v2877
    %3867 = vmatpush.bf16.msra.mxu0 %v2869
    %3868 = vmatpush.bf16.msra.mxu0 %v2861
    %3869 = vmatpush.bf16.msra.mxu0 %v2853
    %3870 = vmatpush.bf16.msra.mxu0 %v2845
    %3871 = vmatpush.bf16.msra.mxu0 %v2837
    %3872 = vmatmul.bf16.gmra.mxu0 %v382
    %v3873 = vpop.f32.mrf.mxu0
    %v3874 = vadd.f32 %v3861, %v3873
    %v3875 = vpop.f32.mrf.mxu0
    %3876 = vdwg.mxu0
    %3877 = vmatpush.bf16.msra.mxu0 %v2957
    %3878 = vmatpush.bf16.msra.mxu0 %v2949
    %3879 = vmatpush.bf16.msra.mxu0 %v2941
    %3880 = vmatpush.bf16.msra.mxu0 %v2933
    %3881 = vmatpush.bf16.msra.mxu0 %v2925
    %3882 = vmatpush.bf16.msra.mxu0 %v2917
    %3883 = vmatpush.bf16.msra.mxu0 %v2909
    %3884 = vmatpush.bf16.msra.mxu0 %v2901
    %3885 = vmatmul.bf16.gmra.mxu0 %v383
    %v3886 = vpop.f32.mrf.mxu0
    %v3887 = vadd.f32 %v3874, %v3886
    %v3888 = vpop.f32.mrf.mxu0
    %3889 = vdwg.mxu0
    %3890 = vmatpush.bf16.msra.mxu0 %v2510
    %3891 = vmatpush.bf16.msra.mxu0 %v2502
    %3892 = vmatpush.bf16.msra.mxu0 %v2494
    %3893 = vmatpush.bf16.msra.mxu0 %v2486
    %3894 = vmatpush.bf16.msra.mxu0 %v2478
    %3895 = vmatpush.bf16.msra.mxu0 %v2470
    %3896 = vmatpush.bf16.msra.mxu0 %v2462
    %3897 = vmatpush.bf16.msra.mxu0 %v2454
    %3898 = vmatmul.bf16.gmra.mxu0 %v376
    %v3899 = vpop.f32.mrf.mxu0
    %v3900 = vadd.f32 %v902, %v3899
    %v3901 = vpop.f32.mrf.mxu0
    %3902 = vdwg.mxu0
    %3903 = vmatpush.bf16.msra.mxu0 %v2574
    %3904 = vmatpush.bf16.msra.mxu0 %v2566
    %3905 = vmatpush.bf16.msra.mxu0 %v2558
    %3906 = vmatpush.bf16.msra.mxu0 %v2550
    %3907 = vmatpush.bf16.msra.mxu0 %v2542
    %3908 = vmatpush.bf16.msra.mxu0 %v2534
    %3909 = vmatpush.bf16.msra.mxu0 %v2526
    %3910 = vmatpush.bf16.msra.mxu0 %v2518
    %3911 = vmatmul.bf16.gmra.mxu0 %v377
    %v3912 = vpop.f32.mrf.mxu0
    %v3913 = vadd.f32 %v3900, %v3912
    %v3914 = vpop.f32.mrf.mxu0
    %3915 = vdwg.mxu0
    %3916 = vmatpush.bf16.msra.mxu0 %v2638
    %3917 = vmatpush.bf16.msra.mxu0 %v2630
    %3918 = vmatpush.bf16.msra.mxu0 %v2622
    %3919 = vmatpush.bf16.msra.mxu0 %v2614
    %3920 = vmatpush.bf16.msra.mxu0 %v2606
    %3921 = vmatpush.bf16.msra.mxu0 %v2598
    %3922 = vmatpush.bf16.msra.mxu0 %v2590
    %3923 = vmatpush.bf16.msra.mxu0 %v2582
    %3924 = vmatmul.bf16.gmra.mxu0 %v378
    %v3925 = vpop.f32.mrf.mxu0
    %v3926 = vadd.f32 %v3913, %v3925
    %v3927 = vpop.f32.mrf.mxu0
    %3928 = vdwg.mxu0
    %3929 = vmatpush.bf16.msra.mxu0 %v2702
    %3930 = vmatpush.bf16.msra.mxu0 %v2694
    %3931 = vmatpush.bf16.msra.mxu0 %v2686
    %3932 = vmatpush.bf16.msra.mxu0 %v2678
    %3933 = vmatpush.bf16.msra.mxu0 %v2670
    %3934 = vmatpush.bf16.msra.mxu0 %v2662
    %3935 = vmatpush.bf16.msra.mxu0 %v2654
    %3936 = vmatpush.bf16.msra.mxu0 %v2646
    %3937 = vmatmul.bf16.gmra.mxu0 %v379
    %v3938 = vpop.f32.mrf.mxu0
    %v3939 = vadd.f32 %v3926, %v3938
    %v3940 = vpop.f32.mrf.mxu0
    %3941 = vdwg.mxu0
    %3942 = vmatpush.bf16.msra.mxu0 %v2766
    %3943 = vmatpush.bf16.msra.mxu0 %v2758
    %3944 = vmatpush.bf16.msra.mxu0 %v2750
    %3945 = vmatpush.bf16.msra.mxu0 %v2742
    %3946 = vmatpush.bf16.msra.mxu0 %v2734
    %3947 = vmatpush.bf16.msra.mxu0 %v2726
    %3948 = vmatpush.bf16.msra.mxu0 %v2718
    %3949 = vmatpush.bf16.msra.mxu0 %v2710
    %3950 = vmatmul.bf16.gmra.mxu0 %v380
    %v3951 = vpop.f32.mrf.mxu0
    %v3952 = vadd.f32 %v3939, %v3951
    %v3953 = vpop.f32.mrf.mxu0
    %3954 = vdwg.mxu0
    %3955 = vmatpush.bf16.msra.mxu0 %v2830
    %3956 = vmatpush.bf16.msra.mxu0 %v2822
    %3957 = vmatpush.bf16.msra.mxu0 %v2814
    %3958 = vmatpush.bf16.msra.mxu0 %v2806
    %3959 = vmatpush.bf16.msra.mxu0 %v2798
    %3960 = vmatpush.bf16.msra.mxu0 %v2790
    %3961 = vmatpush.bf16.msra.mxu0 %v2782
    %3962 = vmatpush.bf16.msra.mxu0 %v2774
    %3963 = vmatmul.bf16.gmra.mxu0 %v381
    %v3964 = vpop.f32.mrf.mxu0
    %v3965 = vadd.f32 %v3952, %v3964
    %v3966 = vpop.f32.mrf.mxu0
    %3967 = vdwg.mxu0
    %3968 = vmatpush.bf16.msra.mxu0 %v2894
    %3969 = vmatpush.bf16.msra.mxu0 %v2886
    %3970 = vmatpush.bf16.msra.mxu0 %v2878
    %3971 = vmatpush.bf16.msra.mxu0 %v2870
    %3972 = vmatpush.bf16.msra.mxu0 %v2862
    %3973 = vmatpush.bf16.msra.mxu0 %v2854
    %3974 = vmatpush.bf16.msra.mxu0 %v2846
    %3975 = vmatpush.bf16.msra.mxu0 %v2838
    %3976 = vmatmul.bf16.gmra.mxu0 %v382
    %v3977 = vpop.f32.mrf.mxu0
    %v3978 = vadd.f32 %v3965, %v3977
    %v3979 = vpop.f32.mrf.mxu0
    %3980 = vdwg.mxu0
    %3981 = vmatpush.bf16.msra.mxu0 %v2958
    %3982 = vmatpush.bf16.msra.mxu0 %v2950
    %3983 = vmatpush.bf16.msra.mxu0 %v2942
    %3984 = vmatpush.bf16.msra.mxu0 %v2934
    %3985 = vmatpush.bf16.msra.mxu0 %v2926
    %3986 = vmatpush.bf16.msra.mxu0 %v2918
    %3987 = vmatpush.bf16.msra.mxu0 %v2910
    %3988 = vmatpush.bf16.msra.mxu0 %v2902
    %3989 = vmatmul.bf16.gmra.mxu0 %v383
    %v3990 = vpop.f32.mrf.mxu0
    %v3991 = vadd.f32 %v3978, %v3990
    %v3992 = vpop.f32.mrf.mxu0
    %3993 = vdwg.mxu0
    %3994 = vmatpush.bf16.msra.mxu0 %v2511
    %3995 = vmatpush.bf16.msra.mxu0 %v2503
    %3996 = vmatpush.bf16.msra.mxu0 %v2495
    %3997 = vmatpush.bf16.msra.mxu0 %v2487
    %3998 = vmatpush.bf16.msra.mxu0 %v2479
    %3999 = vmatpush.bf16.msra.mxu0 %v2471
    %4000 = vmatpush.bf16.msra.mxu0 %v2463
    %4001 = vmatpush.bf16.msra.mxu0 %v2455
    %4002 = vmatmul.bf16.gmra.mxu0 %v376
    %v4003 = vpop.f32.mrf.mxu0
    %v4004 = vadd.f32 %v903, %v4003
    %v4005 = vpop.f32.mrf.mxu0
    %4006 = vdwg.mxu0
    %4007 = vmatpush.bf16.msra.mxu0 %v2575
    %4008 = vmatpush.bf16.msra.mxu0 %v2567
    %4009 = vmatpush.bf16.msra.mxu0 %v2559
    %4010 = vmatpush.bf16.msra.mxu0 %v2551
    %4011 = vmatpush.bf16.msra.mxu0 %v2543
    %4012 = vmatpush.bf16.msra.mxu0 %v2535
    %4013 = vmatpush.bf16.msra.mxu0 %v2527
    %4014 = vmatpush.bf16.msra.mxu0 %v2519
    %4015 = vmatmul.bf16.gmra.mxu0 %v377
    %v4016 = vpop.f32.mrf.mxu0
    %v4017 = vadd.f32 %v4004, %v4016
    %v4018 = vpop.f32.mrf.mxu0
    %4019 = vdwg.mxu0
    %4020 = vmatpush.bf16.msra.mxu0 %v2639
    %4021 = vmatpush.bf16.msra.mxu0 %v2631
    %4022 = vmatpush.bf16.msra.mxu0 %v2623
    %4023 = vmatpush.bf16.msra.mxu0 %v2615
    %4024 = vmatpush.bf16.msra.mxu0 %v2607
    %4025 = vmatpush.bf16.msra.mxu0 %v2599
    %4026 = vmatpush.bf16.msra.mxu0 %v2591
    %4027 = vmatpush.bf16.msra.mxu0 %v2583
    %4028 = vmatmul.bf16.gmra.mxu0 %v378
    %v4029 = vpop.f32.mrf.mxu0
    %v4030 = vadd.f32 %v4017, %v4029
    %v4031 = vpop.f32.mrf.mxu0
    %4032 = vdwg.mxu0
    %4033 = vmatpush.bf16.msra.mxu0 %v2703
    %4034 = vmatpush.bf16.msra.mxu0 %v2695
    %4035 = vmatpush.bf16.msra.mxu0 %v2687
    %4036 = vmatpush.bf16.msra.mxu0 %v2679
    %4037 = vmatpush.bf16.msra.mxu0 %v2671
    %4038 = vmatpush.bf16.msra.mxu0 %v2663
    %4039 = vmatpush.bf16.msra.mxu0 %v2655
    %4040 = vmatpush.bf16.msra.mxu0 %v2647
    %4041 = vmatmul.bf16.gmra.mxu0 %v379
    %v4042 = vpop.f32.mrf.mxu0
    %v4043 = vadd.f32 %v4030, %v4042
    %v4044 = vpop.f32.mrf.mxu0
    %4045 = vdwg.mxu0
    %4046 = vmatpush.bf16.msra.mxu0 %v2767
    %4047 = vmatpush.bf16.msra.mxu0 %v2759
    %4048 = vmatpush.bf16.msra.mxu0 %v2751
    %4049 = vmatpush.bf16.msra.mxu0 %v2743
    %4050 = vmatpush.bf16.msra.mxu0 %v2735
    %4051 = vmatpush.bf16.msra.mxu0 %v2727
    %4052 = vmatpush.bf16.msra.mxu0 %v2719
    %4053 = vmatpush.bf16.msra.mxu0 %v2711
    %4054 = vmatmul.bf16.gmra.mxu0 %v380
    %v4055 = vpop.f32.mrf.mxu0
    %v4056 = vadd.f32 %v4043, %v4055
    %v4057 = vpop.f32.mrf.mxu0
    %4058 = vdwg.mxu0
    %4059 = vmatpush.bf16.msra.mxu0 %v2831
    %4060 = vmatpush.bf16.msra.mxu0 %v2823
    %4061 = vmatpush.bf16.msra.mxu0 %v2815
    %4062 = vmatpush.bf16.msra.mxu0 %v2807
    %4063 = vmatpush.bf16.msra.mxu0 %v2799
    %4064 = vmatpush.bf16.msra.mxu0 %v2791
    %4065 = vmatpush.bf16.msra.mxu0 %v2783
    %4066 = vmatpush.bf16.msra.mxu0 %v2775
    %4067 = vmatmul.bf16.gmra.mxu0 %v381
    %v4068 = vpop.f32.mrf.mxu0
    %v4069 = vadd.f32 %v4056, %v4068
    %v4070 = vpop.f32.mrf.mxu0
    %4071 = vdwg.mxu0
    %4072 = vmatpush.bf16.msra.mxu0 %v2895
    %4073 = vmatpush.bf16.msra.mxu0 %v2887
    %4074 = vmatpush.bf16.msra.mxu0 %v2879
    %4075 = vmatpush.bf16.msra.mxu0 %v2871
    %4076 = vmatpush.bf16.msra.mxu0 %v2863
    %4077 = vmatpush.bf16.msra.mxu0 %v2855
    %4078 = vmatpush.bf16.msra.mxu0 %v2847
    %4079 = vmatpush.bf16.msra.mxu0 %v2839
    %4080 = vmatmul.bf16.gmra.mxu0 %v382
    %v4081 = vpop.f32.mrf.mxu0
    %v4082 = vadd.f32 %v4069, %v4081
    %v4083 = vpop.f32.mrf.mxu0
    %4084 = vdwg.mxu0
    %4085 = vmatpush.bf16.msra.mxu0 %v2959
    %4086 = vmatpush.bf16.msra.mxu0 %v2951
    %4087 = vmatpush.bf16.msra.mxu0 %v2943
    %4088 = vmatpush.bf16.msra.mxu0 %v2935
    %4089 = vmatpush.bf16.msra.mxu0 %v2927
    %4090 = vmatpush.bf16.msra.mxu0 %v2919
    %4091 = vmatpush.bf16.msra.mxu0 %v2911
    %4092 = vmatpush.bf16.msra.mxu0 %v2903
    %4093 = vmatmul.bf16.gmra.mxu0 %v383
    %v4094 = vpop.f32.mrf.mxu0
    %v4095 = vadd.f32 %v4082, %v4094
    %v4096 = vpop.f32.mrf.mxu0
    %4097 = vdwg.mxu0
    %4098 = vmatpush.bf16.msra.mxu0 %v2512
    %4099 = vmatpush.bf16.msra.mxu0 %v2504
    %4100 = vmatpush.bf16.msra.mxu0 %v2496
    %4101 = vmatpush.bf16.msra.mxu0 %v2488
    %4102 = vmatpush.bf16.msra.mxu0 %v2480
    %4103 = vmatpush.bf16.msra.mxu0 %v2472
    %4104 = vmatpush.bf16.msra.mxu0 %v2464
    %4105 = vmatpush.bf16.msra.mxu0 %v2456
    %4106 = vmatmul.bf16.gmra.mxu0 %v376
    %v4107 = vpop.f32.mrf.mxu0
    %v4108 = vadd.f32 %v904, %v4107
    %v4109 = vpop.f32.mrf.mxu0
    %4110 = vdwg.mxu0
    %4111 = vmatpush.bf16.msra.mxu0 %v2576
    %4112 = vmatpush.bf16.msra.mxu0 %v2568
    %4113 = vmatpush.bf16.msra.mxu0 %v2560
    %4114 = vmatpush.bf16.msra.mxu0 %v2552
    %4115 = vmatpush.bf16.msra.mxu0 %v2544
    %4116 = vmatpush.bf16.msra.mxu0 %v2536
    %4117 = vmatpush.bf16.msra.mxu0 %v2528
    %4118 = vmatpush.bf16.msra.mxu0 %v2520
    %4119 = vmatmul.bf16.gmra.mxu0 %v377
    %v4120 = vpop.f32.mrf.mxu0
    %v4121 = vadd.f32 %v4108, %v4120
    %v4122 = vpop.f32.mrf.mxu0
    %4123 = vdwg.mxu0
    %4124 = vmatpush.bf16.msra.mxu0 %v2640
    %4125 = vmatpush.bf16.msra.mxu0 %v2632
    %4126 = vmatpush.bf16.msra.mxu0 %v2624
    %4127 = vmatpush.bf16.msra.mxu0 %v2616
    %4128 = vmatpush.bf16.msra.mxu0 %v2608
    %4129 = vmatpush.bf16.msra.mxu0 %v2600
    %4130 = vmatpush.bf16.msra.mxu0 %v2592
    %4131 = vmatpush.bf16.msra.mxu0 %v2584
    %4132 = vmatmul.bf16.gmra.mxu0 %v378
    %v4133 = vpop.f32.mrf.mxu0
    %v4134 = vadd.f32 %v4121, %v4133
    %v4135 = vpop.f32.mrf.mxu0
    %4136 = vdwg.mxu0
    %4137 = vmatpush.bf16.msra.mxu0 %v2704
    %4138 = vmatpush.bf16.msra.mxu0 %v2696
    %4139 = vmatpush.bf16.msra.mxu0 %v2688
    %4140 = vmatpush.bf16.msra.mxu0 %v2680
    %4141 = vmatpush.bf16.msra.mxu0 %v2672
    %4142 = vmatpush.bf16.msra.mxu0 %v2664
    %4143 = vmatpush.bf16.msra.mxu0 %v2656
    %4144 = vmatpush.bf16.msra.mxu0 %v2648
    %4145 = vmatmul.bf16.gmra.mxu0 %v379
    %v4146 = vpop.f32.mrf.mxu0
    %v4147 = vadd.f32 %v4134, %v4146
    %v4148 = vpop.f32.mrf.mxu0
    %4149 = vdwg.mxu0
    %4150 = vmatpush.bf16.msra.mxu0 %v2768
    %4151 = vmatpush.bf16.msra.mxu0 %v2760
    %4152 = vmatpush.bf16.msra.mxu0 %v2752
    %4153 = vmatpush.bf16.msra.mxu0 %v2744
    %4154 = vmatpush.bf16.msra.mxu0 %v2736
    %4155 = vmatpush.bf16.msra.mxu0 %v2728
    %4156 = vmatpush.bf16.msra.mxu0 %v2720
    %4157 = vmatpush.bf16.msra.mxu0 %v2712
    %4158 = vmatmul.bf16.gmra.mxu0 %v380
    %v4159 = vpop.f32.mrf.mxu0
    %v4160 = vadd.f32 %v4147, %v4159
    %v4161 = vpop.f32.mrf.mxu0
    %4162 = vdwg.mxu0
    %4163 = vmatpush.bf16.msra.mxu0 %v2832
    %4164 = vmatpush.bf16.msra.mxu0 %v2824
    %4165 = vmatpush.bf16.msra.mxu0 %v2816
    %4166 = vmatpush.bf16.msra.mxu0 %v2808
    %4167 = vmatpush.bf16.msra.mxu0 %v2800
    %4168 = vmatpush.bf16.msra.mxu0 %v2792
    %4169 = vmatpush.bf16.msra.mxu0 %v2784
    %4170 = vmatpush.bf16.msra.mxu0 %v2776
    %4171 = vmatmul.bf16.gmra.mxu0 %v381
    %v4172 = vpop.f32.mrf.mxu0
    %v4173 = vadd.f32 %v4160, %v4172
    %v4174 = vpop.f32.mrf.mxu0
    %4175 = vdwg.mxu0
    %4176 = vmatpush.bf16.msra.mxu0 %v2896
    %4177 = vmatpush.bf16.msra.mxu0 %v2888
    %4178 = vmatpush.bf16.msra.mxu0 %v2880
    %4179 = vmatpush.bf16.msra.mxu0 %v2872
    %4180 = vmatpush.bf16.msra.mxu0 %v2864
    %4181 = vmatpush.bf16.msra.mxu0 %v2856
    %4182 = vmatpush.bf16.msra.mxu0 %v2848
    %4183 = vmatpush.bf16.msra.mxu0 %v2840
    %4184 = vmatmul.bf16.gmra.mxu0 %v382
    %v4185 = vpop.f32.mrf.mxu0
    %v4186 = vadd.f32 %v4173, %v4185
    %v4187 = vpop.f32.mrf.mxu0
    %4188 = vdwg.mxu0
    %4189 = vmatpush.bf16.msra.mxu0 %v2960
    %4190 = vmatpush.bf16.msra.mxu0 %v2952
    %4191 = vmatpush.bf16.msra.mxu0 %v2944
    %4192 = vmatpush.bf16.msra.mxu0 %v2936
    %4193 = vmatpush.bf16.msra.mxu0 %v2928
    %4194 = vmatpush.bf16.msra.mxu0 %v2920
    %4195 = vmatpush.bf16.msra.mxu0 %v2912
    %4196 = vmatpush.bf16.msra.mxu0 %v2904
    %4197 = vmatmul.bf16.gmra.mxu0 %v383
    %v4198 = vpop.f32.mrf.mxu0
    %v4199 = vadd.f32 %v4186, %v4198
    %v4200 = vpop.f32.mrf.mxu0
    %4201 = vdwg.mxu0
    %4202 = vmatpush.bf16.msra.mxu0 %v2513
    %4203 = vmatpush.bf16.msra.mxu0 %v2505
    %4204 = vmatpush.bf16.msra.mxu0 %v2497
    %4205 = vmatpush.bf16.msra.mxu0 %v2489
    %4206 = vmatpush.bf16.msra.mxu0 %v2481
    %4207 = vmatpush.bf16.msra.mxu0 %v2473
    %4208 = vmatpush.bf16.msra.mxu0 %v2465
    %4209 = vmatpush.bf16.msra.mxu0 %v2457
    %4210 = vmatmul.bf16.gmra.mxu0 %v376
    %v4211 = vpop.f32.mrf.mxu0
    %v4212 = vadd.f32 %v905, %v4211
    %v4213 = vpop.f32.mrf.mxu0
    %4214 = vdwg.mxu0
    %4215 = vmatpush.bf16.msra.mxu0 %v2577
    %4216 = vmatpush.bf16.msra.mxu0 %v2569
    %4217 = vmatpush.bf16.msra.mxu0 %v2561
    %4218 = vmatpush.bf16.msra.mxu0 %v2553
    %4219 = vmatpush.bf16.msra.mxu0 %v2545
    %4220 = vmatpush.bf16.msra.mxu0 %v2537
    %4221 = vmatpush.bf16.msra.mxu0 %v2529
    %4222 = vmatpush.bf16.msra.mxu0 %v2521
    %4223 = vmatmul.bf16.gmra.mxu0 %v377
    %v4224 = vpop.f32.mrf.mxu0
    %v4225 = vadd.f32 %v4212, %v4224
    %v4226 = vpop.f32.mrf.mxu0
    %4227 = vdwg.mxu0
    %4228 = vmatpush.bf16.msra.mxu0 %v2641
    %4229 = vmatpush.bf16.msra.mxu0 %v2633
    %4230 = vmatpush.bf16.msra.mxu0 %v2625
    %4231 = vmatpush.bf16.msra.mxu0 %v2617
    %4232 = vmatpush.bf16.msra.mxu0 %v2609
    %4233 = vmatpush.bf16.msra.mxu0 %v2601
    %4234 = vmatpush.bf16.msra.mxu0 %v2593
    %4235 = vmatpush.bf16.msra.mxu0 %v2585
    %4236 = vmatmul.bf16.gmra.mxu0 %v378
    %v4237 = vpop.f32.mrf.mxu0
    %v4238 = vadd.f32 %v4225, %v4237
    %v4239 = vpop.f32.mrf.mxu0
    %4240 = vdwg.mxu0
    %4241 = vmatpush.bf16.msra.mxu0 %v2705
    %4242 = vmatpush.bf16.msra.mxu0 %v2697
    %4243 = vmatpush.bf16.msra.mxu0 %v2689
    %4244 = vmatpush.bf16.msra.mxu0 %v2681
    %4245 = vmatpush.bf16.msra.mxu0 %v2673
    %4246 = vmatpush.bf16.msra.mxu0 %v2665
    %4247 = vmatpush.bf16.msra.mxu0 %v2657
    %4248 = vmatpush.bf16.msra.mxu0 %v2649
    %4249 = vmatmul.bf16.gmra.mxu0 %v379
    %v4250 = vpop.f32.mrf.mxu0
    %v4251 = vadd.f32 %v4238, %v4250
    %v4252 = vpop.f32.mrf.mxu0
    %4253 = vdwg.mxu0
    %4254 = vmatpush.bf16.msra.mxu0 %v2769
    %4255 = vmatpush.bf16.msra.mxu0 %v2761
    %4256 = vmatpush.bf16.msra.mxu0 %v2753
    %4257 = vmatpush.bf16.msra.mxu0 %v2745
    %4258 = vmatpush.bf16.msra.mxu0 %v2737
    %4259 = vmatpush.bf16.msra.mxu0 %v2729
    %4260 = vmatpush.bf16.msra.mxu0 %v2721
    %4261 = vmatpush.bf16.msra.mxu0 %v2713
    %4262 = vmatmul.bf16.gmra.mxu0 %v380
    %v4263 = vpop.f32.mrf.mxu0
    %v4264 = vadd.f32 %v4251, %v4263
    %v4265 = vpop.f32.mrf.mxu0
    %4266 = vdwg.mxu0
    %4267 = vmatpush.bf16.msra.mxu0 %v2833
    %4268 = vmatpush.bf16.msra.mxu0 %v2825
    %4269 = vmatpush.bf16.msra.mxu0 %v2817
    %4270 = vmatpush.bf16.msra.mxu0 %v2809
    %4271 = vmatpush.bf16.msra.mxu0 %v2801
    %4272 = vmatpush.bf16.msra.mxu0 %v2793
    %4273 = vmatpush.bf16.msra.mxu0 %v2785
    %4274 = vmatpush.bf16.msra.mxu0 %v2777
    %4275 = vmatmul.bf16.gmra.mxu0 %v381
    %v4276 = vpop.f32.mrf.mxu0
    %v4277 = vadd.f32 %v4264, %v4276
    %v4278 = vpop.f32.mrf.mxu0
    %4279 = vdwg.mxu0
    %4280 = vmatpush.bf16.msra.mxu0 %v2897
    %4281 = vmatpush.bf16.msra.mxu0 %v2889
    %4282 = vmatpush.bf16.msra.mxu0 %v2881
    %4283 = vmatpush.bf16.msra.mxu0 %v2873
    %4284 = vmatpush.bf16.msra.mxu0 %v2865
    %4285 = vmatpush.bf16.msra.mxu0 %v2857
    %4286 = vmatpush.bf16.msra.mxu0 %v2849
    %4287 = vmatpush.bf16.msra.mxu0 %v2841
    %4288 = vmatmul.bf16.gmra.mxu0 %v382
    %v4289 = vpop.f32.mrf.mxu0
    %v4290 = vadd.f32 %v4277, %v4289
    %v4291 = vpop.f32.mrf.mxu0
    %4292 = vdwg.mxu0
    %4293 = vmatpush.bf16.msra.mxu0 %v2961
    %4294 = vmatpush.bf16.msra.mxu0 %v2953
    %4295 = vmatpush.bf16.msra.mxu0 %v2945
    %4296 = vmatpush.bf16.msra.mxu0 %v2937
    %4297 = vmatpush.bf16.msra.mxu0 %v2929
    %4298 = vmatpush.bf16.msra.mxu0 %v2921
    %4299 = vmatpush.bf16.msra.mxu0 %v2913
    %4300 = vmatpush.bf16.msra.mxu0 %v2905
    %4301 = vmatmul.bf16.gmra.mxu0 %v383
    %v4302 = vpop.f32.mrf.mxu0
    %v4303 = vadd.f32 %v4290, %v4302
    %v4304 = vpop.f32.mrf.mxu0
    %4305 = vdwg.mxu0
    %v4306 = vmax.f32 %v3575, 0.0
    %v4307 = vmax.f32 %v3679, 0.0
    %v4308 = vmax.f32 %v3783, 0.0
    %v4309 = vmax.f32 %v3887, 0.0
    %v4310 = vmax.f32 %v3991, 0.0
    %v4311 = vmax.f32 %v4095, 0.0
    %v4312 = vmax.f32 %v4199, 0.0
    %v4313 = vmax.f32 %v4303, 0.0
    %v4314 = vmin.f32 %v4306, 6.0
    %v4315 = vmin.f32 %v4307, 6.0
    %v4316 = vmin.f32 %v4308, 6.0
    %v4317 = vmin.f32 %v4309, 6.0
    %v4318 = vmin.f32 %v4310, 6.0
    %v4319 = vmin.f32 %v4311, 6.0
    %v4320 = vmin.f32 %v4312, 6.0
    %v4321 = vmin.f32 %v4313, 6.0
    %v4322 = vpack.c.bf16 %v4314, %v4314
    %v4323 = vpack.c.bf16 %v4315, %v4315
    %v4324 = vpack.c.bf16 %v4316, %v4316
    %v4325 = vpack.c.bf16 %v4317, %v4317
    %v4326 = vpack.c.bf16 %v4318, %v4318
    %v4327 = vpack.c.bf16 %v4319, %v4319
    %v4328 = vpack.c.bf16 %v4320, %v4320
    %v4329 = vpack.c.bf16 %v4321, %v4321
    %v4330 = vld [vmem:[#allocation11] sm:$0xf]
    %v4331 = vld [vmem:[#allocation11 + $0x4] sm:$0xf]
    %v4332 = vld [vmem:[#allocation11 + $0x8] sm:$0xf]
    %v4333 = vld [vmem:[#allocation11 + $0xc] sm:$0xf]
    %v4334 = vld [vmem:[#allocation11 + $0x10] sm:$0xf]
    %v4335 = vld [vmem:[#allocation11 + $0x14] sm:$0xf]
    %v4336 = vld [vmem:[#allocation11 + $0x18] sm:$0xf]
    %v4337 = vld [vmem:[#allocation11 + $0x1c] sm:$0xf]
    %v4338 = vld [vmem:[#allocation11 + $0x20] sm:$0xf]
    %v4339 = vld [vmem:[#allocation11 + $0x24] sm:$0xf]
    %v4340 = vld [vmem:[#allocation11 + $0x28] sm:$0xf]
    %v4341 = vld [vmem:[#allocation11 + $0x2c] sm:$0xf]
    %v4342 = vld [vmem:[#allocation11 + $0x30] sm:$0xf]
    %v4343 = vld [vmem:[#allocation11 + $0x34] sm:$0xf]
    %v4344 = vld [vmem:[#allocation11 + $0x38] sm:$0xf]
    %v4345 = vld [vmem:[#allocation11 + $0x3c] sm:$0xf]
    %v4346 = vld [vmem:[#allocation11 + $0x40] sm:$0xf]
    %v4347 = vld [vmem:[#allocation11 + $0x44] sm:$0xf]
    %v4348 = vld [vmem:[#allocation11 + $0x48] sm:$0xf]
    %v4349 = vld [vmem:[#allocation11 + $0x4c] sm:$0xf]
    %v4350 = vld [vmem:[#allocation11 + $0x50] sm:$0xf]
    %v4351 = vld [vmem:[#allocation11 + $0x54] sm:$0xf]
    %v4352 = vld [vmem:[#allocation11 + $0x58] sm:$0xf]
    %v4353 = vld [vmem:[#allocation11 + $0x5c] sm:$0xf]
    %v4354 = vld [vmem:[#allocation11 + $0x60] sm:$0xf]
    %v4355 = vld [vmem:[#allocation11 + $0x64] sm:$0xf]
    %v4356 = vld [vmem:[#allocation11 + $0x68] sm:$0xf]
    %v4357 = vld [vmem:[#allocation11 + $0x6c] sm:$0xf]
    %v4358 = vld [vmem:[#allocation11 + $0x70] sm:$0xf]
    %v4359 = vld [vmem:[#allocation11 + $0x74] sm:$0xf]
    %v4360 = vld [vmem:[#allocation11 + $0x78] sm:$0xf]
    %v4361 = vld [vmem:[#allocation11 + $0x7c] sm:$0xf]
    %v4362 = vld [vmem:[#allocation11 + $0x80] sm:$0xf]
    %v4363 = vld [vmem:[#allocation11 + $0x84] sm:$0xf]
    %v4364 = vld [vmem:[#allocation11 + $0x88] sm:$0xf]
    %v4365 = vld [vmem:[#allocation11 + $0x8c] sm:$0xf]
    %v4366 = vld [vmem:[#allocation11 + $0x90] sm:$0xf]
    %v4367 = vld [vmem:[#allocation11 + $0x94] sm:$0xf]
    %v4368 = vld [vmem:[#allocation11 + $0x98] sm:$0xf]
    %v4369 = vld [vmem:[#allocation11 + $0x9c] sm:$0xf]
    %v4370 = vld [vmem:[#allocation11 + $0xa0] sm:$0xf]
    %v4371 = vld [vmem:[#allocation11 + $0xa4] sm:$0xf]
    %v4372 = vld [vmem:[#allocation11 + $0xa8] sm:$0xf]
    %v4373 = vld [vmem:[#allocation11 + $0xac] sm:$0xf]
    %v4374 = vld [vmem:[#allocation11 + $0xb0] sm:$0xf]
    %v4375 = vld [vmem:[#allocation11 + $0xb4] sm:$0xf]
    %v4376 = vld [vmem:[#allocation11 + $0xb8] sm:$0xf]
    %v4377 = vld [vmem:[#allocation11 + $0xbc] sm:$0xf]
    %v4378 = vld [vmem:[#allocation11 + $0xc0] sm:$0xf]
    %v4379 = vld [vmem:[#allocation11 + $0xc4] sm:$0xf]
    %v4380 = vld [vmem:[#allocation11 + $0xc8] sm:$0xf]
    %v4381 = vld [vmem:[#allocation11 + $0xcc] sm:$0xf]
    %v4382 = vld [vmem:[#allocation11 + $0xd0] sm:$0xf]
    %v4383 = vld [vmem:[#allocation11 + $0xd4] sm:$0xf]
    %v4384 = vld [vmem:[#allocation11 + $0xd8] sm:$0xf]
    %v4385 = vld [vmem:[#allocation11 + $0xdc] sm:$0xf]
    %v4386 = vld [vmem:[#allocation11 + $0xe0] sm:$0xf]
    %v4387 = vld [vmem:[#allocation11 + $0xe4] sm:$0xf]
    %v4388 = vld [vmem:[#allocation11 + $0xe8] sm:$0xf]
    %v4389 = vld [vmem:[#allocation11 + $0xec] sm:$0xf]
    %v4390 = vld [vmem:[#allocation11 + $0xf0] sm:$0xf]
    %v4391 = vld [vmem:[#allocation11 + $0xf4] sm:$0xf]
    %v4392 = vld [vmem:[#allocation11 + $0xf8] sm:$0xf]
    %v4393 = vld [vmem:[#allocation11 + $0xfc] sm:$0xf]
    %v4394 = vld [vmem:[#allocation11 + $0x100] sm:$0xf]
    %v4395 = vld [vmem:[#allocation11 + $0x104] sm:$0xf]
    %v4396 = vld [vmem:[#allocation11 + $0x108] sm:$0xf]
    %v4397 = vld [vmem:[#allocation11 + $0x10c] sm:$0xf]
    %v4398 = vld [vmem:[#allocation11 + $0x110] sm:$0xf]
    %v4399 = vld [vmem:[#allocation11 + $0x114] sm:$0xf]
    %v4400 = vld [vmem:[#allocation11 + $0x118] sm:$0xf]
    %v4401 = vld [vmem:[#allocation11 + $0x11c] sm:$0xf]
    %v4402 = vld [vmem:[#allocation11 + $0x120] sm:$0xf]
    %v4403 = vld [vmem:[#allocation11 + $0x124] sm:$0xf]
    %v4404 = vld [vmem:[#allocation11 + $0x128] sm:$0xf]
    %v4405 = vld [vmem:[#allocation11 + $0x12c] sm:$0xf]
    %v4406 = vld [vmem:[#allocation11 + $0x130] sm:$0xf]
    %v4407 = vld [vmem:[#allocation11 + $0x134] sm:$0xf]
    %v4408 = vld [vmem:[#allocation11 + $0x138] sm:$0xf]
    %v4409 = vld [vmem:[#allocation11 + $0x13c] sm:$0xf]
    %v4410 = vld [vmem:[#allocation11 + $0x140] sm:$0xf]
    %v4411 = vld [vmem:[#allocation11 + $0x144] sm:$0xf]
    %v4412 = vld [vmem:[#allocation11 + $0x148] sm:$0xf]
    %v4413 = vld [vmem:[#allocation11 + $0x14c] sm:$0xf]
    %v4414 = vld [vmem:[#allocation11 + $0x150] sm:$0xf]
    %v4415 = vld [vmem:[#allocation11 + $0x154] sm:$0xf]
    %v4416 = vld [vmem:[#allocation11 + $0x158] sm:$0xf]
    %v4417 = vld [vmem:[#allocation11 + $0x15c] sm:$0xf]
    %v4418 = vld [vmem:[#allocation11 + $0x160] sm:$0xf]
    %v4419 = vld [vmem:[#allocation11 + $0x164] sm:$0xf]
    %v4420 = vld [vmem:[#allocation11 + $0x168] sm:$0xf]
    %v4421 = vld [vmem:[#allocation11 + $0x16c] sm:$0xf]
    %v4422 = vld [vmem:[#allocation11 + $0x170] sm:$0xf]
    %v4423 = vld [vmem:[#allocation11 + $0x174] sm:$0xf]
    %v4424 = vld [vmem:[#allocation11 + $0x178] sm:$0xf]
    %v4425 = vld [vmem:[#allocation11 + $0x17c] sm:$0xf]
    %v4426 = vld [vmem:[#allocation11 + $0x180] sm:$0xf]
    %v4427 = vld [vmem:[#allocation11 + $0x184] sm:$0xf]
    %v4428 = vld [vmem:[#allocation11 + $0x188] sm:$0xf]
    %v4429 = vld [vmem:[#allocation11 + $0x18c] sm:$0xf]
    %v4430 = vld [vmem:[#allocation11 + $0x190] sm:$0xf]
    %v4431 = vld [vmem:[#allocation11 + $0x194] sm:$0xf]
    %v4432 = vld [vmem:[#allocation11 + $0x198] sm:$0xf]
    %v4433 = vld [vmem:[#allocation11 + $0x19c] sm:$0xf]
    %v4434 = vld [vmem:[#allocation11 + $0x1a0] sm:$0xf]
    %v4435 = vld [vmem:[#allocation11 + $0x1a4] sm:$0xf]
    %v4436 = vld [vmem:[#allocation11 + $0x1a8] sm:$0xf]
    %v4437 = vld [vmem:[#allocation11 + $0x1ac] sm:$0xf]
    %v4438 = vld [vmem:[#allocation11 + $0x1b0] sm:$0xf]
    %v4439 = vld [vmem:[#allocation11 + $0x1b4] sm:$0xf]
    %v4440 = vld [vmem:[#allocation11 + $0x1b8] sm:$0xf]
    %v4441 = vld [vmem:[#allocation11 + $0x1bc] sm:$0xf]
    %v4442 = vld [vmem:[#allocation11 + $0x1c0] sm:$0xf]
    %v4443 = vld [vmem:[#allocation11 + $0x1c4] sm:$0xf]
    %v4444 = vld [vmem:[#allocation11 + $0x1c8] sm:$0xf]
    %v4445 = vld [vmem:[#allocation11 + $0x1cc] sm:$0xf]
    %v4446 = vld [vmem:[#allocation11 + $0x1d0] sm:$0xf]
    %v4447 = vld [vmem:[#allocation11 + $0x1d4] sm:$0xf]
    %v4448 = vld [vmem:[#allocation11 + $0x1d8] sm:$0xf]
    %v4449 = vld [vmem:[#allocation11 + $0x1dc] sm:$0xf]
    %v4450 = vld [vmem:[#allocation11 + $0x1e0] sm:$0xf]
    %v4451 = vld [vmem:[#allocation11 + $0x1e4] sm:$0xf]
    %v4452 = vld [vmem:[#allocation11 + $0x1e8] sm:$0xf]
    %v4453 = vld [vmem:[#allocation11 + $0x1ec] sm:$0xf]
    %v4454 = vld [vmem:[#allocation11 + $0x1f0] sm:$0xf]
    %v4455 = vld [vmem:[#allocation11 + $0x1f4] sm:$0xf]
    %v4456 = vld [vmem:[#allocation11 + $0x1f8] sm:$0xf]
    %v4457 = vld [vmem:[#allocation11 + $0x1fc] sm:$0xf]
    %v4458 = vld [vmem:[#allocation13] sm:$0x1]
    %v4460 = vperm.slane %v4458, 0
    %v4590 = vunpack.c.l.b16 %v4330
    %v4591 = vunpack.c.l.b16 %v4331
    %v4592 = vunpack.c.l.b16 %v4332
    %v4593 = vunpack.c.l.b16 %v4333
    %v4594 = vunpack.c.l.b16 %v4334
    %v4595 = vunpack.c.l.b16 %v4335
    %v4596 = vunpack.c.l.b16 %v4336
    %v4597 = vunpack.c.l.b16 %v4337
    %v4598 = vunpack.c.l.b16 %v4338
    %v4599 = vunpack.c.l.b16 %v4339
    %v4600 = vunpack.c.l.b16 %v4340
    %v4601 = vunpack.c.l.b16 %v4341
    %v4602 = vunpack.c.l.b16 %v4342
    %v4603 = vunpack.c.l.b16 %v4343
    %v4604 = vunpack.c.l.b16 %v4344
    %v4605 = vunpack.c.l.b16 %v4345
    %v4606 = vunpack.c.l.b16 %v4346
    %v4607 = vunpack.c.l.b16 %v4347
    %v4608 = vunpack.c.l.b16 %v4348
    %v4609 = vunpack.c.l.b16 %v4349
    %v4610 = vunpack.c.l.b16 %v4350
    %v4611 = vunpack.c.l.b16 %v4351
    %v4612 = vunpack.c.l.b16 %v4352
    %v4613 = vunpack.c.l.b16 %v4353
    %v4614 = vunpack.c.l.b16 %v4354
    %v4615 = vunpack.c.l.b16 %v4355
    %v4616 = vunpack.c.l.b16 %v4356
    %v4617 = vunpack.c.l.b16 %v4357
    %v4618 = vunpack.c.l.b16 %v4358
    %v4619 = vunpack.c.l.b16 %v4359
    %v4620 = vunpack.c.l.b16 %v4360
    %v4621 = vunpack.c.l.b16 %v4361
    %v4622 = vunpack.c.l.b16 %v4362
    %v4623 = vunpack.c.l.b16 %v4363
    %v4624 = vunpack.c.l.b16 %v4364
    %v4625 = vunpack.c.l.b16 %v4365
    %v4626 = vunpack.c.l.b16 %v4366
    %v4627 = vunpack.c.l.b16 %v4367
    %v4628 = vunpack.c.l.b16 %v4368
    %v4629 = vunpack.c.l.b16 %v4369
    %v4630 = vunpack.c.l.b16 %v4370
    %v4631 = vunpack.c.l.b16 %v4371
    %v4632 = vunpack.c.l.b16 %v4372
    %v4633 = vunpack.c.l.b16 %v4373
    %v4634 = vunpack.c.l.b16 %v4374
    %v4635 = vunpack.c.l.b16 %v4375
    %v4636 = vunpack.c.l.b16 %v4376
    %v4637 = vunpack.c.l.b16 %v4377
    %v4638 = vunpack.c.l.b16 %v4378
    %v4639 = vunpack.c.l.b16 %v4379
    %v4640 = vunpack.c.l.b16 %v4380
    %v4641 = vunpack.c.l.b16 %v4381
    %v4642 = vunpack.c.l.b16 %v4382
    %v4643 = vunpack.c.l.b16 %v4383
    %v4644 = vunpack.c.l.b16 %v4384
    %v4645 = vunpack.c.l.b16 %v4385
    %v4646 = vunpack.c.l.b16 %v4386
    %v4647 = vunpack.c.l.b16 %v4387
    %v4648 = vunpack.c.l.b16 %v4388
    %v4649 = vunpack.c.l.b16 %v4389
    %v4650 = vunpack.c.l.b16 %v4390
    %v4651 = vunpack.c.l.b16 %v4391
    %v4652 = vunpack.c.l.b16 %v4392
    %v4653 = vunpack.c.l.b16 %v4393
    %v4654 = vunpack.c.l.b16 %v4394
    %v4655 = vunpack.c.l.b16 %v4395
    %v4656 = vunpack.c.l.b16 %v4396
    %v4657 = vunpack.c.l.b16 %v4397
    %v4658 = vunpack.c.l.b16 %v4398
    %v4659 = vunpack.c.l.b16 %v4399
    %v4660 = vunpack.c.l.b16 %v4400
    %v4661 = vunpack.c.l.b16 %v4401
    %v4662 = vunpack.c.l.b16 %v4402
    %v4663 = vunpack.c.l.b16 %v4403
    %v4664 = vunpack.c.l.b16 %v4404
    %v4665 = vunpack.c.l.b16 %v4405
    %v4666 = vunpack.c.l.b16 %v4406
    %v4667 = vunpack.c.l.b16 %v4407
    %v4668 = vunpack.c.l.b16 %v4408
    %v4669 = vunpack.c.l.b16 %v4409
    %v4670 = vunpack.c.l.b16 %v4410
    %v4671 = vunpack.c.l.b16 %v4411
    %v4672 = vunpack.c.l.b16 %v4412
    %v4673 = vunpack.c.l.b16 %v4413
    %v4674 = vunpack.c.l.b16 %v4414
    %v4675 = vunpack.c.l.b16 %v4415
    %v4676 = vunpack.c.l.b16 %v4416
    %v4677 = vunpack.c.l.b16 %v4417
    %v4678 = vunpack.c.l.b16 %v4418
    %v4679 = vunpack.c.l.b16 %v4419
    %v4680 = vunpack.c.l.b16 %v4420
    %v4681 = vunpack.c.l.b16 %v4421
    %v4682 = vunpack.c.l.b16 %v4422
    %v4683 = vunpack.c.l.b16 %v4423
    %v4684 = vunpack.c.l.b16 %v4424
    %v4685 = vunpack.c.l.b16 %v4425
    %v4686 = vunpack.c.l.b16 %v4426
    %v4687 = vunpack.c.l.b16 %v4427
    %v4688 = vunpack.c.l.b16 %v4428
    %v4689 = vunpack.c.l.b16 %v4429
    %v4690 = vunpack.c.l.b16 %v4430
    %v4691 = vunpack.c.l.b16 %v4431
    %v4692 = vunpack.c.l.b16 %v4432
    %v4693 = vunpack.c.l.b16 %v4433
    %v4694 = vunpack.c.l.b16 %v4434
    %v4695 = vunpack.c.l.b16 %v4435
    %v4696 = vunpack.c.l.b16 %v4436
    %v4697 = vunpack.c.l.b16 %v4437
    %v4698 = vunpack.c.l.b16 %v4438
    %v4699 = vunpack.c.l.b16 %v4439
    %v4700 = vunpack.c.l.b16 %v4440
    %v4701 = vunpack.c.l.b16 %v4441
    %v4702 = vunpack.c.l.b16 %v4442
    %v4703 = vunpack.c.l.b16 %v4443
    %v4704 = vunpack.c.l.b16 %v4444
    %v4705 = vunpack.c.l.b16 %v4445
    %v4706 = vunpack.c.l.b16 %v4446
    %v4707 = vunpack.c.l.b16 %v4447
    %v4708 = vunpack.c.l.b16 %v4448
    %v4709 = vunpack.c.l.b16 %v4449
    %v4710 = vunpack.c.l.b16 %v4450
    %v4711 = vunpack.c.l.b16 %v4451
    %v4712 = vunpack.c.l.b16 %v4452
    %v4713 = vunpack.c.l.b16 %v4453
    %v4714 = vunpack.c.l.b16 %v4454
    %v4715 = vunpack.c.l.b16 %v4455
    %v4716 = vunpack.c.l.b16 %v4456
    %v4717 = vunpack.c.l.b16 %v4457
    %v4718 = vpack.c.b16 %v4591, %v4590
    %v4719 = vpack.c.b16 %v4593, %v4592
    %v4720 = vpack.c.b16 %v4595, %v4594
    %v4721 = vpack.c.b16 %v4597, %v4596
    %v4722 = vpack.c.b16 %v4599, %v4598
    %v4723 = vpack.c.b16 %v4601, %v4600
    %v4724 = vpack.c.b16 %v4603, %v4602
    %v4725 = vpack.c.b16 %v4605, %v4604
    %v4726 = vpack.c.b16 %v4607, %v4606
    %v4727 = vpack.c.b16 %v4609, %v4608
    %v4728 = vpack.c.b16 %v4611, %v4610
    %v4729 = vpack.c.b16 %v4613, %v4612
    %v4730 = vpack.c.b16 %v4615, %v4614
    %v4731 = vpack.c.b16 %v4617, %v4616
    %v4732 = vpack.c.b16 %v4619, %v4618
    %v4733 = vpack.c.b16 %v4621, %v4620
    %v4734 = vpack.c.b16 %v4623, %v4622
    %v4735 = vpack.c.b16 %v4625, %v4624
    %v4736 = vpack.c.b16 %v4627, %v4626
    %v4737 = vpack.c.b16 %v4629, %v4628
    %v4738 = vpack.c.b16 %v4631, %v4630
    %v4739 = vpack.c.b16 %v4633, %v4632
    %v4740 = vpack.c.b16 %v4635, %v4634
    %v4741 = vpack.c.b16 %v4637, %v4636
    %v4742 = vpack.c.b16 %v4639, %v4638
    %v4743 = vpack.c.b16 %v4641, %v4640
    %v4744 = vpack.c.b16 %v4643, %v4642
    %v4745 = vpack.c.b16 %v4645, %v4644
    %v4746 = vpack.c.b16 %v4647, %v4646
    %v4747 = vpack.c.b16 %v4649, %v4648
    %v4748 = vpack.c.b16 %v4651, %v4650
    %v4749 = vpack.c.b16 %v4653, %v4652
    %v4750 = vpack.c.b16 %v4655, %v4654
    %v4751 = vpack.c.b16 %v4657, %v4656
    %v4752 = vpack.c.b16 %v4659, %v4658
    %v4753 = vpack.c.b16 %v4661, %v4660
    %v4754 = vpack.c.b16 %v4663, %v4662
    %v4755 = vpack.c.b16 %v4665, %v4664
    %v4756 = vpack.c.b16 %v4667, %v4666
    %v4757 = vpack.c.b16 %v4669, %v4668
    %v4758 = vpack.c.b16 %v4671, %v4670
    %v4759 = vpack.c.b16 %v4673, %v4672
    %v4760 = vpack.c.b16 %v4675, %v4674
    %v4761 = vpack.c.b16 %v4677, %v4676
    %v4762 = vpack.c.b16 %v4679, %v4678
    %v4763 = vpack.c.b16 %v4681, %v4680
    %v4764 = vpack.c.b16 %v4683, %v4682
    %v4765 = vpack.c.b16 %v4685, %v4684
    %v4766 = vpack.c.b16 %v4687, %v4686
    %v4767 = vpack.c.b16 %v4689, %v4688
    %v4768 = vpack.c.b16 %v4691, %v4690
    %v4769 = vpack.c.b16 %v4693, %v4692
    %v4770 = vpack.c.b16 %v4695, %v4694
    %v4771 = vpack.c.b16 %v4697, %v4696
    %v4772 = vpack.c.b16 %v4699, %v4698
    %v4773 = vpack.c.b16 %v4701, %v4700
    %v4774 = vpack.c.b16 %v4703, %v4702
    %v4775 = vpack.c.b16 %v4705, %v4704
    %v4776 = vpack.c.b16 %v4707, %v4706
    %v4777 = vpack.c.b16 %v4709, %v4708
    %v4778 = vpack.c.b16 %v4711, %v4710
    %v4779 = vpack.c.b16 %v4713, %v4712
    %v4780 = vpack.c.b16 %v4715, %v4714
    %v4781 = vpack.c.b16 %v4717, %v4716
    %4846 = vmatpush.bf16.msra.mxu0 %v4725
    %4847 = vmatpush.bf16.msra.mxu0 %v4724
    %4848 = vmatpush.bf16.msra.mxu0 %v4723
    %4849 = vmatpush.bf16.msra.mxu0 %v4722
    %4850 = vmatpush.bf16.msra.mxu0 %v4721
    %4851 = vmatpush.bf16.msra.mxu0 %v4720
    %4852 = vmatpush.bf16.msra.mxu0 %v4719
    %4853 = vmatpush.bf16.msra.mxu0 %v4718
    %4854 = vmatmul.bf16.gmra.mxu0 %v4322
    %v4855 = vpop.f32.mrf.mxu0
    %v4856 = vadd.f32 %v4460, %v4855
    %v4857 = vpop.f32.mrf.mxu0
    %4858 = vdwg.mxu0
    %4859 = vmatpush.bf16.msra.mxu0 %v4733
    %4860 = vmatpush.bf16.msra.mxu0 %v4732
    %4861 = vmatpush.bf16.msra.mxu0 %v4731
    %4862 = vmatpush.bf16.msra.mxu0 %v4730
    %4863 = vmatpush.bf16.msra.mxu0 %v4729
    %4864 = vmatpush.bf16.msra.mxu0 %v4728
    %4865 = vmatpush.bf16.msra.mxu0 %v4727
    %4866 = vmatpush.bf16.msra.mxu0 %v4726
    %4867 = vmatmul.bf16.gmra.mxu0 %v4323
    %v4868 = vpop.f32.mrf.mxu0
    %v4869 = vadd.f32 %v4856, %v4868
    %v4870 = vpop.f32.mrf.mxu0
    %4871 = vdwg.mxu0
    %4872 = vmatpush.bf16.msra.mxu0 %v4741
    %4873 = vmatpush.bf16.msra.mxu0 %v4740
    %4874 = vmatpush.bf16.msra.mxu0 %v4739
    %4875 = vmatpush.bf16.msra.mxu0 %v4738
    %4876 = vmatpush.bf16.msra.mxu0 %v4737
    %4877 = vmatpush.bf16.msra.mxu0 %v4736
    %4878 = vmatpush.bf16.msra.mxu0 %v4735
    %4879 = vmatpush.bf16.msra.mxu0 %v4734
    %4880 = vmatmul.bf16.gmra.mxu0 %v4324
    %v4881 = vpop.f32.mrf.mxu0
    %v4882 = vadd.f32 %v4869, %v4881
    %v4883 = vpop.f32.mrf.mxu0
    %4884 = vdwg.mxu0
    %4885 = vmatpush.bf16.msra.mxu0 %v4749
    %4886 = vmatpush.bf16.msra.mxu0 %v4748
    %4887 = vmatpush.bf16.msra.mxu0 %v4747
    %4888 = vmatpush.bf16.msra.mxu0 %v4746
    %4889 = vmatpush.bf16.msra.mxu0 %v4745
    %4890 = vmatpush.bf16.msra.mxu0 %v4744
    %4891 = vmatpush.bf16.msra.mxu0 %v4743
    %4892 = vmatpush.bf16.msra.mxu0 %v4742
    %4893 = vmatmul.bf16.gmra.mxu0 %v4325
    %v4894 = vpop.f32.mrf.mxu0
    %v4895 = vadd.f32 %v4882, %v4894
    %v4896 = vpop.f32.mrf.mxu0
    %4897 = vdwg.mxu0
    %4898 = vmatpush.bf16.msra.mxu0 %v4757
    %4899 = vmatpush.bf16.msra.mxu0 %v4756
    %4900 = vmatpush.bf16.msra.mxu0 %v4755
    %4901 = vmatpush.bf16.msra.mxu0 %v4754
    %4902 = vmatpush.bf16.msra.mxu0 %v4753
    %4903 = vmatpush.bf16.msra.mxu0 %v4752
    %4904 = vmatpush.bf16.msra.mxu0 %v4751
    %4905 = vmatpush.bf16.msra.mxu0 %v4750
    %4906 = vmatmul.bf16.gmra.mxu0 %v4326
    %v4907 = vpop.f32.mrf.mxu0
    %v4908 = vadd.f32 %v4895, %v4907
    %v4909 = vpop.f32.mrf.mxu0
    %4910 = vdwg.mxu0
    %4911 = vmatpush.bf16.msra.mxu0 %v4765
    %4912 = vmatpush.bf16.msra.mxu0 %v4764
    %4913 = vmatpush.bf16.msra.mxu0 %v4763
    %4914 = vmatpush.bf16.msra.mxu0 %v4762
    %4915 = vmatpush.bf16.msra.mxu0 %v4761
    %4916 = vmatpush.bf16.msra.mxu0 %v4760
    %4917 = vmatpush.bf16.msra.mxu0 %v4759
    %4918 = vmatpush.bf16.msra.mxu0 %v4758
    %4919 = vmatmul.bf16.gmra.mxu0 %v4327
    %v4920 = vpop.f32.mrf.mxu0
    %v4921 = vadd.f32 %v4908, %v4920
    %v4922 = vpop.f32.mrf.mxu0
    %4923 = vdwg.mxu0
    %4924 = vmatpush.bf16.msra.mxu0 %v4773
    %4925 = vmatpush.bf16.msra.mxu0 %v4772
    %4926 = vmatpush.bf16.msra.mxu0 %v4771
    %4927 = vmatpush.bf16.msra.mxu0 %v4770
    %4928 = vmatpush.bf16.msra.mxu0 %v4769
    %4929 = vmatpush.bf16.msra.mxu0 %v4768
    %4930 = vmatpush.bf16.msra.mxu0 %v4767
    %4931 = vmatpush.bf16.msra.mxu0 %v4766
    %4932 = vmatmul.bf16.gmra.mxu0 %v4328
    %v4933 = vpop.f32.mrf.mxu0
    %v4934 = vadd.f32 %v4921, %v4933
    %v4935 = vpop.f32.mrf.mxu0
    %4936 = vdwg.mxu0
    %4937 = vmatpush.bf16.msra.mxu0 %v4781
    %4938 = vmatpush.bf16.msra.mxu0 %v4780
    %4939 = vmatpush.bf16.msra.mxu0 %v4779
    %4940 = vmatpush.bf16.msra.mxu0 %v4778
    %4941 = vmatpush.bf16.msra.mxu0 %v4777
    %4942 = vmatpush.bf16.msra.mxu0 %v4776
    %4943 = vmatpush.bf16.msra.mxu0 %v4775
    %4944 = vmatpush.bf16.msra.mxu0 %v4774
    %4945 = vmatmul.bf16.gmra.mxu0 %v4329
    %v4946 = vpop.f32.mrf.mxu0
    %v4947 = vadd.f32 %v4934, %v4946
    %v4948 = vpop.f32.mrf.mxu0
    %4949 = vdwg.mxu0
    %v4950 = vmax.f32 %v4947, 0.0
    %v4951 = vmin.f32 %v4950, 6.0
    %v4952 = vpack.c.bf16 %v4951, %v4951
    %v4953 = vld [vmem:[#allocation14] sm:$0xf]
    %v4954 = vld [vmem:[#allocation14 + $0x4] sm:$0xf]
    %v4955 = vld [vmem:[#allocation14 + $0x8] sm:$0xf]
    %v4956 = vld [vmem:[#allocation14 + $0xc] sm:$0xf]
    %v4957 = vld [vmem:[#allocation14 + $0x10] sm:$0xf]
    %v4958 = vld [vmem:[#allocation14 + $0x14] sm:$0xf]
    %v4959 = vld [vmem:[#allocation14 + $0x18] sm:$0xf]
    %v4960 = vld [vmem:[#allocation14 + $0x1c] sm:$0xf]
    %v4961 = vld [vmem:[#allocation14 + $0x20] sm:$0xf]
    %v4962 = vld [vmem:[#allocation14 + $0x24] sm:$0xf]
    %v4963 = vld [vmem:[#allocation14 + $0x28] sm:$0xf]
    %v4964 = vld [vmem:[#allocation14 + $0x2c] sm:$0xf]
    %v4965 = vld [vmem:[#allocation14 + $0x30] sm:$0xf]
    %v4966 = vld [vmem:[#allocation14 + $0x34] sm:$0xf]
    %v4967 = vld [vmem:[#allocation14 + $0x38] sm:$0xf]
    %v4968 = vld [vmem:[#allocation14 + $0x3c] sm:$0xf]
    %v4969 = vld [vmem:[#allocation16] sm:$0x1]
    %v4971 = vperm.slane %v4969, 0
    %v4989 = vunpack.c.l.b16 %v4953
    %v4990 = vunpack.c.l.b16 %v4954
    %v4991 = vunpack.c.l.b16 %v4955
    %v4992 = vunpack.c.l.b16 %v4956
    %v4993 = vunpack.c.l.b16 %v4957
    %v4994 = vunpack.c.l.b16 %v4958
    %v4995 = vunpack.c.l.b16 %v4959
    %v4996 = vunpack.c.l.b16 %v4960
    %v4997 = vunpack.c.l.b16 %v4961
    %v4998 = vunpack.c.l.b16 %v4962
    %v4999 = vunpack.c.l.b16 %v4963
    %v5000 = vunpack.c.l.b16 %v4964
    %v5001 = vunpack.c.l.b16 %v4965
    %v5002 = vunpack.c.l.b16 %v4966
    %v5003 = vunpack.c.l.b16 %v4967
    %v5004 = vunpack.c.l.b16 %v4968
    %v5005 = vpack.c.b16 %v4990, %v4989
    %v5006 = vpack.c.b16 %v4992, %v4991
    %v5007 = vpack.c.b16 %v4994, %v4993
    %v5008 = vpack.c.b16 %v4996, %v4995
    %v5009 = vpack.c.b16 %v4998, %v4997
    %v5010 = vpack.c.b16 %v5000, %v4999
    %v5011 = vpack.c.b16 %v5002, %v5001
    %v5012 = vpack.c.b16 %v5004, %v5003
    %5021 = vmatpush.bf16.msra.mxu0 %v5012
    %5022 = vmatpush.bf16.msra.mxu0 %v5011
    %5023 = vmatpush.bf16.msra.mxu0 %v5010
    %5024 = vmatpush.bf16.msra.mxu0 %v5009
    %5025 = vmatpush.bf16.msra.mxu0 %v5008
    %5026 = vmatpush.bf16.msra.mxu0 %v5007
    %5027 = vmatpush.bf16.msra.mxu0 %v5006
    %5028 = vmatpush.bf16.msra.mxu0 %v5005
    %5029 = vmatmul.bf16.gmra.mxu0 %v4952
    %v5030 = vpop.f32.mrf.mxu0
    %v5031 = vadd.f32 %v4971, %v5030
    %v5032 = vpop.f32.mrf.mxu0
    %5033 = vdwg.mxu0
    %5034 = vst [vmem:[#allocation17] sm:$0xff] %v5031
    // Predicated region
    $region74: #{tpu_custom_call.1} parent=1 // pred_check
      _
    $region75: #{tpu_custom_call.1} parent=1 // pred_check_branch
      %5036 = sbr.rel (0) target = $region77
    $region76: #{tpu_custom_call.1} parent=1 // pred_region
      %5038 = vsyncadd [#allocation4], 0
      %s5040 = sshll.u32 [#allocation17], 4
      %s5041 = int_to_ptr.vmem [resolvable:$true] %s5040
      %s5042 = sshll.u32 %s9, 4
      %s5043 = int_to_ptr.hbm [resolvable:$true] %s5042
      %5045 = dma.vmem_to_hbm [thread:$0]  %s5041, 128, %s5043, [#allocation4]
    $region77: #{tpu_custom_call.1} parent=1 // pred_fallthru
      _
    // Predicated region
    $region78: #{tpu_custom_call.1} parent=1 // pred_check
      _
    $region79: #{tpu_custom_call.1} parent=1 // pred_check_branch
      %5047 = sbr.rel (0) target = $region81
    $region80: #{tpu_custom_call.1} parent=1 // pred_region
      %5049 = dma.done [#allocation4], 128
    $region81: #{tpu_custom_call.1} parent=1 // pred_fallthru
      _
    %5050 = vsyncpa [#allocation3], 1
    %5051 = vsyncpa [#allocation6], 1
    %5052 = vsyncpa [#allocation9], 1
    %5053 = vsyncpa [#allocation12], 1
    %5054 = vsyncpa [#allocation15], 1
    %5055 = vsyncpa [#allocation4], 1

</llo_original>
